<compile_context>
chip_gen: v7x
topology: tpu7x:2x2x1
jax: 0.10.0
libtpu: 0.0.40
codegen_flags: <defaults>
</compile_context>

<pallas_src>
import functools
import math

import jax
import jax.numpy as jnp
from jax.experimental import pallas as pl
from jax.experimental.pallas import tpu as pltpu

# ----------------------------- mini-BERT config ------------------------------
VOCAB = 50
TYPE_VOCAB = 2
MAX_POS = 16
HIDDEN = 32
N_HEADS = 2
HEAD_DIM = HIDDEN // N_HEADS
N_LAYERS = 2
INTERMEDIATE = 64
LN_EPS = 1e-12
MASK_NEG = -10000.0  # BERT-style additive attention mask
POOLINGS = ("cls", "pooler", "last-avg", "first-last-avg")


# ------------------------------ fused kernel ---------------------------------
def _layer_norm(h, g, b):
    mean = jnp.mean(h, axis=-1, keepdims=True)
    var = jnp.mean((h - mean) ** 2, axis=-1, keepdims=True)
    return (h - mean) * jax.lax.rsqrt(var + LN_EPS) * g + b


def _encoder_kernel(ids_ref, tt_ref, mask_ref,
                    word_emb_ref, pos_emb_ref, type_emb_ref,
                    emb_ln_g_ref, emb_ln_b_ref,
                    wqkv_ref, bqkv_ref,
                    wo_ref, bo_ref,
                    ln1_g_ref, ln1_b_ref,
                    w1_ref, b1_ref,
                    w2_ref, b2_ref,
                    ln2_g_ref, ln2_b_ref,
                    pooler_w_ref, pooler_b_ref,
                    o_ref, *, pooling, bblk, seq):
    bs = bblk * seq
    scale = 1.0 / math.sqrt(HEAD_DIM)

    # ---- in-kernel embedding lookup (one-hot matmuls against VMEM tables) -----
    ids = ids_ref[...]                                               # (bs, 1) int32
    tts = tt_ref[...]                                                # (bs, 1) int32
    word_oh = (jax.lax.broadcasted_iota(jnp.int32, (bs, VOCAB), 1) == ids
               ).astype(jnp.bfloat16)
    type_oh = (jax.lax.broadcasted_iota(jnp.int32, (bs, TYPE_VOCAB), 1) == tts
               ).astype(jnp.bfloat16)
    emb = (jnp.dot(word_oh, word_emb_ref[...], preferred_element_type=jnp.float32)
           + jnp.dot(type_oh, type_emb_ref[...], preferred_element_type=jnp.float32))
    pos = pos_emb_ref[0:seq, :].astype(jnp.float32)                  # (seq, H)
    emb = emb + jnp.concatenate([pos] * bblk, axis=0)                # (bs, H)
    x = _layer_norm(emb, emb_ln_g_ref[...], emb_ln_b_ref[...])       # (bs, H) f32

    # ---- additive attention mask; broadcast hoisted out of layer/head loops ---
    mask_f = mask_ref[...].astype(jnp.float32)                       # (bblk, seq)
    biases = [jnp.broadcast_to((1.0 - mask_f[b:b + 1, :]) * MASK_NEG, (seq, seq))
              for b in range(bblk)]

    first_layer_out = x
    for l in range(N_LAYERS):            # static unroll; weights resident in VMEM
        # --- self attention: fused QKV projection on the whole (bs, H) slab ----
        qkv = jnp.dot(x.astype(jnp.bfloat16), wqkv_ref[l],
                      preferred_element_type=jnp.float32) + bqkv_ref[l]
        q = qkv[:, 0:HIDDEN] * scale      # scale applied once per layer
        k = qkv[:, HIDDEN:2 * HIDDEN]
        v = qkv[:, 2 * HIDDEN:3 * HIDDEN]

        ctx_blocks = []
        for b in range(bblk):            # per-example softmax (short unrolled loop)
            rows = slice(b * seq, (b + 1) * seq)
            head_ctx = []
            for h in range(N_HEADS):
                cols = slice(h * HEAD_DIM, (h + 1) * HEAD_DIM)
                qh, kh, vh = q[rows, cols], k[rows, cols], v[rows, cols]
                s = jax.lax.dot_general(qh, kh, (((1,), (1,)), ((), ())),
                                        preferred_element_type=jnp.float32)  # (S,S)
                s = s + biases[b]
                s = s - jnp.max(s, axis=-1, keepdims=True)
                p = jnp.exp(s)
                p = p / jnp.sum(p, axis=-1, keepdims=True)            # exact softmax
                head_ctx.append(jnp.dot(p, vh, preferred_element_type=jnp.float32))
            ctx_blocks.append(jnp.concatenate(head_ctx, axis=-1))     # (seq, H)
        ctx = jnp.concatenate(ctx_blocks, axis=0)                     # (bs, H)

        # single concat-heads output projection for the whole slab
        attn_out = jnp.dot(ctx.astype(jnp.bfloat16), wo_ref[l],
                           preferred_element_type=jnp.float32) + bo_ref[l]
        x = _layer_norm(attn_out + x, ln1_g_ref[l], ln1_b_ref[l])

        # --- feed forward -------------------------------------------------------
        ff = jnp.dot(x.astype(jnp.bfloat16), w1_ref[l],
                     preferred_element_type=jnp.float32) + b1_ref[l]
        # TODO(synk): HF BERT uses exact erf-GELU; tanh approximation used here.
        ff = jax.nn.gelu(ff, approximate=True)
        ff = jnp.dot(ff.astype(jnp.bfloat16), w2_ref[l],
                     preferred_element_type=jnp.float32) + b2_ref[l]
        x = _layer_norm(ff + x, ln2_g_ref[l], ln2_b_ref[l])

        if l == 0:
            first_layer_out = x          # hidden_states[1]; used by first-last-avg

    # ---- pooling epilogue (specialized at trace time), one (bblk, H) store -----
    def rows_of(t, b):
        return t[b * seq:(b + 1) * seq, :]

    if pooling == "cls":
        out = jnp.concatenate([rows_of(x, b)[0:1, :] for b in range(bblk)], axis=0)
    elif pooling == "pooler":
        cls = jnp.concatenate([rows_of(x, b)[0:1, :] for b in range(bblk)], axis=0)
        out = jnp.tanh(jnp.dot(cls.astype(jnp.bfloat16), pooler_w_ref[...],
                               preferred_element_type=jnp.float32) + pooler_b_ref[...])
    elif pooling == "last-avg":
        out = jnp.concatenate([jnp.mean(rows_of(x, b), axis=0, keepdims=True)
                               for b in range(bblk)], axis=0)
    else:  # "first-last-avg"
        out = jnp.concatenate(
            [0.5 * (jnp.mean(rows_of(first_layer_out, b), axis=0, keepdims=True)
                    + jnp.mean(rows_of(x, b), axis=0, keepdims=True))
             for b in range(bblk)], axis=0)
    o_ref[...] = out


def _pick_block_batch(batch):
    """Largest divisor of `batch` that is <= 8 (examples per grid step)."""
    for cand in (8, 4, 2, 1):
        if batch % cand == 0:
            return cand
    return 1


# ------------------------------ model forward --------------------------------
@functools.partial(jax.jit, static_argnums=(4,))
def esimcse_forward(params, input_ids, attention_mask, token_type_ids, pooling):
    if pooling not in POOLINGS:
        raise ValueError(pooling)
    B, S = input_ids.shape
    bblk = _pick_block_batch(B)
    grid = (B // bblk,)
    L = N_LAYERS

    # Only trivially-cheap reshapes / casts remain in the wrapper.
    ids = input_ids.reshape(B * S, 1).astype(jnp.int32)
    tts = token_type_ids.reshape(B * S, 1).astype(jnp.int32)
    mask = attention_mask.astype(jnp.int32)

    def rep(shape):
        zeros = (0,) * len(shape)
        return pl.BlockSpec(shape, lambda g, _z=zeros: _z)   # grid-invariant block

    out = pl.pallas_call(
        functools.partial(_encoder_kernel, pooling=pooling, bblk=bblk, seq=S),
        out_shape=jax.ShapeDtypeStruct((B, HIDDEN), jnp.float32),
        grid=grid,
        in_specs=[
            pl.BlockSpec((bblk * S, 1), lambda g: (g, 0)),    # input_ids (flattened)
            pl.BlockSpec((bblk * S, 1), lambda g: (g, 0)),    # token_type_ids
            pl.BlockSpec((bblk, S), lambda g: (g, 0)),        # attention_mask
            rep((VOCAB, HIDDEN)),                             # word_emb (bf16)
            rep((MAX_POS, HIDDEN)),                           # pos_emb (bf16)
            rep((TYPE_VOCAB, HIDDEN)),                        # type_emb (bf16)
            rep((1, HIDDEN)),                                 # emb_ln_g
            rep((1, HIDDEN)),                                 # emb_ln_b
            rep((L, HIDDEN, 3 * HIDDEN)),                     # wqkv (fused Q|K|V, bf16)
            rep((L, 1, 3 * HIDDEN)),                          # bqkv
            rep((L, HIDDEN, HIDDEN)),                         # wo (bf16)
            rep((L, 1, HIDDEN)),                              # bo
            rep((L, 1, HIDDEN)),                              # ln1_g
            rep((L, 1, HIDDEN)),                              # ln1_b
            rep((L, HIDDEN, INTERMEDIATE)),                   # w1 (bf16)
            rep((L, 1, INTERMEDIATE)),                        # b1
            rep((L, INTERMEDIATE, HIDDEN)),                   # w2 (bf16)
            rep((L, 1, HIDDEN)),                              # b2
            rep((L, 1, HIDDEN)),                              # ln2_g
            rep((L, 1, HIDDEN)),                              # ln2_b
            rep((HIDDEN, HIDDEN)),                            # pooler_w (bf16)
            rep((1, HIDDEN)),                                 # pooler_b
        ],
        out_specs=pl.BlockSpec((bblk, HIDDEN), lambda g: (g, 0)),
        compiler_params=pltpu.CompilerParams(dimension_semantics=("parallel",)),
    )(ids, tts, mask,
      params["word_emb"], params["pos_emb"], params["type_emb"],
      params["emb_ln_g"], params["emb_ln_b"],
      params["wqkv"], params["bqkv"],
      params["wo"], params["bo"],
      params["ln1_g"], params["ln1_b"],
      params["w1"], params["b1"],
      params["w2"], params["b2"],
      params["ln2_g"], params["ln2_b"],
      params["pooler_w"], params["pooler_b"])
    return out


# ------------------------------ parameter init -------------------------------
def init_params(key):
    keys = iter(jax.random.split(key, 64))

    def normal(shape, std=0.02, dtype=jnp.bfloat16):
        # matmul weights / tables stored bf16; accumulation is f32 inside the kernel
        return (std * jax.random.normal(next(keys), shape)).astype(dtype)

    L = N_LAYERS
    return {
        "word_emb": normal((VOCAB, HIDDEN)),
        "pos_emb": normal((MAX_POS, HIDDEN)),
        "type_emb": normal((TYPE_VOCAB, HIDDEN)),
        "emb_ln_g": jnp.ones((1, HIDDEN), jnp.float32),
        "emb_ln_b": jnp.zeros((1, HIDDEN), jnp.float32),
        "wqkv": normal((L, HIDDEN, 3 * HIDDEN)),
        "bqkv": jnp.zeros((L, 1, 3 * HIDDEN), jnp.float32),
        "wo": normal((L, HIDDEN, HIDDEN)),
        "bo": jnp.zeros((L, 1, HIDDEN), jnp.float32),
        "ln1_g": jnp.ones((L, 1, HIDDEN), jnp.float32),
        "ln1_b": jnp.zeros((L, 1, HIDDEN), jnp.float32),
        "w1": normal((L, HIDDEN, INTERMEDIATE)),
        "b1": jnp.zeros((L, 1, INTERMEDIATE), jnp.float32),
        "w2": normal((L, INTERMEDIATE, HIDDEN)),
        "b2": jnp.zeros((L, 1, HIDDEN), jnp.float32),
        "ln2_g": jnp.ones((L, 1, HIDDEN), jnp.float32),
        "ln2_b": jnp.zeros((L, 1, HIDDEN), jnp.float32),
        "pooler_w": normal((HIDDEN, HIDDEN)),
        "pooler_b": jnp.zeros((1, HIDDEN), jnp.float32),
    }


# ----------------------------------- main -------------------------------------
if __name__ == "__main__":
    B, S = 2, 8
    key = jax.random.PRNGKey(0)
    pkey, ikey, tkey = jax.random.split(key, 3)

    params = init_params(pkey)
    input_ids = jax.random.randint(ikey, (B, S), 0, VOCAB, dtype=jnp.int32)
    token_type_ids = jax.random.randint(tkey, (B, S), 0, TYPE_VOCAB, dtype=jnp.int32)
    attention_mask = jnp.ones((B, S), dtype=jnp.int32).at[1, 6:].set(0)  # ragged mask

    for pooling in POOLINGS:
        o = esimcse_forward(params, input_ids, attention_mask, token_type_ids, pooling)
        jax.block_until_ready(o)
        assert o.shape == (B, HIDDEN), (pooling, o.shape)
        assert bool(jnp.all(jnp.isfinite(o)))

    print("KERNEL_OK")
</pallas_src>

<mosaic_0001>
module attributes {stable_mosaic.version = 11 : i64} {
  func.func @_encoder_kernel(%arg0: i32, %arg1: memref<16x1xi32, #tpu.memory_space<vmem>>, %arg2: memref<16x1xi32, #tpu.memory_space<vmem>>, %arg3: memref<2x8xi32, #tpu.memory_space<vmem>>, %arg4: memref<50x32xbf16, #tpu.memory_space<vmem>>, %arg5: memref<16x32xbf16, #tpu.memory_space<vmem>>, %arg6: memref<2x32xbf16, #tpu.memory_space<vmem>>, %arg7: memref<1x32xf32, #tpu.memory_space<vmem>>, %arg8: memref<1x32xf32, #tpu.memory_space<vmem>>, %arg9: memref<2x32x96xbf16, #tpu.memory_space<vmem>>, %arg10: memref<2x1x96xf32, #tpu.memory_space<vmem>>, %arg11: memref<2x32x32xbf16, #tpu.memory_space<vmem>>, %arg12: memref<2x1x32xf32, #tpu.memory_space<vmem>>, %arg13: memref<2x1x32xf32, #tpu.memory_space<vmem>>, %arg14: memref<2x1x32xf32, #tpu.memory_space<vmem>>, %arg15: memref<2x32x64xbf16, #tpu.memory_space<vmem>>, %arg16: memref<2x1x64xf32, #tpu.memory_space<vmem>>, %arg17: memref<2x64x32xbf16, #tpu.memory_space<vmem>>, %arg18: memref<2x1x32xf32, #tpu.memory_space<vmem>>, %arg19: memref<2x1x32xf32, #tpu.memory_space<vmem>>, %arg20: memref<2x1x32xf32, #tpu.memory_space<vmem>>, %arg21: memref<32x32xbf16, #tpu.memory_space<vmem>>, %arg22: memref<1x32xf32, #tpu.memory_space<vmem>>, %arg23: memref<2x32xf32, #tpu.memory_space<vmem>>) attributes {dimension_semantics = [#tpu.dimension_semantics<parallel>], iteration_bounds = array<i64: 1>, scalar_prefetch = 0 : i64, scratch_operands = 0 : i64, tpu.core_type = #tpu.core_type<tc>, window_params = [{transform_indices = @transform_0, window_bounds = array<i64: 16, 1>}, {transform_indices = @transform_1, window_bounds = array<i64: 16, 1>}, {transform_indices = @transform_2, window_bounds = array<i64: 2, 8>}, {pipeline_mode = #tpu.pipeline_mode<synchronous>, transform_indices = @transform_3, window_bounds = array<i64: 50, 32>}, {pipeline_mode = #tpu.pipeline_mode<synchronous>, transform_indices = @transform_4, window_bounds = array<i64: 16, 32>}, {pipeline_mode = #tpu.pipeline_mode<synchronous>, transform_indices = @transform_5, window_bounds = array<i64: 2, 32>}, {pipeline_mode = #tpu.pipeline_mode<synchronous>, transform_indices = @transform_6, window_bounds = array<i64: 1, 32>}, {pipeline_mode = #tpu.pipeline_mode<synchronous>, transform_indices = @transform_7, window_bounds = array<i64: 1, 32>}, {pipeline_mode = #tpu.pipeline_mode<synchronous>, transform_indices = @transform_8, window_bounds = array<i64: 2, 32, 96>}, {pipeline_mode = #tpu.pipeline_mode<synchronous>, transform_indices = @transform_9, window_bounds = array<i64: 2, 1, 96>}, {pipeline_mode = #tpu.pipeline_mode<synchronous>, transform_indices = @transform_10, window_bounds = array<i64: 2, 32, 32>}, {pipeline_mode = #tpu.pipeline_mode<synchronous>, transform_indices = @transform_11, window_bounds = array<i64: 2, 1, 32>}, {pipeline_mode = #tpu.pipeline_mode<synchronous>, transform_indices = @transform_12, window_bounds = array<i64: 2, 1, 32>}, {pipeline_mode = #tpu.pipeline_mode<synchronous>, transform_indices = @transform_13, window_bounds = array<i64: 2, 1, 32>}, {pipeline_mode = #tpu.pipeline_mode<synchronous>, transform_indices = @transform_14, window_bounds = array<i64: 2, 32, 64>}, {pipeline_mode = #tpu.pipeline_mode<synchronous>, transform_indices = @transform_15, window_bounds = array<i64: 2, 1, 64>}, {pipeline_mode = #tpu.pipeline_mode<synchronous>, transform_indices = @transform_16, window_bounds = array<i64: 2, 64, 32>}, {pipeline_mode = #tpu.pipeline_mode<synchronous>, transform_indices = @transform_17, window_bounds = array<i64: 2, 1, 32>}, {pipeline_mode = #tpu.pipeline_mode<synchronous>, transform_indices = @transform_18, window_bounds = array<i64: 2, 1, 32>}, {pipeline_mode = #tpu.pipeline_mode<synchronous>, transform_indices = @transform_19, window_bounds = array<i64: 2, 1, 32>}, {pipeline_mode = #tpu.pipeline_mode<synchronous>, transform_indices = @transform_20, window_bounds = array<i64: 32, 32>}, {pipeline_mode = #tpu.pipeline_mode<synchronous>, transform_indices = @transform_21, window_bounds = array<i64: 1, 32>}, {transform_indices = @transform_22, window_bounds = array<i64: 2, 32>}]} {
    %c0 = arith.constant 0 : index
    %c0_0 = arith.constant 0 : index
    %0 = vector.load %arg1[%c0, %c0_0] : memref<16x1xi32, #tpu.memory_space<vmem>>, vector<16x1xi32>
    %c0_1 = arith.constant 0 : index
    %c0_2 = arith.constant 0 : index
    %1 = vector.load %arg2[%c0_1, %c0_2] : memref<16x1xi32, #tpu.memory_space<vmem>>, vector<16x1xi32>
    %2 = tpu.iota {dimensions = array<i32: 1>} : vector<16x50xi32>
    %3 = vector.broadcast %0 : vector<16x1xi32> to vector<16x50xi32>
    %4 = arith.cmpi eq, %2, %3 : vector<16x50xi32>
    %5 = arith.extui %4 : vector<16x50xi1> to vector<16x50xi32>
    %6 = arith.sitofp %5 : vector<16x50xi32> to vector<16x50xf32>
    %7 = arith.truncf %6 : vector<16x50xf32> to vector<16x50xbf16>
    %8 = tpu.iota {dimensions = array<i32: 1>} : vector<16x2xi32>
    %9 = vector.broadcast %1 : vector<16x1xi32> to vector<16x2xi32>
    %10 = arith.cmpi eq, %8, %9 : vector<16x2xi32>
    %11 = arith.extui %10 : vector<16x2xi1> to vector<16x2xi32>
    %12 = arith.sitofp %11 : vector<16x2xi32> to vector<16x2xf32>
    %13 = arith.truncf %12 : vector<16x2xf32> to vector<16x2xbf16>
    %c0_3 = arith.constant 0 : index
    %c0_4 = arith.constant 0 : index
    %14 = vector.load %arg4[%c0_3, %c0_4] : memref<50x32xbf16, #tpu.memory_space<vmem>>, vector<50x32xbf16>
    %cst = arith.constant dense<0.000000e+00> : vector<16x32xf32>
    %15 = tpu.matmul %7, %14, %cst {dimension_numbers = #tpu.dot_dimension_numbers<[1], [0], [0], [1], [0, 0, 1, 1], [], []>} : vector<16x50xbf16>, vector<50x32xbf16>, vector<16x32xf32> -> vector<16x32xf32>
    %c0_5 = arith.constant 0 : index
    %c0_6 = arith.constant 0 : index
    %16 = vector.load %arg6[%c0_5, %c0_6] : memref<2x32xbf16, #tpu.memory_space<vmem>>, vector<2x32xbf16>
    %cst_7 = arith.constant dense<0.000000e+00> : vector<16x32xf32>
    %17 = tpu.matmul %13, %16, %cst_7 {dimension_numbers = #tpu.dot_dimension_numbers<[1], [0], [0], [1], [0, 0, 1, 1], [], []>} : vector<16x2xbf16>, vector<2x32xbf16>, vector<16x32xf32> -> vector<16x32xf32>
    %18 = arith.addf %15, %17 : vector<16x32xf32>
    %c0_8 = arith.constant 0 : index
    %c0_9 = arith.constant 0 : index
    %19 = vector.load %arg5[%c0_8, %c0_9] : memref<16x32xbf16, #tpu.memory_space<vmem>>, vector<8x32xbf16>
    %20 = arith.extf %19 : vector<8x32xbf16> to vector<8x32xf32>
    %21 = tpu.concatenate %20, %20 in 0 : vector<8x32xf32>, vector<8x32xf32> -> vector<16x32xf32>
    %22 = arith.addf %18, %21 : vector<16x32xf32>
    %c0_10 = arith.constant 0 : index
    %c0_11 = arith.constant 0 : index
    %23 = vector.load %arg7[%c0_10, %c0_11] : memref<1x32xf32, #tpu.memory_space<vmem>>, vector<1x32xf32>
    %c0_12 = arith.constant 0 : index
    %c0_13 = arith.constant 0 : index
    %24 = vector.load %arg8[%c0_12, %c0_13] : memref<1x32xf32, #tpu.memory_space<vmem>>, vector<1x32xf32>
    %cst_14 = arith.constant dense<0.000000e+00> : vector<16xf32>
    %25 = vector.multi_reduction <add>, %22, %cst_14 [1] : vector<16x32xf32> to vector<16xf32>
    %26 = vector.shape_cast %25 : vector<16xf32> to vector<16x1xf32>
    %cst_15 = arith.constant 3.200000e+01 : f32
    %27 = vector.broadcast %cst_15 : f32 to vector<16x1xf32>
    %28 = arith.divf %26, %27 : vector<16x1xf32>
    %29 = vector.broadcast %28 : vector<16x1xf32> to vector<16x32xf32>
    %30 = arith.subf %22, %29 : vector<16x32xf32>
    %31 = arith.mulf %30, %30 : vector<16x32xf32>
    %cst_16 = arith.constant dense<0.000000e+00> : vector<16xf32>
    %32 = vector.multi_reduction <add>, %31, %cst_16 [1] : vector<16x32xf32> to vector<16xf32>
    %33 = vector.shape_cast %32 : vector<16xf32> to vector<16x1xf32>
    %cst_17 = arith.constant 3.200000e+01 : f32
    %34 = vector.broadcast %cst_17 : f32 to vector<16x1xf32>
    %35 = arith.divf %33, %34 : vector<16x1xf32>
    %36 = vector.broadcast %28 : vector<16x1xf32> to vector<16x32xf32>
    %37 = arith.subf %22, %36 : vector<16x32xf32>
    %cst_18 = arith.constant 9.99999996E-13 : f32
    %38 = vector.broadcast %cst_18 : f32 to vector<16x1xf32>
    %39 = arith.addf %35, %38 : vector<16x1xf32>
    %40 = math.rsqrt %39 : vector<16x1xf32>
    %41 = vector.broadcast %40 : vector<16x1xf32> to vector<16x32xf32>
    %42 = arith.mulf %37, %41 : vector<16x32xf32>
    %43 = vector.broadcast %23 : vector<1x32xf32> to vector<16x32xf32>
    %44 = arith.mulf %42, %43 : vector<16x32xf32>
    %45 = vector.broadcast %24 : vector<1x32xf32> to vector<16x32xf32>
    %46 = arith.addf %44, %45 : vector<16x32xf32>
    %c0_19 = arith.constant 0 : index
    %c0_20 = arith.constant 0 : index
    %47 = vector.load %arg3[%c0_19, %c0_20] : memref<2x8xi32, #tpu.memory_space<vmem>>, vector<2x8xi32>
    %48 = arith.sitofp %47 : vector<2x8xi32> to vector<2x8xf32>
    %49 = vector.extract_strided_slice %48 {offsets = [0, 0], sizes = [1, 8], strides = [1, 1]} : vector<2x8xf32> to vector<1x8xf32>
    %cst_21 = arith.constant 1.000000e+00 : f32
    %50 = vector.broadcast %cst_21 : f32 to vector<1x8xf32>
    %51 = arith.subf %50, %49 : vector<1x8xf32>
    %cst_22 = arith.constant -1.000000e+04 : f32
    %52 = vector.broadcast %cst_22 : f32 to vector<1x8xf32>
    %53 = arith.mulf %51, %52 : vector<1x8xf32>
    %54 = vector.shape_cast %53 : vector<1x8xf32> to vector<1x8xf32>
    %55 = vector.broadcast %54 : vector<1x8xf32> to vector<8x8xf32>
    %56 = vector.extract_strided_slice %48 {offsets = [1, 0], sizes = [1, 8], strides = [1, 1]} : vector<2x8xf32> to vector<1x8xf32>
    %cst_23 = arith.constant 1.000000e+00 : f32
    %57 = vector.broadcast %cst_23 : f32 to vector<1x8xf32>
    %58 = arith.subf %57, %56 : vector<1x8xf32>
    %cst_24 = arith.constant -1.000000e+04 : f32
    %59 = vector.broadcast %cst_24 : f32 to vector<1x8xf32>
    %60 = arith.mulf %58, %59 : vector<1x8xf32>
    %61 = vector.shape_cast %60 : vector<1x8xf32> to vector<1x8xf32>
    %62 = vector.broadcast %61 : vector<1x8xf32> to vector<8x8xf32>
    %63 = arith.truncf %46 : vector<16x32xf32> to vector<16x32xbf16>
    %c0_25 = arith.constant 0 : index
    %c0_26 = arith.constant 0 : index
    %c0_27 = arith.constant 0 : index
    %64 = vector.load %arg9[%c0_25, %c0_26, %c0_27] : memref<2x32x96xbf16, #tpu.memory_space<vmem>>, vector<1x32x96xbf16>
    %65 = vector.shape_cast %64 : vector<1x32x96xbf16> to vector<32x96xbf16>
    %cst_28 = arith.constant dense<0.000000e+00> : vector<16x96xf32>
    %66 = tpu.matmul %63, %65, %cst_28 {dimension_numbers = #tpu.dot_dimension_numbers<[1], [0], [0], [1], [0, 0, 1, 1], [], []>} : vector<16x32xbf16>, vector<32x96xbf16>, vector<16x96xf32> -> vector<16x96xf32>
    %c0_29 = arith.constant 0 : index
    %c0_30 = arith.constant 0 : index
    %c0_31 = arith.constant 0 : index
    %67 = vector.load %arg10[%c0_29, %c0_30, %c0_31] : memref<2x1x96xf32, #tpu.memory_space<vmem>>, vector<1x1x96xf32>
    %68 = vector.shape_cast %67 : vector<1x1x96xf32> to vector<1x96xf32>
    %69 = vector.broadcast %68 : vector<1x96xf32> to vector<16x96xf32>
    %70 = arith.addf %66, %69 : vector<16x96xf32>
    %71 = vector.extract_strided_slice %70 {offsets = [0, 0], sizes = [16, 32], strides = [1, 1]} : vector<16x96xf32> to vector<16x32xf32>
    %cst_32 = arith.constant 2.500000e-01 : f32
    %72 = vector.broadcast %cst_32 : f32 to vector<16x32xf32>
    %73 = arith.mulf %71, %72 : vector<16x32xf32>
    %74 = vector.extract_strided_slice %70 {offsets = [0, 32], sizes = [16, 32], strides = [1, 1]} : vector<16x96xf32> to vector<16x32xf32>
    %75 = vector.extract_strided_slice %70 {offsets = [0, 64], sizes = [16, 32], strides = [1, 1]} : vector<16x96xf32> to vector<16x32xf32>
    %76 = vector.extract_strided_slice %73 {offsets = [0, 0], sizes = [8, 16], strides = [1, 1]} : vector<16x32xf32> to vector<8x16xf32>
    %77 = vector.extract_strided_slice %74 {offsets = [0, 0], sizes = [8, 16], strides = [1, 1]} : vector<16x32xf32> to vector<8x16xf32>
    %78 = vector.extract_strided_slice %75 {offsets = [0, 0], sizes = [8, 16], strides = [1, 1]} : vector<16x32xf32> to vector<8x16xf32>
    %cst_33 = arith.constant dense<0.000000e+00> : vector<8x8xf32>
    %79 = tpu.matmul %76, %77, %cst_33 {dimension_numbers = #tpu.dot_dimension_numbers<[1], [1], [0], [0], [0, 0, 1, 0], [], []>} : vector<8x16xf32>, vector<8x16xf32>, vector<8x8xf32> -> vector<8x8xf32>
    %80 = arith.addf %79, %55 : vector<8x8xf32>
    %cst_34 = arith.constant dense<0xFF800000> : vector<8xf32>
    %81 = vector.multi_reduction <maximumf>, %80, %cst_34 [1] : vector<8x8xf32> to vector<8xf32>
    %82 = vector.shape_cast %81 : vector<8xf32> to vector<8x1xf32>
    %83 = vector.broadcast %82 : vector<8x1xf32> to vector<8x8xf32>
    %84 = arith.subf %80, %83 : vector<8x8xf32>
    %85 = math.exp %84 : vector<8x8xf32>
    %cst_35 = arith.constant dense<0.000000e+00> : vector<8xf32>
    %86 = vector.multi_reduction <add>, %85, %cst_35 [1] : vector<8x8xf32> to vector<8xf32>
    %87 = vector.shape_cast %86 : vector<8xf32> to vector<8x1xf32>
    %88 = vector.broadcast %87 : vector<8x1xf32> to vector<8x8xf32>
    %89 = arith.divf %85, %88 : vector<8x8xf32>
    %cst_36 = arith.constant dense<0.000000e+00> : vector<8x16xf32>
    %90 = tpu.matmul %89, %78, %cst_36 {dimension_numbers = #tpu.dot_dimension_numbers<[1], [0], [0], [1], [0, 0, 1, 1], [], []>} : vector<8x8xf32>, vector<8x16xf32>, vector<8x16xf32> -> vector<8x16xf32>
    %91 = vector.extract_strided_slice %73 {offsets = [0, 16], sizes = [8, 16], strides = [1, 1]} : vector<16x32xf32> to vector<8x16xf32>
    %92 = vector.extract_strided_slice %74 {offsets = [0, 16], sizes = [8, 16], strides = [1, 1]} : vector<16x32xf32> to vector<8x16xf32>
    %93 = vector.extract_strided_slice %75 {offsets = [0, 16], sizes = [8, 16], strides = [1, 1]} : vector<16x32xf32> to vector<8x16xf32>
    %cst_37 = arith.constant dense<0.000000e+00> : vector<8x8xf32>
    %94 = tpu.matmul %91, %92, %cst_37 {dimension_numbers = #tpu.dot_dimension_numbers<[1], [1], [0], [0], [0, 0, 1, 0], [], []>} : vector<8x16xf32>, vector<8x16xf32>, vector<8x8xf32> -> vector<8x8xf32>
    %95 = arith.addf %94, %55 : vector<8x8xf32>
    %cst_38 = arith.constant dense<0xFF800000> : vector<8xf32>
    %96 = vector.multi_reduction <maximumf>, %95, %cst_38 [1] : vector<8x8xf32> to vector<8xf32>
    %97 = vector.shape_cast %96 : vector<8xf32> to vector<8x1xf32>
    %98 = vector.broadcast %97 : vector<8x1xf32> to vector<8x8xf32>
    %99 = arith.subf %95, %98 : vector<8x8xf32>
    %100 = math.exp %99 : vector<8x8xf32>
    %cst_39 = arith.constant dense<0.000000e+00> : vector<8xf32>
    %101 = vector.multi_reduction <add>, %100, %cst_39 [1] : vector<8x8xf32> to vector<8xf32>
    %102 = vector.shape_cast %101 : vector<8xf32> to vector<8x1xf32>
    %103 = vector.broadcast %102 : vector<8x1xf32> to vector<8x8xf32>
    %104 = arith.divf %100, %103 : vector<8x8xf32>
    %cst_40 = arith.constant dense<0.000000e+00> : vector<8x16xf32>
    %105 = tpu.matmul %104, %93, %cst_40 {dimension_numbers = #tpu.dot_dimension_numbers<[1], [0], [0], [1], [0, 0, 1, 1], [], []>} : vector<8x8xf32>, vector<8x16xf32>, vector<8x16xf32> -> vector<8x16xf32>
    %106 = tpu.concatenate %90, %105 in 1 : vector<8x16xf32>, vector<8x16xf32> -> vector<8x32xf32>
    %107 = vector.extract_strided_slice %73 {offsets = [8, 0], sizes = [8, 16], strides = [1, 1]} : vector<16x32xf32> to vector<8x16xf32>
    %108 = vector.extract_strided_slice %74 {offsets = [8, 0], sizes = [8, 16], strides = [1, 1]} : vector<16x32xf32> to vector<8x16xf32>
    %109 = vector.extract_strided_slice %75 {offsets = [8, 0], sizes = [8, 16], strides = [1, 1]} : vector<16x32xf32> to vector<8x16xf32>
    %cst_41 = arith.constant dense<0.000000e+00> : vector<8x8xf32>
    %110 = tpu.matmul %107, %108, %cst_41 {dimension_numbers = #tpu.dot_dimension_numbers<[1], [1], [0], [0], [0, 0, 1, 0], [], []>} : vector<8x16xf32>, vector<8x16xf32>, vector<8x8xf32> -> vector<8x8xf32>
    %111 = arith.addf %110, %62 : vector<8x8xf32>
    %cst_42 = arith.constant dense<0xFF800000> : vector<8xf32>
    %112 = vector.multi_reduction <maximumf>, %111, %cst_42 [1] : vector<8x8xf32> to vector<8xf32>
    %113 = vector.shape_cast %112 : vector<8xf32> to vector<8x1xf32>
    %114 = vector.broadcast %113 : vector<8x1xf32> to vector<8x8xf32>
    %115 = arith.subf %111, %114 : vector<8x8xf32>
    %116 = math.exp %115 : vector<8x8xf32>
    %cst_43 = arith.constant dense<0.000000e+00> : vector<8xf32>
    %117 = vector.multi_reduction <add>, %116, %cst_43 [1] : vector<8x8xf32> to vector<8xf32>
    %118 = vector.shape_cast %117 : vector<8xf32> to vector<8x1xf32>
    %119 = vector.broadcast %118 : vector<8x1xf32> to vector<8x8xf32>
    %120 = arith.divf %116, %119 : vector<8x8xf32>
    %cst_44 = arith.constant dense<0.000000e+00> : vector<8x16xf32>
    %121 = tpu.matmul %120, %109, %cst_44 {dimension_numbers = #tpu.dot_dimension_numbers<[1], [0], [0], [1], [0, 0, 1, 1], [], []>} : vector<8x8xf32>, vector<8x16xf32>, vector<8x16xf32> -> vector<8x16xf32>
    %122 = vector.extract_strided_slice %73 {offsets = [8, 16], sizes = [8, 16], strides = [1, 1]} : vector<16x32xf32> to vector<8x16xf32>
    %123 = vector.extract_strided_slice %74 {offsets = [8, 16], sizes = [8, 16], strides = [1, 1]} : vector<16x32xf32> to vector<8x16xf32>
    %124 = vector.extract_strided_slice %75 {offsets = [8, 16], sizes = [8, 16], strides = [1, 1]} : vector<16x32xf32> to vector<8x16xf32>
    %cst_45 = arith.constant dense<0.000000e+00> : vector<8x8xf32>
    %125 = tpu.matmul %122, %123, %cst_45 {dimension_numbers = #tpu.dot_dimension_numbers<[1], [1], [0], [0], [0, 0, 1, 0], [], []>} : vector<8x16xf32>, vector<8x16xf32>, vector<8x8xf32> -> vector<8x8xf32>
    %126 = arith.addf %125, %62 : vector<8x8xf32>
    %cst_46 = arith.constant dense<0xFF800000> : vector<8xf32>
    %127 = vector.multi_reduction <maximumf>, %126, %cst_46 [1] : vector<8x8xf32> to vector<8xf32>
    %128 = vector.shape_cast %127 : vector<8xf32> to vector<8x1xf32>
    %129 = vector.broadcast %128 : vector<8x1xf32> to vector<8x8xf32>
    %130 = arith.subf %126, %129 : vector<8x8xf32>
    %131 = math.exp %130 : vector<8x8xf32>
    %cst_47 = arith.constant dense<0.000000e+00> : vector<8xf32>
    %132 = vector.multi_reduction <add>, %131, %cst_47 [1] : vector<8x8xf32> to vector<8xf32>
    %133 = vector.shape_cast %132 : vector<8xf32> to vector<8x1xf32>
    %134 = vector.broadcast %133 : vector<8x1xf32> to vector<8x8xf32>
    %135 = arith.divf %131, %134 : vector<8x8xf32>
    %cst_48 = arith.constant dense<0.000000e+00> : vector<8x16xf32>
    %136 = tpu.matmul %135, %124, %cst_48 {dimension_numbers = #tpu.dot_dimension_numbers<[1], [0], [0], [1], [0, 0, 1, 1], [], []>} : vector<8x8xf32>, vector<8x16xf32>, vector<8x16xf32> -> vector<8x16xf32>
    %137 = tpu.concatenate %121, %136 in 1 : vector<8x16xf32>, vector<8x16xf32> -> vector<8x32xf32>
    %138 = tpu.concatenate %106, %137 in 0 : vector<8x32xf32>, vector<8x32xf32> -> vector<16x32xf32>
    %139 = arith.truncf %138 : vector<16x32xf32> to vector<16x32xbf16>
    %c0_49 = arith.constant 0 : index
    %c0_50 = arith.constant 0 : index
    %c0_51 = arith.constant 0 : index
    %140 = vector.load %arg11[%c0_49, %c0_50, %c0_51] : memref<2x32x32xbf16, #tpu.memory_space<vmem>>, vector<1x32x32xbf16>
    %141 = vector.shape_cast %140 : vector<1x32x32xbf16> to vector<32x32xbf16>
    %cst_52 = arith.constant dense<0.000000e+00> : vector<16x32xf32>
    %142 = tpu.matmul %139, %141, %cst_52 {dimension_numbers = #tpu.dot_dimension_numbers<[1], [0], [0], [1], [0, 0, 1, 1], [], []>} : vector<16x32xbf16>, vector<32x32xbf16>, vector<16x32xf32> -> vector<16x32xf32>
    %c0_53 = arith.constant 0 : index
    %c0_54 = arith.constant 0 : index
    %c0_55 = arith.constant 0 : index
    %143 = vector.load %arg12[%c0_53, %c0_54, %c0_55] : memref<2x1x32xf32, #tpu.memory_space<vmem>>, vector<1x1x32xf32>
    %144 = vector.shape_cast %143 : vector<1x1x32xf32> to vector<1x32xf32>
    %145 = vector.broadcast %144 : vector<1x32xf32> to vector<16x32xf32>
    %146 = arith.addf %142, %145 : vector<16x32xf32>
    %147 = arith.addf %146, %46 : vector<16x32xf32>
    %c0_56 = arith.constant 0 : index
    %c0_57 = arith.constant 0 : index
    %c0_58 = arith.constant 0 : index
    %148 = vector.load %arg13[%c0_56, %c0_57, %c0_58] : memref<2x1x32xf32, #tpu.memory_space<vmem>>, vector<1x1x32xf32>
    %149 = vector.shape_cast %148 : vector<1x1x32xf32> to vector<1x32xf32>
    %c0_59 = arith.constant 0 : index
    %c0_60 = arith.constant 0 : index
    %c0_61 = arith.constant 0 : index
    %150 = vector.load %arg14[%c0_59, %c0_60, %c0_61] : memref<2x1x32xf32, #tpu.memory_space<vmem>>, vector<1x1x32xf32>
    %151 = vector.shape_cast %150 : vector<1x1x32xf32> to vector<1x32xf32>
    %cst_62 = arith.constant dense<0.000000e+00> : vector<16xf32>
    %152 = vector.multi_reduction <add>, %147, %cst_62 [1] : vector<16x32xf32> to vector<16xf32>
    %153 = vector.shape_cast %152 : vector<16xf32> to vector<16x1xf32>
    %cst_63 = arith.constant 3.200000e+01 : f32
    %154 = vector.broadcast %cst_63 : f32 to vector<16x1xf32>
    %155 = arith.divf %153, %154 : vector<16x1xf32>
    %156 = vector.broadcast %155 : vector<16x1xf32> to vector<16x32xf32>
    %157 = arith.subf %147, %156 : vector<16x32xf32>
    %158 = arith.mulf %157, %157 : vector<16x32xf32>
    %cst_64 = arith.constant dense<0.000000e+00> : vector<16xf32>
    %159 = vector.multi_reduction <add>, %158, %cst_64 [1] : vector<16x32xf32> to vector<16xf32>
    %160 = vector.shape_cast %159 : vector<16xf32> to vector<16x1xf32>
    %cst_65 = arith.constant 3.200000e+01 : f32
    %161 = vector.broadcast %cst_65 : f32 to vector<16x1xf32>
    %162 = arith.divf %160, %161 : vector<16x1xf32>
    %163 = vector.broadcast %155 : vector<16x1xf32> to vector<16x32xf32>
    %164 = arith.subf %147, %163 : vector<16x32xf32>
    %cst_66 = arith.constant 9.99999996E-13 : f32
    %165 = vector.broadcast %cst_66 : f32 to vector<16x1xf32>
    %166 = arith.addf %162, %165 : vector<16x1xf32>
    %167 = math.rsqrt %166 : vector<16x1xf32>
    %168 = vector.broadcast %167 : vector<16x1xf32> to vector<16x32xf32>
    %169 = arith.mulf %164, %168 : vector<16x32xf32>
    %170 = vector.broadcast %149 : vector<1x32xf32> to vector<16x32xf32>
    %171 = arith.mulf %169, %170 : vector<16x32xf32>
    %172 = vector.broadcast %151 : vector<1x32xf32> to vector<16x32xf32>
    %173 = arith.addf %171, %172 : vector<16x32xf32>
    %174 = arith.truncf %173 : vector<16x32xf32> to vector<16x32xbf16>
    %c0_67 = arith.constant 0 : index
    %c0_68 = arith.constant 0 : index
    %c0_69 = arith.constant 0 : index
    %175 = vector.load %arg15[%c0_67, %c0_68, %c0_69] : memref<2x32x64xbf16, #tpu.memory_space<vmem>>, vector<1x32x64xbf16>
    %176 = vector.shape_cast %175 : vector<1x32x64xbf16> to vector<32x64xbf16>
    %cst_70 = arith.constant dense<0.000000e+00> : vector<16x64xf32>
    %177 = tpu.matmul %174, %176, %cst_70 {dimension_numbers = #tpu.dot_dimension_numbers<[1], [0], [0], [1], [0, 0, 1, 1], [], []>} : vector<16x32xbf16>, vector<32x64xbf16>, vector<16x64xf32> -> vector<16x64xf32>
    %c0_71 = arith.constant 0 : index
    %c0_72 = arith.constant 0 : index
    %c0_73 = arith.constant 0 : index
    %178 = vector.load %arg16[%c0_71, %c0_72, %c0_73] : memref<2x1x64xf32, #tpu.memory_space<vmem>>, vector<1x1x64xf32>
    %179 = vector.shape_cast %178 : vector<1x1x64xf32> to vector<1x64xf32>
    %180 = vector.broadcast %179 : vector<1x64xf32> to vector<16x64xf32>
    %181 = arith.addf %177, %180 : vector<16x64xf32>
    %182 = arith.mulf %181, %181 : vector<16x64xf32>
    %183 = arith.mulf %181, %182 : vector<16x64xf32>
    %cst_74 = arith.constant 4.471500e-02 : f32
    %184 = vector.broadcast %cst_74 : f32 to vector<16x64xf32>
    %185 = arith.mulf %184, %183 : vector<16x64xf32>
    %186 = arith.addf %181, %185 : vector<16x64xf32>
    %cst_75 = arith.constant 0.797884583 : f32
    %187 = vector.broadcast %cst_75 : f32 to vector<16x64xf32>
    %188 = arith.mulf %187, %186 : vector<16x64xf32>
    %189 = math.tanh %188 : vector<16x64xf32>
    %cst_76 = arith.constant 1.000000e+00 : f32
    %190 = vector.broadcast %cst_76 : f32 to vector<16x64xf32>
    %191 = arith.addf %190, %189 : vector<16x64xf32>
    %cst_77 = arith.constant 5.000000e-01 : f32
    %192 = vector.broadcast %cst_77 : f32 to vector<16x64xf32>
    %193 = arith.mulf %192, %191 : vector<16x64xf32>
    %194 = arith.mulf %181, %193 : vector<16x64xf32>
    %195 = arith.truncf %194 : vector<16x64xf32> to vector<16x64xbf16>
    %c0_78 = arith.constant 0 : index
    %c0_79 = arith.constant 0 : index
    %c0_80 = arith.constant 0 : index
    %196 = vector.load %arg17[%c0_78, %c0_79, %c0_80] : memref<2x64x32xbf16, #tpu.memory_space<vmem>>, vector<1x64x32xbf16>
    %197 = vector.shape_cast %196 : vector<1x64x32xbf16> to vector<64x32xbf16>
    %cst_81 = arith.constant dense<0.000000e+00> : vector<16x32xf32>
    %198 = tpu.matmul %195, %197, %cst_81 {dimension_numbers = #tpu.dot_dimension_numbers<[1], [0], [0], [1], [0, 0, 1, 1], [], []>} : vector<16x64xbf16>, vector<64x32xbf16>, vector<16x32xf32> -> vector<16x32xf32>
    %c0_82 = arith.constant 0 : index
    %c0_83 = arith.constant 0 : index
    %c0_84 = arith.constant 0 : index
    %199 = vector.load %arg18[%c0_82, %c0_83, %c0_84] : memref<2x1x32xf32, #tpu.memory_space<vmem>>, vector<1x1x32xf32>
    %200 = vector.shape_cast %199 : vector<1x1x32xf32> to vector<1x32xf32>
    %201 = vector.broadcast %200 : vector<1x32xf32> to vector<16x32xf32>
    %202 = arith.addf %198, %201 : vector<16x32xf32>
    %203 = arith.addf %202, %173 : vector<16x32xf32>
    %c0_85 = arith.constant 0 : index
    %c0_86 = arith.constant 0 : index
    %c0_87 = arith.constant 0 : index
    %204 = vector.load %arg19[%c0_85, %c0_86, %c0_87] : memref<2x1x32xf32, #tpu.memory_space<vmem>>, vector<1x1x32xf32>
    %205 = vector.shape_cast %204 : vector<1x1x32xf32> to vector<1x32xf32>
    %c0_88 = arith.constant 0 : index
    %c0_89 = arith.constant 0 : index
    %c0_90 = arith.constant 0 : index
    %206 = vector.load %arg20[%c0_88, %c0_89, %c0_90] : memref<2x1x32xf32, #tpu.memory_space<vmem>>, vector<1x1x32xf32>
    %207 = vector.shape_cast %206 : vector<1x1x32xf32> to vector<1x32xf32>
    %cst_91 = arith.constant dense<0.000000e+00> : vector<16xf32>
    %208 = vector.multi_reduction <add>, %203, %cst_91 [1] : vector<16x32xf32> to vector<16xf32>
    %209 = vector.shape_cast %208 : vector<16xf32> to vector<16x1xf32>
    %cst_92 = arith.constant 3.200000e+01 : f32
    %210 = vector.broadcast %cst_92 : f32 to vector<16x1xf32>
    %211 = arith.divf %209, %210 : vector<16x1xf32>
    %212 = vector.broadcast %211 : vector<16x1xf32> to vector<16x32xf32>
    %213 = arith.subf %203, %212 : vector<16x32xf32>
    %214 = arith.mulf %213, %213 : vector<16x32xf32>
    %cst_93 = arith.constant dense<0.000000e+00> : vector<16xf32>
    %215 = vector.multi_reduction <add>, %214, %cst_93 [1] : vector<16x32xf32> to vector<16xf32>
    %216 = vector.shape_cast %215 : vector<16xf32> to vector<16x1xf32>
    %cst_94 = arith.constant 3.200000e+01 : f32
    %217 = vector.broadcast %cst_94 : f32 to vector<16x1xf32>
    %218 = arith.divf %216, %217 : vector<16x1xf32>
    %219 = vector.broadcast %211 : vector<16x1xf32> to vector<16x32xf32>
    %220 = arith.subf %203, %219 : vector<16x32xf32>
    %cst_95 = arith.constant 9.99999996E-13 : f32
    %221 = vector.broadcast %cst_95 : f32 to vector<16x1xf32>
    %222 = arith.addf %218, %221 : vector<16x1xf32>
    %223 = math.rsqrt %222 : vector<16x1xf32>
    %224 = vector.broadcast %223 : vector<16x1xf32> to vector<16x32xf32>
    %225 = arith.mulf %220, %224 : vector<16x32xf32>
    %226 = vector.broadcast %205 : vector<1x32xf32> to vector<16x32xf32>
    %227 = arith.mulf %225, %226 : vector<16x32xf32>
    %228 = vector.broadcast %207 : vector<1x32xf32> to vector<16x32xf32>
    %229 = arith.addf %227, %228 : vector<16x32xf32>
    %230 = arith.truncf %229 : vector<16x32xf32> to vector<16x32xbf16>
    %c1 = arith.constant 1 : index
    %c0_96 = arith.constant 0 : index
    %c0_97 = arith.constant 0 : index
    %231 = vector.load %arg9[%c1, %c0_96, %c0_97] : memref<2x32x96xbf16, #tpu.memory_space<vmem>>, vector<1x32x96xbf16>
    %232 = vector.shape_cast %231 : vector<1x32x96xbf16> to vector<32x96xbf16>
    %cst_98 = arith.constant dense<0.000000e+00> : vector<16x96xf32>
    %233 = tpu.matmul %230, %232, %cst_98 {dimension_numbers = #tpu.dot_dimension_numbers<[1], [0], [0], [1], [0, 0, 1, 1], [], []>} : vector<16x32xbf16>, vector<32x96xbf16>, vector<16x96xf32> -> vector<16x96xf32>
    %c1_99 = arith.constant 1 : index
    %c0_100 = arith.constant 0 : index
    %c0_101 = arith.constant 0 : index
    %234 = vector.load %arg10[%c1_99, %c0_100, %c0_101] : memref<2x1x96xf32, #tpu.memory_space<vmem>>, vector<1x1x96xf32>
    %235 = vector.shape_cast %234 : vector<1x1x96xf32> to vector<1x96xf32>
    %236 = vector.broadcast %235 : vector<1x96xf32> to vector<16x96xf32>
    %237 = arith.addf %233, %236 : vector<16x96xf32>
    %238 = vector.extract_strided_slice %237 {offsets = [0, 0], sizes = [16, 32], strides = [1, 1]} : vector<16x96xf32> to vector<16x32xf32>
    %cst_102 = arith.constant 2.500000e-01 : f32
    %239 = vector.broadcast %cst_102 : f32 to vector<16x32xf32>
    %240 = arith.mulf %238, %239 : vector<16x32xf32>
    %241 = vector.extract_strided_slice %237 {offsets = [0, 32], sizes = [16, 32], strides = [1, 1]} : vector<16x96xf32> to vector<16x32xf32>
    %242 = vector.extract_strided_slice %237 {offsets = [0, 64], sizes = [16, 32], strides = [1, 1]} : vector<16x96xf32> to vector<16x32xf32>
    %243 = vector.extract_strided_slice %240 {offsets = [0, 0], sizes = [8, 16], strides = [1, 1]} : vector<16x32xf32> to vector<8x16xf32>
    %244 = vector.extract_strided_slice %241 {offsets = [0, 0], sizes = [8, 16], strides = [1, 1]} : vector<16x32xf32> to vector<8x16xf32>
    %245 = vector.extract_strided_slice %242 {offsets = [0, 0], sizes = [8, 16], strides = [1, 1]} : vector<16x32xf32> to vector<8x16xf32>
    %cst_103 = arith.constant dense<0.000000e+00> : vector<8x8xf32>
    %246 = tpu.matmul %243, %244, %cst_103 {dimension_numbers = #tpu.dot_dimension_numbers<[1], [1], [0], [0], [0, 0, 1, 0], [], []>} : vector<8x16xf32>, vector<8x16xf32>, vector<8x8xf32> -> vector<8x8xf32>
    %247 = arith.addf %246, %55 : vector<8x8xf32>
    %cst_104 = arith.constant dense<0xFF800000> : vector<8xf32>
    %248 = vector.multi_reduction <maximumf>, %247, %cst_104 [1] : vector<8x8xf32> to vector<8xf32>
    %249 = vector.shape_cast %248 : vector<8xf32> to vector<8x1xf32>
    %250 = vector.broadcast %249 : vector<8x1xf32> to vector<8x8xf32>
    %251 = arith.subf %247, %250 : vector<8x8xf32>
    %252 = math.exp %251 : vector<8x8xf32>
    %cst_105 = arith.constant dense<0.000000e+00> : vector<8xf32>
    %253 = vector.multi_reduction <add>, %252, %cst_105 [1] : vector<8x8xf32> to vector<8xf32>
    %254 = vector.shape_cast %253 : vector<8xf32> to vector<8x1xf32>
    %255 = vector.broadcast %254 : vector<8x1xf32> to vector<8x8xf32>
    %256 = arith.divf %252, %255 : vector<8x8xf32>
    %cst_106 = arith.constant dense<0.000000e+00> : vector<8x16xf32>
    %257 = tpu.matmul %256, %245, %cst_106 {dimension_numbers = #tpu.dot_dimension_numbers<[1], [0], [0], [1], [0, 0, 1, 1], [], []>} : vector<8x8xf32>, vector<8x16xf32>, vector<8x16xf32> -> vector<8x16xf32>
    %258 = vector.extract_strided_slice %240 {offsets = [0, 16], sizes = [8, 16], strides = [1, 1]} : vector<16x32xf32> to vector<8x16xf32>
    %259 = vector.extract_strided_slice %241 {offsets = [0, 16], sizes = [8, 16], strides = [1, 1]} : vector<16x32xf32> to vector<8x16xf32>
    %260 = vector.extract_strided_slice %242 {offsets = [0, 16], sizes = [8, 16], strides = [1, 1]} : vector<16x32xf32> to vector<8x16xf32>
    %cst_107 = arith.constant dense<0.000000e+00> : vector<8x8xf32>
    %261 = tpu.matmul %258, %259, %cst_107 {dimension_numbers = #tpu.dot_dimension_numbers<[1], [1], [0], [0], [0, 0, 1, 0], [], []>} : vector<8x16xf32>, vector<8x16xf32>, vector<8x8xf32> -> vector<8x8xf32>
    %262 = arith.addf %261, %55 : vector<8x8xf32>
    %cst_108 = arith.constant dense<0xFF800000> : vector<8xf32>
    %263 = vector.multi_reduction <maximumf>, %262, %cst_108 [1] : vector<8x8xf32> to vector<8xf32>
    %264 = vector.shape_cast %263 : vector<8xf32> to vector<8x1xf32>
    %265 = vector.broadcast %264 : vector<8x1xf32> to vector<8x8xf32>
    %266 = arith.subf %262, %265 : vector<8x8xf32>
    %267 = math.exp %266 : vector<8x8xf32>
    %cst_109 = arith.constant dense<0.000000e+00> : vector<8xf32>
    %268 = vector.multi_reduction <add>, %267, %cst_109 [1] : vector<8x8xf32> to vector<8xf32>
    %269 = vector.shape_cast %268 : vector<8xf32> to vector<8x1xf32>
    %270 = vector.broadcast %269 : vector<8x1xf32> to vector<8x8xf32>
    %271 = arith.divf %267, %270 : vector<8x8xf32>
    %cst_110 = arith.constant dense<0.000000e+00> : vector<8x16xf32>
    %272 = tpu.matmul %271, %260, %cst_110 {dimension_numbers = #tpu.dot_dimension_numbers<[1], [0], [0], [1], [0, 0, 1, 1], [], []>} : vector<8x8xf32>, vector<8x16xf32>, vector<8x16xf32> -> vector<8x16xf32>
    %273 = tpu.concatenate %257, %272 in 1 : vector<8x16xf32>, vector<8x16xf32> -> vector<8x32xf32>
    %274 = vector.extract_strided_slice %240 {offsets = [8, 0], sizes = [8, 16], strides = [1, 1]} : vector<16x32xf32> to vector<8x16xf32>
    %275 = vector.extract_strided_slice %241 {offsets = [8, 0], sizes = [8, 16], strides = [1, 1]} : vector<16x32xf32> to vector<8x16xf32>
    %276 = vector.extract_strided_slice %242 {offsets = [8, 0], sizes = [8, 16], strides = [1, 1]} : vector<16x32xf32> to vector<8x16xf32>
    %cst_111 = arith.constant dense<0.000000e+00> : vector<8x8xf32>
    %277 = tpu.matmul %274, %275, %cst_111 {dimension_numbers = #tpu.dot_dimension_numbers<[1], [1], [0], [0], [0, 0, 1, 0], [], []>} : vector<8x16xf32>, vector<8x16xf32>, vector<8x8xf32> -> vector<8x8xf32>
    %278 = arith.addf %277, %62 : vector<8x8xf32>
    %cst_112 = arith.constant dense<0xFF800000> : vector<8xf32>
    %279 = vector.multi_reduction <maximumf>, %278, %cst_112 [1] : vector<8x8xf32> to vector<8xf32>
    %280 = vector.shape_cast %279 : vector<8xf32> to vector<8x1xf32>
    %281 = vector.broadcast %280 : vector<8x1xf32> to vector<8x8xf32>
    %282 = arith.subf %278, %281 : vector<8x8xf32>
    %283 = math.exp %282 : vector<8x8xf32>
    %cst_113 = arith.constant dense<0.000000e+00> : vector<8xf32>
    %284 = vector.multi_reduction <add>, %283, %cst_113 [1] : vector<8x8xf32> to vector<8xf32>
    %285 = vector.shape_cast %284 : vector<8xf32> to vector<8x1xf32>
    %286 = vector.broadcast %285 : vector<8x1xf32> to vector<8x8xf32>
    %287 = arith.divf %283, %286 : vector<8x8xf32>
    %cst_114 = arith.constant dense<0.000000e+00> : vector<8x16xf32>
    %288 = tpu.matmul %287, %276, %cst_114 {dimension_numbers = #tpu.dot_dimension_numbers<[1], [0], [0], [1], [0, 0, 1, 1], [], []>} : vector<8x8xf32>, vector<8x16xf32>, vector<8x16xf32> -> vector<8x16xf32>
    %289 = vector.extract_strided_slice %240 {offsets = [8, 16], sizes = [8, 16], strides = [1, 1]} : vector<16x32xf32> to vector<8x16xf32>
    %290 = vector.extract_strided_slice %241 {offsets = [8, 16], sizes = [8, 16], strides = [1, 1]} : vector<16x32xf32> to vector<8x16xf32>
    %291 = vector.extract_strided_slice %242 {offsets = [8, 16], sizes = [8, 16], strides = [1, 1]} : vector<16x32xf32> to vector<8x16xf32>
    %cst_115 = arith.constant dense<0.000000e+00> : vector<8x8xf32>
    %292 = tpu.matmul %289, %290, %cst_115 {dimension_numbers = #tpu.dot_dimension_numbers<[1], [1], [0], [0], [0, 0, 1, 0], [], []>} : vector<8x16xf32>, vector<8x16xf32>, vector<8x8xf32> -> vector<8x8xf32>
    %293 = arith.addf %292, %62 : vector<8x8xf32>
    %cst_116 = arith.constant dense<0xFF800000> : vector<8xf32>
    %294 = vector.multi_reduction <maximumf>, %293, %cst_116 [1] : vector<8x8xf32> to vector<8xf32>
    %295 = vector.shape_cast %294 : vector<8xf32> to vector<8x1xf32>
    %296 = vector.broadcast %295 : vector<8x1xf32> to vector<8x8xf32>
    %297 = arith.subf %293, %296 : vector<8x8xf32>
    %298 = math.exp %297 : vector<8x8xf32>
    %cst_117 = arith.constant dense<0.000000e+00> : vector<8xf32>
    %299 = vector.multi_reduction <add>, %298, %cst_117 [1] : vector<8x8xf32> to vector<8xf32>
    %300 = vector.shape_cast %299 : vector<8xf32> to vector<8x1xf32>
    %301 = vector.broadcast %300 : vector<8x1xf32> to vector<8x8xf32>
    %302 = arith.divf %298, %301 : vector<8x8xf32>
    %cst_118 = arith.constant dense<0.000000e+00> : vector<8x16xf32>
    %303 = tpu.matmul %302, %291, %cst_118 {dimension_numbers = #tpu.dot_dimension_numbers<[1], [0], [0], [1], [0, 0, 1, 1], [], []>} : vector<8x8xf32>, vector<8x16xf32>, vector<8x16xf32> -> vector<8x16xf32>
    %304 = tpu.concatenate %288, %303 in 1 : vector<8x16xf32>, vector<8x16xf32> -> vector<8x32xf32>
    %305 = tpu.concatenate %273, %304 in 0 : vector<8x32xf32>, vector<8x32xf32> -> vector<16x32xf32>
    %306 = arith.truncf %305 : vector<16x32xf32> to vector<16x32xbf16>
    %c1_119 = arith.constant 1 : index
    %c0_120 = arith.constant 0 : index
    %c0_121 = arith.constant 0 : index
    %307 = vector.load %arg11[%c1_119, %c0_120, %c0_121] : memref<2x32x32xbf16, #tpu.memory_space<vmem>>, vector<1x32x32xbf16>
    %308 = vector.shape_cast %307 : vector<1x32x32xbf16> to vector<32x32xbf16>
    %cst_122 = arith.constant dense<0.000000e+00> : vector<16x32xf32>
    %309 = tpu.matmul %306, %308, %cst_122 {dimension_numbers = #tpu.dot_dimension_numbers<[1], [0], [0], [1], [0, 0, 1, 1], [], []>} : vector<16x32xbf16>, vector<32x32xbf16>, vector<16x32xf32> -> vector<16x32xf32>
    %c1_123 = arith.constant 1 : index
    %c0_124 = arith.constant 0 : index
    %c0_125 = arith.constant 0 : index
    %310 = vector.load %arg12[%c1_123, %c0_124, %c0_125] : memref<2x1x32xf32, #tpu.memory_space<vmem>>, vector<1x1x32xf32>
    %311 = vector.shape_cast %310 : vector<1x1x32xf32> to vector<1x32xf32>
    %312 = vector.broadcast %311 : vector<1x32xf32> to vector<16x32xf32>
    %313 = arith.addf %309, %312 : vector<16x32xf32>
    %314 = arith.addf %313, %229 : vector<16x32xf32>
    %c1_126 = arith.constant 1 : index
    %c0_127 = arith.constant 0 : index
    %c0_128 = arith.constant 0 : index
    %315 = vector.load %arg13[%c1_126, %c0_127, %c0_128] : memref<2x1x32xf32, #tpu.memory_space<vmem>>, vector<1x1x32xf32>
    %316 = vector.shape_cast %315 : vector<1x1x32xf32> to vector<1x32xf32>
    %c1_129 = arith.constant 1 : index
    %c0_130 = arith.constant 0 : index
    %c0_131 = arith.constant 0 : index
    %317 = vector.load %arg14[%c1_129, %c0_130, %c0_131] : memref<2x1x32xf32, #tpu.memory_space<vmem>>, vector<1x1x32xf32>
    %318 = vector.shape_cast %317 : vector<1x1x32xf32> to vector<1x32xf32>
    %cst_132 = arith.constant dense<0.000000e+00> : vector<16xf32>
    %319 = vector.multi_reduction <add>, %314, %cst_132 [1] : vector<16x32xf32> to vector<16xf32>
    %320 = vector.shape_cast %319 : vector<16xf32> to vector<16x1xf32>
    %cst_133 = arith.constant 3.200000e+01 : f32
    %321 = vector.broadcast %cst_133 : f32 to vector<16x1xf32>
    %322 = arith.divf %320, %321 : vector<16x1xf32>
    %323 = vector.broadcast %322 : vector<16x1xf32> to vector<16x32xf32>
    %324 = arith.subf %314, %323 : vector<16x32xf32>
    %325 = arith.mulf %324, %324 : vector<16x32xf32>
    %cst_134 = arith.constant dense<0.000000e+00> : vector<16xf32>
    %326 = vector.multi_reduction <add>, %325, %cst_134 [1] : vector<16x32xf32> to vector<16xf32>
    %327 = vector.shape_cast %326 : vector<16xf32> to vector<16x1xf32>
    %cst_135 = arith.constant 3.200000e+01 : f32
    %328 = vector.broadcast %cst_135 : f32 to vector<16x1xf32>
    %329 = arith.divf %327, %328 : vector<16x1xf32>
    %330 = vector.broadcast %322 : vector<16x1xf32> to vector<16x32xf32>
    %331 = arith.subf %314, %330 : vector<16x32xf32>
    %cst_136 = arith.constant 9.99999996E-13 : f32
    %332 = vector.broadcast %cst_136 : f32 to vector<16x1xf32>
    %333 = arith.addf %329, %332 : vector<16x1xf32>
    %334 = math.rsqrt %333 : vector<16x1xf32>
    %335 = vector.broadcast %334 : vector<16x1xf32> to vector<16x32xf32>
    %336 = arith.mulf %331, %335 : vector<16x32xf32>
    %337 = vector.broadcast %316 : vector<1x32xf32> to vector<16x32xf32>
    %338 = arith.mulf %336, %337 : vector<16x32xf32>
    %339 = vector.broadcast %318 : vector<1x32xf32> to vector<16x32xf32>
    %340 = arith.addf %338, %339 : vector<16x32xf32>
    %341 = arith.truncf %340 : vector<16x32xf32> to vector<16x32xbf16>
    %c1_137 = arith.constant 1 : index
    %c0_138 = arith.constant 0 : index
    %c0_139 = arith.constant 0 : index
    %342 = vector.load %arg15[%c1_137, %c0_138, %c0_139] : memref<2x32x64xbf16, #tpu.memory_space<vmem>>, vector<1x32x64xbf16>
    %343 = vector.shape_cast %342 : vector<1x32x64xbf16> to vector<32x64xbf16>
    %cst_140 = arith.constant dense<0.000000e+00> : vector<16x64xf32>
    %344 = tpu.matmul %341, %343, %cst_140 {dimension_numbers = #tpu.dot_dimension_numbers<[1], [0], [0], [1], [0, 0, 1, 1], [], []>} : vector<16x32xbf16>, vector<32x64xbf16>, vector<16x64xf32> -> vector<16x64xf32>
    %c1_141 = arith.constant 1 : index
    %c0_142 = arith.constant 0 : index
    %c0_143 = arith.constant 0 : index
    %345 = vector.load %arg16[%c1_141, %c0_142, %c0_143] : memref<2x1x64xf32, #tpu.memory_space<vmem>>, vector<1x1x64xf32>
    %346 = vector.shape_cast %345 : vector<1x1x64xf32> to vector<1x64xf32>
    %347 = vector.broadcast %346 : vector<1x64xf32> to vector<16x64xf32>
    %348 = arith.addf %344, %347 : vector<16x64xf32>
    %349 = arith.mulf %348, %348 : vector<16x64xf32>
    %350 = arith.mulf %348, %349 : vector<16x64xf32>
    %cst_144 = arith.constant 4.471500e-02 : f32
    %351 = vector.broadcast %cst_144 : f32 to vector<16x64xf32>
    %352 = arith.mulf %351, %350 : vector<16x64xf32>
    %353 = arith.addf %348, %352 : vector<16x64xf32>
    %cst_145 = arith.constant 0.797884583 : f32
    %354 = vector.broadcast %cst_145 : f32 to vector<16x64xf32>
    %355 = arith.mulf %354, %353 : vector<16x64xf32>
    %356 = math.tanh %355 : vector<16x64xf32>
    %cst_146 = arith.constant 1.000000e+00 : f32
    %357 = vector.broadcast %cst_146 : f32 to vector<16x64xf32>
    %358 = arith.addf %357, %356 : vector<16x64xf32>
    %cst_147 = arith.constant 5.000000e-01 : f32
    %359 = vector.broadcast %cst_147 : f32 to vector<16x64xf32>
    %360 = arith.mulf %359, %358 : vector<16x64xf32>
    %361 = arith.mulf %348, %360 : vector<16x64xf32>
    %362 = arith.truncf %361 : vector<16x64xf32> to vector<16x64xbf16>
    %c1_148 = arith.constant 1 : index
    %c0_149 = arith.constant 0 : index
    %c0_150 = arith.constant 0 : index
    %363 = vector.load %arg17[%c1_148, %c0_149, %c0_150] : memref<2x64x32xbf16, #tpu.memory_space<vmem>>, vector<1x64x32xbf16>
    %364 = vector.shape_cast %363 : vector<1x64x32xbf16> to vector<64x32xbf16>
    %cst_151 = arith.constant dense<0.000000e+00> : vector<16x32xf32>
    %365 = tpu.matmul %362, %364, %cst_151 {dimension_numbers = #tpu.dot_dimension_numbers<[1], [0], [0], [1], [0, 0, 1, 1], [], []>} : vector<16x64xbf16>, vector<64x32xbf16>, vector<16x32xf32> -> vector<16x32xf32>
    %c1_152 = arith.constant 1 : index
    %c0_153 = arith.constant 0 : index
    %c0_154 = arith.constant 0 : index
    %366 = vector.load %arg18[%c1_152, %c0_153, %c0_154] : memref<2x1x32xf32, #tpu.memory_space<vmem>>, vector<1x1x32xf32>
    %367 = vector.shape_cast %366 : vector<1x1x32xf32> to vector<1x32xf32>
    %368 = vector.broadcast %367 : vector<1x32xf32> to vector<16x32xf32>
    %369 = arith.addf %365, %368 : vector<16x32xf32>
    %370 = arith.addf %369, %340 : vector<16x32xf32>
    %c1_155 = arith.constant 1 : index
    %c0_156 = arith.constant 0 : index
    %c0_157 = arith.constant 0 : index
    %371 = vector.load %arg19[%c1_155, %c0_156, %c0_157] : memref<2x1x32xf32, #tpu.memory_space<vmem>>, vector<1x1x32xf32>
    %372 = vector.shape_cast %371 : vector<1x1x32xf32> to vector<1x32xf32>
    %c1_158 = arith.constant 1 : index
    %c0_159 = arith.constant 0 : index
    %c0_160 = arith.constant 0 : index
    %373 = vector.load %arg20[%c1_158, %c0_159, %c0_160] : memref<2x1x32xf32, #tpu.memory_space<vmem>>, vector<1x1x32xf32>
    %374 = vector.shape_cast %373 : vector<1x1x32xf32> to vector<1x32xf32>
    %cst_161 = arith.constant dense<0.000000e+00> : vector<16xf32>
    %375 = vector.multi_reduction <add>, %370, %cst_161 [1] : vector<16x32xf32> to vector<16xf32>
    %376 = vector.shape_cast %375 : vector<16xf32> to vector<16x1xf32>
    %cst_162 = arith.constant 3.200000e+01 : f32
    %377 = vector.broadcast %cst_162 : f32 to vector<16x1xf32>
    %378 = arith.divf %376, %377 : vector<16x1xf32>
    %379 = vector.broadcast %378 : vector<16x1xf32> to vector<16x32xf32>
    %380 = arith.subf %370, %379 : vector<16x32xf32>
    %381 = arith.mulf %380, %380 : vector<16x32xf32>
    %cst_163 = arith.constant dense<0.000000e+00> : vector<16xf32>
    %382 = vector.multi_reduction <add>, %381, %cst_163 [1] : vector<16x32xf32> to vector<16xf32>
    %383 = vector.shape_cast %382 : vector<16xf32> to vector<16x1xf32>
    %cst_164 = arith.constant 3.200000e+01 : f32
    %384 = vector.broadcast %cst_164 : f32 to vector<16x1xf32>
    %385 = arith.divf %383, %384 : vector<16x1xf32>
    %386 = vector.broadcast %378 : vector<16x1xf32> to vector<16x32xf32>
    %387 = arith.subf %370, %386 : vector<16x32xf32>
    %cst_165 = arith.constant 9.99999996E-13 : f32
    %388 = vector.broadcast %cst_165 : f32 to vector<16x1xf32>
    %389 = arith.addf %385, %388 : vector<16x1xf32>
    %390 = math.rsqrt %389 : vector<16x1xf32>
    %391 = vector.broadcast %390 : vector<16x1xf32> to vector<16x32xf32>
    %392 = arith.mulf %387, %391 : vector<16x32xf32>
    %393 = vector.broadcast %372 : vector<1x32xf32> to vector<16x32xf32>
    %394 = arith.mulf %392, %393 : vector<16x32xf32>
    %395 = vector.broadcast %374 : vector<1x32xf32> to vector<16x32xf32>
    %396 = arith.addf %394, %395 : vector<16x32xf32>
    %397 = vector.extract_strided_slice %396 {offsets = [0, 0], sizes = [8, 32], strides = [1, 1]} : vector<16x32xf32> to vector<8x32xf32>
    %398 = vector.extract_strided_slice %397 {offsets = [0, 0], sizes = [1, 32], strides = [1, 1]} : vector<8x32xf32> to vector<1x32xf32>
    %399 = vector.extract_strided_slice %396 {offsets = [8, 0], sizes = [8, 32], strides = [1, 1]} : vector<16x32xf32> to vector<8x32xf32>
    %400 = vector.extract_strided_slice %399 {offsets = [0, 0], sizes = [1, 32], strides = [1, 1]} : vector<8x32xf32> to vector<1x32xf32>
    %401 = tpu.concatenate %398, %400 in 0 : vector<1x32xf32>, vector<1x32xf32> -> vector<2x32xf32>
    %c0_166 = arith.constant 0 : index
    %c0_167 = arith.constant 0 : index
    %402 = vector.load %arg23[%c0_166, %c0_167] : memref<2x32xf32, #tpu.memory_space<vmem>>, vector<2x32xf32>
    tpu.vector_store %arg23[%c0_166, %c0_167], %401 {strides = array<i32>} : memref<2x32xf32, #tpu.memory_space<vmem>>, vector<2x32xf32>,
    return
  }
  func.func @transform_0(%arg0: i32) -> (i32, i32) {
    %c0_i32 = arith.constant 0 : i32
    %c0_i32_0 = arith.constant 0 : i32
    return %arg0, %c0_i32 : i32, i32
  }
  func.func @transform_1(%arg0: i32) -> (i32, i32) {
    %c0_i32 = arith.constant 0 : i32
    %c0_i32_0 = arith.constant 0 : i32
    return %arg0, %c0_i32 : i32, i32
  }
  func.func @transform_2(%arg0: i32) -> (i32, i32) {
    %c0_i32 = arith.constant 0 : i32
    %c0_i32_0 = arith.constant 0 : i32
    return %arg0, %c0_i32 : i32, i32
  }
  func.func @transform_3(%arg0: i32) -> (i32, i32) {
    %c0_i32 = arith.constant 0 : i32
    %c0_i32_0 = arith.constant 0 : i32
    %c0_i32_1 = arith.constant 0 : i32
    return %c0_i32, %c0_i32_0 : i32, i32
  }
  func.func @transform_4(%arg0: i32) -> (i32, i32) {
    %c0_i32 = arith.constant 0 : i32
    %c0_i32_0 = arith.constant 0 : i32
    %c0_i32_1 = arith.constant 0 : i32
    return %c0_i32, %c0_i32_0 : i32, i32
  }
  func.func @transform_5(%arg0: i32) -> (i32, i32) {
    %c0_i32 = arith.constant 0 : i32
    %c0_i32_0 = arith.constant 0 : i32
    %c0_i32_1 = arith.constant 0 : i32
    return %c0_i32, %c0_i32_0 : i32, i32
  }
  func.func @transform_6(%arg0: i32) -> (i32, i32) {
    %c0_i32 = arith.constant 0 : i32
    %c0_i32_0 = arith.constant 0 : i32
    %c0_i32_1 = arith.constant 0 : i32
    return %c0_i32, %c0_i32_0 : i32, i32
  }
  func.func @transform_7(%arg0: i32) -> (i32, i32) {
    %c0_i32 = arith.constant 0 : i32
    %c0_i32_0 = arith.constant 0 : i32
    %c0_i32_1 = arith.constant 0 : i32
    return %c0_i32, %c0_i32_0 : i32, i32
  }
  func.func @transform_8(%arg0: i32) -> (i32, i32, i32) {
    %c0_i32 = arith.constant 0 : i32
    %c0_i32_0 = arith.constant 0 : i32
    %c0_i32_1 = arith.constant 0 : i32
    %c0_i32_2 = arith.constant 0 : i32
    return %c0_i32, %c0_i32_0, %c0_i32_1 : i32, i32, i32
  }
  func.func @transform_9(%arg0: i32) -> (i32, i32, i32) {
    %c0_i32 = arith.constant 0 : i32
    %c0_i32_0 = arith.constant 0 : i32
    %c0_i32_1 = arith.constant 0 : i32
    %c0_i32_2 = arith.constant 0 : i32
    return %c0_i32, %c0_i32_0, %c0_i32_1 : i32, i32, i32
  }
  func.func @transform_10(%arg0: i32) -> (i32, i32, i32) {
    %c0_i32 = arith.constant 0 : i32
    %c0_i32_0 = arith.constant 0 : i32
    %c0_i32_1 = arith.constant 0 : i32
    %c0_i32_2 = arith.constant 0 : i32
    return %c0_i32, %c0_i32_0, %c0_i32_1 : i32, i32, i32
  }
  func.func @transform_11(%arg0: i32) -> (i32, i32, i32) {
    %c0_i32 = arith.constant 0 : i32
    %c0_i32_0 = arith.constant 0 : i32
    %c0_i32_1 = arith.constant 0 : i32
    %c0_i32_2 = arith.constant 0 : i32
    return %c0_i32, %c0_i32_0, %c0_i32_1 : i32, i32, i32
  }
  func.func @transform_12(%arg0: i32) -> (i32, i32, i32) {
    %c0_i32 = arith.constant 0 : i32
    %c0_i32_0 = arith.constant 0 : i32
    %c0_i32_1 = arith.constant 0 : i32
    %c0_i32_2 = arith.constant 0 : i32
    return %c0_i32, %c0_i32_0, %c0_i32_1 : i32, i32, i32
  }
  func.func @transform_13(%arg0: i32) -> (i32, i32, i32) {
    %c0_i32 = arith.constant 0 : i32
    %c0_i32_0 = arith.constant 0 : i32
    %c0_i32_1 = arith.constant 0 : i32
    %c0_i32_2 = arith.constant 0 : i32
    return %c0_i32, %c0_i32_0, %c0_i32_1 : i32, i32, i32
  }
  func.func @transform_14(%arg0: i32) -> (i32, i32, i32) {
    %c0_i32 = arith.constant 0 : i32
    %c0_i32_0 = arith.constant 0 : i32
    %c0_i32_1 = arith.constant 0 : i32
    %c0_i32_2 = arith.constant 0 : i32
    return %c0_i32, %c0_i32_0, %c0_i32_1 : i32, i32, i32
  }
  func.func @transform_15(%arg0: i32) -> (i32, i32, i32) {
    %c0_i32 = arith.constant 0 : i32
    %c0_i32_0 = arith.constant 0 : i32
    %c0_i32_1 = arith.constant 0 : i32
    %c0_i32_2 = arith.constant 0 : i32
    return %c0_i32, %c0_i32_0, %c0_i32_1 : i32, i32, i32
  }
  func.func @transform_16(%arg0: i32) -> (i32, i32, i32) {
    %c0_i32 = arith.constant 0 : i32
    %c0_i32_0 = arith.constant 0 : i32
    %c0_i32_1 = arith.constant 0 : i32
    %c0_i32_2 = arith.constant 0 : i32
    return %c0_i32, %c0_i32_0, %c0_i32_1 : i32, i32, i32
  }
  func.func @transform_17(%arg0: i32) -> (i32, i32, i32) {
    %c0_i32 = arith.constant 0 : i32
    %c0_i32_0 = arith.constant 0 : i32
    %c0_i32_1 = arith.constant 0 : i32
    %c0_i32_2 = arith.constant 0 : i32
    return %c0_i32, %c0_i32_0, %c0_i32_1 : i32, i32, i32
  }
  func.func @transform_18(%arg0: i32) -> (i32, i32, i32) {
    %c0_i32 = arith.constant 0 : i32
    %c0_i32_0 = arith.constant 0 : i32
    %c0_i32_1 = arith.constant 0 : i32
    %c0_i32_2 = arith.constant 0 : i32
    return %c0_i32, %c0_i32_0, %c0_i32_1 : i32, i32, i32
  }
  func.func @transform_19(%arg0: i32) -> (i32, i32, i32) {
    %c0_i32 = arith.constant 0 : i32
    %c0_i32_0 = arith.constant 0 : i32
    %c0_i32_1 = arith.constant 0 : i32
    %c0_i32_2 = arith.constant 0 : i32
    return %c0_i32, %c0_i32_0, %c0_i32_1 : i32, i32, i32
  }
  func.func @transform_20(%arg0: i32) -> (i32, i32) {
    %c0_i32 = arith.constant 0 : i32
    %c0_i32_0 = arith.constant 0 : i32
    %c0_i32_1 = arith.constant 0 : i32
    return %c0_i32, %c0_i32_0 : i32, i32
  }
  func.func @transform_21(%arg0: i32) -> (i32, i32) {
    %c0_i32 = arith.constant 0 : i32
    %c0_i32_0 = arith.constant 0 : i32
    %c0_i32_1 = arith.constant 0 : i32
    return %c0_i32, %c0_i32_0 : i32, i32
  }
  func.func @transform_22(%arg0: i32) -> (i32, i32) {
    %c0_i32 = arith.constant 0 : i32
    %c0_i32_0 = arith.constant 0 : i32
    return %arg0, %c0_i32 : i32, i32
  }
}

</mosaic_0001>

<llo_original>
// kernel: esimcse_forward.1
$region0: #{esimcse_forward.1}
  #allocation0 [shape = 'u32[]', space=smem, size = 0x4, offset = 0x4, fixed_abs, tag = 'smem constant byte address 0x4 - core index']
  #allocation1 [shape = 'u32[144,128]{1,0:T(1,128)}', space=vmem, size = 0x12000, scoped, tag = 'internal scratch']
  %s0 = inlined_call_operand.vmem [shape: s32[16,1], index: 0, kind: input, shape index: {}]
  %s1 = inlined_call_operand.vmem [shape: s32[16,1], index: 1, kind: input, shape index: {}]
  %s2 = inlined_call_operand.vmem [shape: s32[2,8], index: 2, kind: input, shape index: {}]
  %s3 = inlined_call_operand.vmem [shape: bf16[50,32], index: 3, kind: input, shape index: {}]
  %s4 = inlined_call_operand.vmem [shape: bf16[16,32], index: 4, kind: input, shape index: {}]
  %s5 = inlined_call_operand.vmem [shape: bf16[2,32], index: 5, kind: input, shape index: {}]
  %s6 = inlined_call_operand.vmem [shape: f32[1,32], index: 6, kind: input, shape index: {}]
  %s7 = inlined_call_operand.vmem [shape: f32[1,32], index: 7, kind: input, shape index: {}]
  %s8 = inlined_call_operand.vmem [shape: bf16[2,32,96], index: 8, kind: input, shape index: {}]
  %s9 = inlined_call_operand.vmem [shape: f32[2,1,96], index: 9, kind: input, shape index: {}]
  %s10 = inlined_call_operand.vmem [shape: bf16[2,32,32], index: 10, kind: input, shape index: {}]
  %s11 = inlined_call_operand.vmem [shape: f32[2,1,32], index: 11, kind: input, shape index: {}]
  %s12 = inlined_call_operand.vmem [shape: f32[2,1,32], index: 12, kind: input, shape index: {}]
  %s13 = inlined_call_operand.vmem [shape: f32[2,1,32], index: 13, kind: input, shape index: {}]
  %s14 = inlined_call_operand.vmem [shape: bf16[2,32,64], index: 14, kind: input, shape index: {}]
  %s15 = inlined_call_operand.hbm [shape: f32[2,1,64], index: 15, kind: input, shape index: {}]
  %s16 = inlined_call_operand.vmem [shape: bf16[2,64,32], index: 16, kind: input, shape index: {}]
  %s17 = inlined_call_operand.hbm [shape: f32[2,1,32], index: 17, kind: input, shape index: {}]
  %s18 = inlined_call_operand.vmem [shape: f32[2,1,32], index: 18, kind: input, shape index: {}]
  %s19 = inlined_call_operand.vmem [shape: f32[2,1,32], index: 19, kind: input, shape index: {}]
  %s20 = inlined_call_operand.vmem [shape: bf16[32,32], index: 20, kind: input, shape index: {}]
  %s21 = inlined_call_operand.vmem [shape: f32[1,32], index: 21, kind: input, shape index: {}]
  %s22 = inlined_call_operand.hbm [shape: f32[2,32], index: 22, kind: output, shape index: {}]
  %s23 = sld [smem:[#allocation0]]
  $region106: #{esimcse_forward.1} parent=0
    _
  %s25 = ssub.s32 1, %s23
  %s26 = scalar_select 0, %s25, %s23
  $region1: #{esimcse_forward.1} parent=0
    #allocation2 [shape = 'u8[1024]{0}', space=vmem, size = 0x400, scoped, tag = 'input window, operand 15, single buffered']
    #allocation3 [shape = 's32[1]{0}', space=sflag, size = 0x4, scoped, tag = 'scoped memory for esimcse_forward.1']
    #allocation4 [shape = 's32[1]{0}', space=sflag, size = 0x4, scoped, tag = 'scoped memory for esimcse_forward.1']
    #allocation5 [shape = 'u8[1024]{0}', space=vmem, size = 0x400, scoped, tag = 'input window, operand 17, single buffered']
    #allocation6 [shape = 's32[1]{0}', space=sflag, size = 0x4, scoped, tag = 'scoped memory for esimcse_forward.1']
    #allocation7 [shape = 'u8[1024]{0}', space=vmem, size = 0x400, scoped, tag = 'output window, operand 0, single buffered']
    %27 = vsyncpa [#allocation3], 0
    %28 = vsyncpa [#allocation6], 0
    %29 = vsyncpa [#allocation4], 0
    // Predicated region
    $region2: #{esimcse_forward.1} parent=1 // pred_check
      _
    $region3: #{esimcse_forward.1} parent=1 // pred_check_branch
      %31 = sbr.rel (0) target = $region5
    $region4: #{esimcse_forward.1} parent=1 // pred_region
      _
    $region5: #{esimcse_forward.1} parent=1 // pred_fallthru
      _
    // Predicated region
    $region6: #{esimcse_forward.1} parent=1 // pred_check
      _
    $region7: #{esimcse_forward.1} parent=1 // pred_check_branch
      %33 = sbr.rel (0) target = $region9
    $region8: #{esimcse_forward.1} parent=1 // pred_region
      _
    $region9: #{esimcse_forward.1} parent=1 // pred_fallthru
      _
    // Predicated region
    $region10: #{esimcse_forward.1} parent=1 // pred_check
      _
    $region11: #{esimcse_forward.1} parent=1 // pred_check_branch
      %35 = sbr.rel (0) target = $region13
    $region12: #{esimcse_forward.1} parent=1 // pred_region
      _
    $region13: #{esimcse_forward.1} parent=1 // pred_fallthru
      _
    // Predicated region
    $region14: #{esimcse_forward.1} parent=1 // pred_check
      _
    $region15: #{esimcse_forward.1} parent=1 // pred_check_branch
      %37 = sbr.rel (0) target = $region17
    $region16: #{esimcse_forward.1} parent=1 // pred_region
      _
    $region17: #{esimcse_forward.1} parent=1 // pred_fallthru
      _
    // Predicated region
    $region18: #{esimcse_forward.1} parent=1 // pred_check
      _
    $region19: #{esimcse_forward.1} parent=1 // pred_check_branch
      %39 = sbr.rel (0) target = $region21
    $region20: #{esimcse_forward.1} parent=1 // pred_region
      _
    $region21: #{esimcse_forward.1} parent=1 // pred_fallthru
      _
    // Predicated region
    $region22: #{esimcse_forward.1} parent=1 // pred_check
      _
    $region23: #{esimcse_forward.1} parent=1 // pred_check_branch
      %41 = sbr.rel (0) target = $region25
    $region24: #{esimcse_forward.1} parent=1 // pred_region
      _
    $region25: #{esimcse_forward.1} parent=1 // pred_fallthru
      _
    // Predicated region
    $region26: #{esimcse_forward.1} parent=1 // pred_check
      _
    $region27: #{esimcse_forward.1} parent=1 // pred_check_branch
      %43 = sbr.rel (0) target = $region29
    $region28: #{esimcse_forward.1} parent=1 // pred_region
      _
    $region29: #{esimcse_forward.1} parent=1 // pred_fallthru
      _
    // Predicated region
    $region30: #{esimcse_forward.1} parent=1 // pred_check
      _
    $region31: #{esimcse_forward.1} parent=1 // pred_check_branch
      %45 = sbr.rel (0) target = $region33
    $region32: #{esimcse_forward.1} parent=1 // pred_region
      _
    $region33: #{esimcse_forward.1} parent=1 // pred_fallthru
      _
    // Predicated region
    $region34: #{esimcse_forward.1} parent=1 // pred_check
      _
    $region35: #{esimcse_forward.1} parent=1 // pred_check_branch
      %47 = sbr.rel (0) target = $region37
    $region36: #{esimcse_forward.1} parent=1 // pred_region
      _
    $region37: #{esimcse_forward.1} parent=1 // pred_fallthru
      _
    // Predicated region
    $region38: #{esimcse_forward.1} parent=1 // pred_check
      _
    $region39: #{esimcse_forward.1} parent=1 // pred_check_branch
      %49 = sbr.rel (0) target = $region41
    $region40: #{esimcse_forward.1} parent=1 // pred_region
      _
    $region41: #{esimcse_forward.1} parent=1 // pred_fallthru
      _
    // Predicated region
    $region42: #{esimcse_forward.1} parent=1 // pred_check
      _
    $region43: #{esimcse_forward.1} parent=1 // pred_check_branch
      %51 = sbr.rel (0) target = $region45
    $region44: #{esimcse_forward.1} parent=1 // pred_region
      _
    $region45: #{esimcse_forward.1} parent=1 // pred_fallthru
      _
    // Predicated region
    $region46: #{esimcse_forward.1} parent=1 // pred_check
      _
    $region47: #{esimcse_forward.1} parent=1 // pred_check_branch
      %53 = sbr.rel (0) target = $region49
    $region48: #{esimcse_forward.1} parent=1 // pred_region
      _
    $region49: #{esimcse_forward.1} parent=1 // pred_fallthru
      _
    // Predicated region
    $region50: #{esimcse_forward.1} parent=1 // pred_check
      _
    $region51: #{esimcse_forward.1} parent=1 // pred_check_branch
      %55 = sbr.rel (0) target = $region53
    $region52: #{esimcse_forward.1} parent=1 // pred_region
      _
    $region53: #{esimcse_forward.1} parent=1 // pred_fallthru
      _
    // Predicated region
    $region54: #{esimcse_forward.1} parent=1 // pred_check
      _
    $region55: #{esimcse_forward.1} parent=1 // pred_check_branch
      %57 = sbr.rel (0) target = $region57
    $region56: #{esimcse_forward.1} parent=1 // pred_region
      _
    $region57: #{esimcse_forward.1} parent=1 // pred_fallthru
      _
    // Predicated region
    $region58: #{esimcse_forward.1} parent=1 // pred_check
      _
    $region59: #{esimcse_forward.1} parent=1 // pred_check_branch
      %59 = sbr.rel (0) target = $region61
    $region60: #{esimcse_forward.1} parent=1 // pred_region
      _
    $region61: #{esimcse_forward.1} parent=1 // pred_fallthru
      _
    // Predicated region
    $region62: #{esimcse_forward.1} parent=1 // pred_check
      _
    $region63: #{esimcse_forward.1} parent=1 // pred_check_branch
      %61 = sbr.rel (0) target = $region65
    $region64: #{esimcse_forward.1} parent=1 // pred_region
      %s63 = ssub.s32 32, 32
      %64 = vsyncadd [#allocation3], %s63
      %s65 = sshll.u32 [#allocation2], 4
      %s66 = int_to_ptr.vmem [resolvable:$true] %s65
      %71 = dma.hbm_to_vmem [thread:$0]  %s15, 32, %s66, [#allocation3], 16, 16, 1
    $region65: #{esimcse_forward.1} parent=1 // pred_fallthru
      _
    // Predicated region
    $region66: #{esimcse_forward.1} parent=1 // pred_check
      _
    $region67: #{esimcse_forward.1} parent=1 // pred_check_branch
      %73 = sbr.rel (0) target = $region69
    $region68: #{esimcse_forward.1} parent=1 // pred_region
      _
    $region69: #{esimcse_forward.1} parent=1 // pred_fallthru
      _
    // Predicated region
    $region70: #{esimcse_forward.1} parent=1 // pred_check
      _
    $region71: #{esimcse_forward.1} parent=1 // pred_check_branch
      %75 = sbr.rel (0) target = $region73
    $region72: #{esimcse_forward.1} parent=1 // pred_region
      %s77 = ssub.s32 32, 32
      %78 = vsyncadd [#allocation6], %s77
      %s79 = sshll.u32 [#allocation5], 4
      %s80 = int_to_ptr.vmem [resolvable:$true] %s79
      %85 = dma.hbm_to_vmem [thread:$0]  %s17, 32, %s80, [#allocation6], 16, 16, 1
    $region73: #{esimcse_forward.1} parent=1 // pred_fallthru
      _
    // Predicated region
    $region74: #{esimcse_forward.1} parent=1 // pred_check
      _
    $region75: #{esimcse_forward.1} parent=1 // pred_check_branch
      %87 = sbr.rel (0) target = $region77
    $region76: #{esimcse_forward.1} parent=1 // pred_region
      _
    $region77: #{esimcse_forward.1} parent=1 // pred_fallthru
      _
    // Predicated region
    $region78: #{esimcse_forward.1} parent=1 // pred_check
      _
    $region79: #{esimcse_forward.1} parent=1 // pred_check_branch
      %89 = sbr.rel (0) target = $region81
    $region80: #{esimcse_forward.1} parent=1 // pred_region
      _
    $region81: #{esimcse_forward.1} parent=1 // pred_fallthru
      _
    // Predicated region
    $region82: #{esimcse_forward.1} parent=1 // pred_check
      _
    $region83: #{esimcse_forward.1} parent=1 // pred_check_branch
      %91 = sbr.rel (0) target = $region85
    $region84: #{esimcse_forward.1} parent=1 // pred_region
      _
    $region85: #{esimcse_forward.1} parent=1 // pred_fallthru
      _
    // Predicated region
    $region86: #{esimcse_forward.1} parent=1 // pred_check
      _
    $region87: #{esimcse_forward.1} parent=1 // pred_check_branch
      %93 = sbr.rel (0) target = $region89
    $region88: #{esimcse_forward.1} parent=1 // pred_region
      _
    $region89: #{esimcse_forward.1} parent=1 // pred_fallthru
      _
    // Predicated region
    $region90: #{esimcse_forward.1} parent=1 // pred_check
      _
    $region91: #{esimcse_forward.1} parent=1 // pred_check_branch
      %95 = sbr.rel (0) target = $region93
    $region92: #{esimcse_forward.1} parent=1 // pred_region
      %96 = dma.done [#allocation3], 32
    $region93: #{esimcse_forward.1} parent=1 // pred_fallthru
      _
    // Predicated region
    $region94: #{esimcse_forward.1} parent=1 // pred_check
      _
    $region95: #{esimcse_forward.1} parent=1 // pred_check_branch
      %98 = sbr.rel (0) target = $region97
    $region96: #{esimcse_forward.1} parent=1 // pred_region
      %99 = dma.done [#allocation6], 32
    $region97: #{esimcse_forward.1} parent=1 // pred_fallthru
      _
    %v101 = vld [vmem:[%s0] sm:$0xff]
    %v102 = vld [vmem:[%s0 + $0x8] sm:$0xff]
    %v103 = vld [vmem:[%s1] sm:$0xff]
    %v104 = vld [vmem:[%s1 + $0x8] sm:$0xff]
    %v105 = vlaneseq
    %v106 = vand.u32 %v105, 127
    %107 = vset.pattern.permute.xlu0 0
    %108 = vperm.xlu0 %107, %v101
    %v109 = vpop.permute.xlu0 %108
    %110 = vset.pattern.permute.xlu0 0
    %111 = vperm.xlu0 %110, %v102
    %v112 = vpop.permute.xlu0 %111
    %vm113 = vcmp.eq.s32.totalorder %v106, %v109
    %vm114 = vcmp.eq.s32.totalorder %v106, %v112
    %v115 = vsel %vm113, 1, 0
    %v116 = vsel %vm114, 1, 0
    %v117 = vcvt.s32.f32 %v115
    %v118 = vcvt.s32.f32 %v116
    %v119 = vpack.c.bf16 %v118, %v117
    %120 = vset.pattern.permute.xlu0 0
    %121 = vperm.xlu0 %120, %v103
    %v122 = vpop.permute.xlu0 %121
    %123 = vset.pattern.permute.xlu0 0
    %124 = vperm.xlu0 %123, %v104
    %v125 = vpop.permute.xlu0 %124
    %vm126 = vcmp.eq.s32.totalorder %v106, %v122
    %vm127 = vcmp.eq.s32.totalorder %v106, %v125
    %v128 = vsel %vm126, 1, 0
    %v129 = vsel %vm127, 1, 0
    %v130 = vcvt.s32.f32 %v128
    %v131 = vcvt.s32.f32 %v129
    %v132 = vpack.c.bf16 %v131, %v130
    %v133 = vld [vmem:[%s3] sm:$0xf]
    %v134 = vld [vmem:[%s3 + $0x4] sm:$0xf]
    %v135 = vld [vmem:[%s3 + $0x8] sm:$0xf]
    %v136 = vld [vmem:[%s3 + $0xc] sm:$0xf]
    %v137 = vld [vmem:[%s3 + $0x10] sm:$0xf]
    %v138 = vld [vmem:[%s3 + $0x14] sm:$0xf]
    %v139 = vld [vmem:[%s3 + $0x18] sm:$0x1]
    %v140 = vld [vmem:[%s5] sm:$0x1]
    %vm141 = vcmask 15360
    %v143 = vsel %vm141, %v132, 0
    %vm145 = vcmask 1040384
    %v147 = vsel %vm145, %v140, 0
    %149 = vmatprep.subr.bf16.mxu0 0
    %150 = vmatpush1.bf16.msra.mxu0 %v147
    %151 = vmatprep.subr.bf16.mxu0 0
    %152 = vmatpush1.bf16.msra.mxu0 0
    %153 = vmatprep.subr.bf16.mxu0 0
    %154 = vmatpush1.bf16.msra.mxu0 0
    %155 = vmatprep.subr.bf16.mxu0 0
    %156 = vmatpush1.bf16.msra.mxu0 0
    %157 = vmatprep.subr.bf16.mxu0 0
    %158 = vmatpush1.bf16.msra.mxu0 0
    %159 = vmatprep.subr.bf16.mxu0 0
    %160 = vmatpush1.bf16.msra.mxu0 0
    %161 = vmatprep.subr.bf16.mxu0 0
    %162 = vmatpush1.bf16.msra.mxu0 0
    %163 = vmatprep.subr.bf16.mxu0 0
    %164 = vmatpush1.bf16.msra.mxu0 0
    %165 = vmatprep.subr.bf16.mxu0 0
    %166 = vmatpush1.bf16.msra.mxu0 0
    %167 = vmatprep.subr.bf16.mxu0 0
    %168 = vmatpush1.bf16.msra.mxu0 0
    %169 = vmatprep.subr.bf16.mxu0 0
    %170 = vmatpush1.bf16.msra.mxu0 0
    %171 = vmatprep.subr.bf16.mxu0 0
    %172 = vmatpush1.bf16.msra.mxu0 0
    %173 = vmatprep.subr.bf16.mxu0 0
    %174 = vmatpush1.bf16.msra.mxu0 0
    %175 = vmatprep.subr.bf16.mxu0 0
    %176 = vmatpush1.bf16.msra.mxu0 0
    %177 = vmatprep.subr.bf16.mxu0 0
    %178 = vmatpush1.bf16.msra.mxu0 0
    %179 = vmatprep.subr.bf16.mxu0 0
    %180 = vmatpush1.bf16.msra.mxu0 0
    %181 = vmatprep.mubr.bf16.mxu0 0
    %182 = vmatmul.mubr.bf16.gmra.mrb[0].mxu0 %v143
    %v183 = vpop.f32.mrb[0].mxu0
    %v184 = vadd.f32 0.0, %v183
    %v185 = vpop.f32.mrb[0].mxu0
    %v186 = vpop.f32.mrb[0].mxu0
    %v187 = vadd.f32 0.0, %v186
    %v188 = vpop.f32.mrb[0].mxu0
    %189 = vdwg.mxu0
    %v197 = vunpack.c.l.b16 %v133
    %v198 = vunpack.c.l.b16 %v134
    %v199 = vunpack.c.l.b16 %v135
    %v200 = vunpack.c.l.b16 %v136
    %v201 = vunpack.c.l.b16 %v137
    %v202 = vunpack.c.l.b16 %v138
    %v203 = vunpack.c.l.b16 %v139
    %v204 = vpack.c.b16 %v198, %v197
    %v205 = vpack.c.b16 %v200, %v199
    %v206 = vpack.c.b16 %v202, %v201
    %v207 = vpack.c.b16 %v203, %v203
    %vm211 = vcmask 408576
    %v213 = vsel %vm211, %v119, 0
    %v216 = vsel %vm145, %v207, 0
    %218 = vmatprep.subr.bf16.mxu0 0
    %219 = vmatpush1.bf16.msra.mxu0 %v204
    %220 = vmatprep.subr.bf16.mxu0 0
    %221 = vmatpush1.bf16.msra.mxu0 %v205
    %222 = vmatprep.subr.bf16.mxu0 0
    %223 = vmatpush1.bf16.msra.mxu0 %v206
    %224 = vmatprep.subr.bf16.mxu0 0
    %225 = vmatpush1.bf16.msra.mxu0 %v216
    %226 = vmatprep.subr.bf16.mxu0 0
    %227 = vmatpush1.bf16.msra.mxu0 0
    %228 = vmatprep.subr.bf16.mxu0 0
    %229 = vmatpush1.bf16.msra.mxu0 0
    %230 = vmatprep.subr.bf16.mxu0 0
    %231 = vmatpush1.bf16.msra.mxu0 0
    %232 = vmatprep.subr.bf16.mxu0 0
    %233 = vmatpush1.bf16.msra.mxu0 0
    %234 = vmatprep.subr.bf16.mxu0 0
    %235 = vmatpush1.bf16.msra.mxu0 0
    %236 = vmatprep.subr.bf16.mxu0 0
    %237 = vmatpush1.bf16.msra.mxu0 0
    %238 = vmatprep.subr.bf16.mxu0 0
    %239 = vmatpush1.bf16.msra.mxu0 0
    %240 = vmatprep.subr.bf16.mxu0 0
    %241 = vmatpush1.bf16.msra.mxu0 0
    %242 = vmatprep.subr.bf16.mxu0 0
    %243 = vmatpush1.bf16.msra.mxu0 0
    %244 = vmatprep.subr.bf16.mxu0 0
    %245 = vmatpush1.bf16.msra.mxu0 0
    %246 = vmatprep.subr.bf16.mxu0 0
    %247 = vmatpush1.bf16.msra.mxu0 0
    %248 = vmatprep.subr.bf16.mxu0 0
    %249 = vmatpush1.bf16.msra.mxu0 0
    %250 = vmatprep.mubr.bf16.mxu0 0
    %251 = vmatmul.mubr.bf16.gmra.mrb[0].mxu0 %v213
    %v252 = vpop.f32.mrb[0].mxu0
    %v253 = vadd.f32 %v184, %v252
    %v254 = vpop.f32.mrb[0].mxu0
    %v255 = vpop.f32.mrb[0].mxu0
    %v256 = vadd.f32 %v187, %v255
    %v257 = vpop.f32.mrb[0].mxu0
    %258 = vdwg.mxu0
    %v259 = vld [vmem:[%s4] sm:$0xf]
    %v260 = vunpack.c.l.bf16 %v259
    %v261 = vadd.f32 %v253, %v260
    %v262 = vadd.f32 %v256, %v260
    %v263 = vld [vmem:[%s6] sm:$0x1]
    %v264 = vld [vmem:[%s7] sm:$0x1]
    %vm265 = vcmask 261120
    %v266 = vsel %vm265, %v261, 0.0
    %267 = vadd.xlane.f32.xlu0 %v266
    %v268 = vpop.xlane.xlu0 %267
    %v269 = vsel %vm265, %v262, 0.0
    %270 = vadd.xlane.f32.xlu0 %v269
    %v271 = vpop.xlane.xlu0 %270
    %v272 = vrcp.pop 32.0
    %v273 = vmul.f32 %v268, %v272
    %v274 = vmul.f32 %v271, %v272
    %v275 = vsub.f32 %v261, %v273
    %v276 = vsub.f32 %v262, %v274
    %v277 = vmul.f32 %v275, %v275
    %v278 = vmul.f32 %v276, %v276
    %v279 = vsel %vm265, %v277, 0.0
    %280 = vadd.xlane.f32.xlu0 %v279
    %v281 = vpop.xlane.xlu0 %280
    %v282 = vsel %vm265, %v278, 0.0
    %283 = vadd.xlane.f32.xlu0 %v282
    %v284 = vpop.xlane.xlu0 %283
    %v285 = vmul.f32 %v281, %v272
    %v286 = vmul.f32 %v284, %v272
    %v287 = vadd.f32 %v285, 1e-12
    %v288 = vadd.f32 %v286, 1e-12
    %v289 = vrsqrt.pop %v287
    %v290 = vrsqrt.pop %v288
    %v291 = vmul.f32 %v275, %v289
    %v292 = vmul.f32 %v276, %v290
    %v294 = vlaneseq
    %v295 = vshrl.u32 %v294, 7
    %v296 = vsub.s32 0, %v295
    %v297 = vrot.slane %v263, %v296
    %v299 = vmul.f32 %v291, %v297
    %v300 = vmul.f32 %v292, %v297
    %v302 = vlaneseq
    %v303 = vshrl.u32 %v302, 7
    %v304 = vsub.s32 0, %v303
    %v305 = vrot.slane %v264, %v304
    %v307 = vadd.f32 %v299, %v305
    %v308 = vadd.f32 %v300, %v305
    %v309 = vld [vmem:[%s2] sm:$0x3]
    %v310 = vcvt.s32.f32 %v309
    %v311 = vsub.f32 1.0, %v310
    %v312 = vmul.f32 %v311, -10000.0
    %v313 = vlaneseq
    %v314 = vshrl.u32 %v313, 7
    %v315 = vsub.s32 0, %v314
    %v316 = vrot.slane %v312, %v315
    %v317 = vlaneseq
    %v318 = vshrl.u32 %v317, 7
    %v319 = vsub.s32 1, %v318
    %v320 = vrot.slane %v312, %v319
    %v321 = vpack.c.bf16 %v308, %v307
    %v322 = vld [vmem:[%s8] sm:$0xf]
    %v323 = vld [vmem:[%s8 + $0x4] sm:$0xf]
    %v324 = vld [vmem:[%s8 + $0x8] sm:$0xf]
    %v325 = vld [vmem:[%s8 + $0xc] sm:$0xf]
    %v326 = vld [vmem:[%s9] sm:$0x1]
    %v328 = vlaneseq
    %v329 = vshrl.u32 %v328, 7
    %v330 = vsub.s32 0, %v329
    %v331 = vrot.slane %v326, %v330
    %v337 = vunpack.c.l.b16 %v322
    %v338 = vunpack.c.l.b16 %v323
    %v339 = vunpack.c.l.b16 %v324
    %v340 = vunpack.c.l.b16 %v325
    %v341 = vpack.c.b16 %v338, %v337
    %v342 = vpack.c.b16 %v340, %v339
    %v346 = vsel %vm265, %v321, 0
    %348 = vmatprep.subr.bf16.mxu0 0
    %349 = vmatpush1.bf16.msra.mxu0 %v341
    %350 = vmatprep.subr.bf16.mxu0 0
    %351 = vmatpush1.bf16.msra.mxu0 %v342
    %352 = vmatprep.subr.bf16.mxu0 0
    %353 = vmatpush1.bf16.msra.mxu0 0
    %354 = vmatprep.subr.bf16.mxu0 0
    %355 = vmatpush1.bf16.msra.mxu0 0
    %356 = vmatprep.subr.bf16.mxu0 0
    %357 = vmatpush1.bf16.msra.mxu0 0
    %358 = vmatprep.subr.bf16.mxu0 0
    %359 = vmatpush1.bf16.msra.mxu0 0
    %360 = vmatprep.subr.bf16.mxu0 0
    %361 = vmatpush1.bf16.msra.mxu0 0
    %362 = vmatprep.subr.bf16.mxu0 0
    %363 = vmatpush1.bf16.msra.mxu0 0
    %364 = vmatprep.subr.bf16.mxu0 0
    %365 = vmatpush1.bf16.msra.mxu0 0
    %366 = vmatprep.subr.bf16.mxu0 0
    %367 = vmatpush1.bf16.msra.mxu0 0
    %368 = vmatprep.subr.bf16.mxu0 0
    %369 = vmatpush1.bf16.msra.mxu0 0
    %370 = vmatprep.subr.bf16.mxu0 0
    %371 = vmatpush1.bf16.msra.mxu0 0
    %372 = vmatprep.subr.bf16.mxu0 0
    %373 = vmatpush1.bf16.msra.mxu0 0
    %374 = vmatprep.subr.bf16.mxu0 0
    %375 = vmatpush1.bf16.msra.mxu0 0
    %376 = vmatprep.subr.bf16.mxu0 0
    %377 = vmatpush1.bf16.msra.mxu0 0
    %378 = vmatprep.subr.bf16.mxu0 0
    %379 = vmatpush1.bf16.msra.mxu0 0
    %380 = vmatprep.mubr.bf16.mxu0 0
    %381 = vmatmul.mubr.bf16.gmra.mrb[0].mxu0 %v346
    %v382 = vpop.f32.mrb[0].mxu0
    %v383 = vadd.f32 %v331, %v382
    %v384 = vpop.f32.mrb[0].mxu0
    %v385 = vpop.f32.mrb[0].mxu0
    %v386 = vadd.f32 %v331, %v385
    %v387 = vpop.f32.mrb[0].mxu0
    %388 = vdwg.mxu0
    %v389 = vmul.f32 %v383, 0.25
    %v390 = vmul.f32 %v386, 0.25
    %392 = vrot.lane.b32.xlu0 %v383, 96
    %v393 = vpop.permute.xlu0 %392
    %vm394 = vcmask 130048
    %v396 = vsel %vm394, %v389, 0
    %v398 = vsel %vm394, %v393, 0
    %400 = vmatprep.subr.mxu0 0.0
    %401 = vmatpush1.xpose.msra.mxu0 %v398
    %402 = vmatprep.subr.mxu0 0.0
    %403 = vmatpush1.xpose.msra.mxu0 0.0
    %404 = vmatprep.subr.mxu0 0.0
    %405 = vmatpush1.xpose.msra.mxu0 0.0
    %406 = vmatprep.subr.mxu0 0.0
    %407 = vmatpush1.xpose.msra.mxu0 0.0
    %408 = vmatprep.subr.mxu0 0.0
    %409 = vmatpush1.xpose.msra.mxu0 0.0
    %410 = vmatprep.subr.mxu0 0.0
    %411 = vmatpush1.xpose.msra.mxu0 0.0
    %412 = vmatprep.subr.mxu0 0.0
    %413 = vmatpush1.xpose.msra.mxu0 0.0
    %414 = vmatprep.subr.mxu0 0.0
    %415 = vmatpush1.xpose.msra.mxu0 0.0
    %416 = vmatprep.subr.mxu0 0.0
    %417 = vmatpush1.xpose.msra.mxu0 0.0
    %418 = vmatprep.subr.mxu0 0.0
    %419 = vmatpush1.xpose.msra.mxu0 0.0
    %420 = vmatprep.subr.mxu0 0.0
    %421 = vmatpush1.xpose.msra.mxu0 0.0
    %422 = vmatprep.subr.mxu0 0.0
    %423 = vmatpush1.xpose.msra.mxu0 0.0
    %424 = vmatprep.subr.mxu0 0.0
    %425 = vmatpush1.xpose.msra.mxu0 0.0
    %426 = vmatprep.subr.mxu0 0.0
    %427 = vmatpush1.xpose.msra.mxu0 0.0
    %428 = vmatprep.subr.mxu0 0.0
    %429 = vmatpush1.xpose.msra.mxu0 0.0
    %430 = vmatprep.subr.mxu0 0.0
    %431 = vmatpush1.xpose.msra.mxu0 0.0
    %432 = vmatprep.subr.mxu0 0.0
    %433 = vmatpush1.xpose.msra.mxu0 0.0
    %434 = vmatprep.subr.mxu0 0.0
    %435 = vmatpush1.xpose.msra.mxu0 0.0
    %436 = vmatprep.subr.mxu0 0.0
    %437 = vmatpush1.xpose.msra.mxu0 0.0
    %438 = vmatprep.subr.mxu0 0.0
    %439 = vmatpush1.xpose.msra.mxu0 0.0
    %440 = vmatprep.subr.mxu0 0.0
    %441 = vmatpush1.xpose.msra.mxu0 0.0
    %442 = vmatprep.subr.mxu0 0.0
    %443 = vmatpush1.xpose.msra.mxu0 0.0
    %444 = vmatprep.subr.mxu0 0.0
    %445 = vmatpush1.xpose.msra.mxu0 0.0
    %446 = vmatprep.subr.mxu0 0.0
    %447 = vmatpush1.xpose.msra.mxu0 0.0
    %448 = vmatprep.subr.mxu0 0.0
    %449 = vmatpush1.xpose.msra.mxu0 0.0
    %450 = vmatprep.subr.mxu0 0.0
    %451 = vmatpush1.xpose.msra.mxu0 0.0
    %452 = vmatprep.subr.mxu0 0.0
    %453 = vmatpush1.xpose.msra.mxu0 0.0
    %454 = vmatprep.subr.mxu0 0.0
    %455 = vmatpush1.xpose.msra.mxu0 0.0
    %456 = vmatprep.subr.mxu0 0.0
    %457 = vmatpush1.xpose.msra.mxu0 0.0
    %458 = vmatprep.subr.mxu0 0.0
    %459 = vmatpush1.xpose.msra.mxu0 0.0
    %460 = vmatprep.subr.mxu0 0.0
    %461 = vmatpush1.xpose.msra.mxu0 0.0
    %462 = vmatprep.subr.mxu0 0.0
    %463 = vmatpush1.xpose.msra.mxu0 0.0
    %464 = vmatprep.mubr.f32.mxu0 0.0
    %465 = vmatmul.mubr.f32.gmra.mrb[0].mxu0 %v396
    %v466 = vpop.f32.mrb[0].mxu0
    %v467 = vadd.f32 %v316, %v466
    %v468 = vpop.f32.mrb[0].mxu0
    %469 = vdwg.mxu0
    %vm470 = vcmask 64512
    %v471 = vsel %vm470, %v467, -inf
    %472 = vmax.xlane.f32.xlu0 %v471
    %v473 = vpop.xlane.xlu0 %472
    %v474 = vsub.f32 %v467, %v473
    %v475 = vmul.f32 %v474, 1.442695
    %v476 = vpow.pop %v475
    %v477 = vsel %vm470, %v476, 0.0
    %478 = vadd.xlane.f32.xlu0 %v477
    %v479 = vpop.xlane.xlu0 %478
    %v480 = vrcp.pop %v479
    %v481 = vmul.f32 %v476, %v480
    %482 = vrot.lane.b32.xlu0 %v383, 64
    %v483 = vpop.permute.xlu0 %482
    %v486 = vsel %vm470, %v481, 0
    %488 = vmatprep.subr.mxu0 0.0
    %489 = vmatpush1.msra.mxu0 %v483
    %490 = vmatprep.subr.mxu0 0.0
    %491 = vmatpush1.msra.mxu0 0.0
    %492 = vmatprep.subr.mxu0 0.0
    %493 = vmatpush1.msra.mxu0 0.0
    %494 = vmatprep.subr.mxu0 0.0
    %495 = vmatpush1.msra.mxu0 0.0
    %496 = vmatprep.subr.mxu0 0.0
    %497 = vmatpush1.msra.mxu0 0.0
    %498 = vmatprep.subr.mxu0 0.0
    %499 = vmatpush1.msra.mxu0 0.0
    %500 = vmatprep.subr.mxu0 0.0
    %501 = vmatpush1.msra.mxu0 0.0
    %502 = vmatprep.subr.mxu0 0.0
    %503 = vmatpush1.msra.mxu0 0.0
    %504 = vmatprep.subr.mxu0 0.0
    %505 = vmatpush1.msra.mxu0 0.0
    %506 = vmatprep.subr.mxu0 0.0
    %507 = vmatpush1.msra.mxu0 0.0
    %508 = vmatprep.subr.mxu0 0.0
    %509 = vmatpush1.msra.mxu0 0.0
    %510 = vmatprep.subr.mxu0 0.0
    %511 = vmatpush1.msra.mxu0 0.0
    %512 = vmatprep.subr.mxu0 0.0
    %513 = vmatpush1.msra.mxu0 0.0
    %514 = vmatprep.subr.mxu0 0.0
    %515 = vmatpush1.msra.mxu0 0.0
    %516 = vmatprep.subr.mxu0 0.0
    %517 = vmatpush1.msra.mxu0 0.0
    %518 = vmatprep.subr.mxu0 0.0
    %519 = vmatpush1.msra.mxu0 0.0
    %520 = vmatprep.subr.mxu0 0.0
    %521 = vmatpush1.msra.mxu0 0.0
    %522 = vmatprep.subr.mxu0 0.0
    %523 = vmatpush1.msra.mxu0 0.0
    %524 = vmatprep.subr.mxu0 0.0
    %525 = vmatpush1.msra.mxu0 0.0
    %526 = vmatprep.subr.mxu0 0.0
    %527 = vmatpush1.msra.mxu0 0.0
    %528 = vmatprep.subr.mxu0 0.0
    %529 = vmatpush1.msra.mxu0 0.0
    %530 = vmatprep.subr.mxu0 0.0
    %531 = vmatpush1.msra.mxu0 0.0
    %532 = vmatprep.subr.mxu0 0.0
    %533 = vmatpush1.msra.mxu0 0.0
    %534 = vmatprep.subr.mxu0 0.0
    %535 = vmatpush1.msra.mxu0 0.0
    %536 = vmatprep.subr.mxu0 0.0
    %537 = vmatpush1.msra.mxu0 0.0
    %538 = vmatprep.subr.mxu0 0.0
    %539 = vmatpush1.msra.mxu0 0.0
    %540 = vmatprep.subr.mxu0 0.0
    %541 = vmatpush1.msra.mxu0 0.0
    %542 = vmatprep.subr.mxu0 0.0
    %543 = vmatpush1.msra.mxu0 0.0
    %544 = vmatprep.subr.mxu0 0.0
    %545 = vmatpush1.msra.mxu0 0.0
    %546 = vmatprep.subr.mxu0 0.0
    %547 = vmatpush1.msra.mxu0 0.0
    %548 = vmatprep.subr.mxu0 0.0
    %549 = vmatpush1.msra.mxu0 0.0
    %550 = vmatprep.subr.mxu0 0.0
    %551 = vmatpush1.msra.mxu0 0.0
    %552 = vmatprep.mubr.f32.mxu0 0.0
    %553 = vmatmul.mubr.f32.gmra.mrb[0].mxu0 %v486
    %v554 = vpop.f32.mrb[0].mxu0
    %v555 = vadd.f32 0.0, %v554
    %v556 = vpop.f32.mrb[0].mxu0
    %557 = vdwg.mxu0
    %558 = vrot.lane.b32.xlu0 %v389, 112
    %v559 = vpop.permute.xlu0 %558
    %560 = vrot.lane.b32.xlu0 %v383, 80
    %v561 = vpop.permute.xlu0 %560
    %v562 = vsel %vm394, %v559, 0
    %v564 = vsel %vm394, %v561, 0
    %566 = vmatprep.subr.mxu0 0.0
    %567 = vmatpush1.xpose.msra.mxu0 %v564
    %568 = vmatprep.subr.mxu0 0.0
    %569 = vmatpush1.xpose.msra.mxu0 0.0
    %570 = vmatprep.subr.mxu0 0.0
    %571 = vmatpush1.xpose.msra.mxu0 0.0
    %572 = vmatprep.subr.mxu0 0.0
    %573 = vmatpush1.xpose.msra.mxu0 0.0
    %574 = vmatprep.subr.mxu0 0.0
    %575 = vmatpush1.xpose.msra.mxu0 0.0
    %576 = vmatprep.subr.mxu0 0.0
    %577 = vmatpush1.xpose.msra.mxu0 0.0
    %578 = vmatprep.subr.mxu0 0.0
    %579 = vmatpush1.xpose.msra.mxu0 0.0
    %580 = vmatprep.subr.mxu0 0.0
    %581 = vmatpush1.xpose.msra.mxu0 0.0
    %582 = vmatprep.subr.mxu0 0.0
    %583 = vmatpush1.xpose.msra.mxu0 0.0
    %584 = vmatprep.subr.mxu0 0.0
    %585 = vmatpush1.xpose.msra.mxu0 0.0
    %586 = vmatprep.subr.mxu0 0.0
    %587 = vmatpush1.xpose.msra.mxu0 0.0
    %588 = vmatprep.subr.mxu0 0.0
    %589 = vmatpush1.xpose.msra.mxu0 0.0
    %590 = vmatprep.subr.mxu0 0.0
    %591 = vmatpush1.xpose.msra.mxu0 0.0
    %592 = vmatprep.subr.mxu0 0.0
    %593 = vmatpush1.xpose.msra.mxu0 0.0
    %594 = vmatprep.subr.mxu0 0.0
    %595 = vmatpush1.xpose.msra.mxu0 0.0
    %596 = vmatprep.subr.mxu0 0.0
    %597 = vmatpush1.xpose.msra.mxu0 0.0
    %598 = vmatprep.subr.mxu0 0.0
    %599 = vmatpush1.xpose.msra.mxu0 0.0
    %600 = vmatprep.subr.mxu0 0.0
    %601 = vmatpush1.xpose.msra.mxu0 0.0
    %602 = vmatprep.subr.mxu0 0.0
    %603 = vmatpush1.xpose.msra.mxu0 0.0
    %604 = vmatprep.subr.mxu0 0.0
    %605 = vmatpush1.xpose.msra.mxu0 0.0
    %606 = vmatprep.subr.mxu0 0.0
    %607 = vmatpush1.xpose.msra.mxu0 0.0
    %608 = vmatprep.subr.mxu0 0.0
    %609 = vmatpush1.xpose.msra.mxu0 0.0
    %610 = vmatprep.subr.mxu0 0.0
    %611 = vmatpush1.xpose.msra.mxu0 0.0
    %612 = vmatprep.subr.mxu0 0.0
    %613 = vmatpush1.xpose.msra.mxu0 0.0
    %614 = vmatprep.subr.mxu0 0.0
    %615 = vmatpush1.xpose.msra.mxu0 0.0
    %616 = vmatprep.subr.mxu0 0.0
    %617 = vmatpush1.xpose.msra.mxu0 0.0
    %618 = vmatprep.subr.mxu0 0.0
    %619 = vmatpush1.xpose.msra.mxu0 0.0
    %620 = vmatprep.subr.mxu0 0.0
    %621 = vmatpush1.xpose.msra.mxu0 0.0
    %622 = vmatprep.subr.mxu0 0.0
    %623 = vmatpush1.xpose.msra.mxu0 0.0
    %624 = vmatprep.subr.mxu0 0.0
    %625 = vmatpush1.xpose.msra.mxu0 0.0
    %626 = vmatprep.subr.mxu0 0.0
    %627 = vmatpush1.xpose.msra.mxu0 0.0
    %628 = vmatprep.subr.mxu0 0.0
    %629 = vmatpush1.xpose.msra.mxu0 0.0
    %630 = vmatprep.mubr.f32.mxu0 0.0
    %631 = vmatmul.mubr.f32.gmra.mrb[0].mxu0 %v562
    %v632 = vpop.f32.mrb[0].mxu0
    %v633 = vadd.f32 %v316, %v632
    %v634 = vpop.f32.mrb[0].mxu0
    %635 = vdwg.mxu0
    %v636 = vsel %vm470, %v633, -inf
    %637 = vmax.xlane.f32.xlu0 %v636
    %v638 = vpop.xlane.xlu0 %637
    %v639 = vsub.f32 %v633, %v638
    %v640 = vmul.f32 %v639, 1.442695
    %v641 = vpow.pop %v640
    %v642 = vsel %vm470, %v641, 0.0
    %643 = vadd.xlane.f32.xlu0 %v642
    %v644 = vpop.xlane.xlu0 %643
    %v645 = vrcp.pop %v644
    %v646 = vmul.f32 %v641, %v645
    %647 = vrot.lane.b32.xlu0 %v383, 48
    %v648 = vpop.permute.xlu0 %647
    %v651 = vsel %vm470, %v646, 0
    %653 = vmatprep.subr.mxu0 0.0
    %654 = vmatpush1.msra.mxu0 %v648
    %655 = vmatprep.subr.mxu0 0.0
    %656 = vmatpush1.msra.mxu0 0.0
    %657 = vmatprep.subr.mxu0 0.0
    %658 = vmatpush1.msra.mxu0 0.0
    %659 = vmatprep.subr.mxu0 0.0
    %660 = vmatpush1.msra.mxu0 0.0
    %661 = vmatprep.subr.mxu0 0.0
    %662 = vmatpush1.msra.mxu0 0.0
    %663 = vmatprep.subr.mxu0 0.0
    %664 = vmatpush1.msra.mxu0 0.0
    %665 = vmatprep.subr.mxu0 0.0
    %666 = vmatpush1.msra.mxu0 0.0
    %667 = vmatprep.subr.mxu0 0.0
    %668 = vmatpush1.msra.mxu0 0.0
    %669 = vmatprep.subr.mxu0 0.0
    %670 = vmatpush1.msra.mxu0 0.0
    %671 = vmatprep.subr.mxu0 0.0
    %672 = vmatpush1.msra.mxu0 0.0
    %673 = vmatprep.subr.mxu0 0.0
    %674 = vmatpush1.msra.mxu0 0.0
    %675 = vmatprep.subr.mxu0 0.0
    %676 = vmatpush1.msra.mxu0 0.0
    %677 = vmatprep.subr.mxu0 0.0
    %678 = vmatpush1.msra.mxu0 0.0
    %679 = vmatprep.subr.mxu0 0.0
    %680 = vmatpush1.msra.mxu0 0.0
    %681 = vmatprep.subr.mxu0 0.0
    %682 = vmatpush1.msra.mxu0 0.0
    %683 = vmatprep.subr.mxu0 0.0
    %684 = vmatpush1.msra.mxu0 0.0
    %685 = vmatprep.subr.mxu0 0.0
    %686 = vmatpush1.msra.mxu0 0.0
    %687 = vmatprep.subr.mxu0 0.0
    %688 = vmatpush1.msra.mxu0 0.0
    %689 = vmatprep.subr.mxu0 0.0
    %690 = vmatpush1.msra.mxu0 0.0
    %691 = vmatprep.subr.mxu0 0.0
    %692 = vmatpush1.msra.mxu0 0.0
    %693 = vmatprep.subr.mxu0 0.0
    %694 = vmatpush1.msra.mxu0 0.0
    %695 = vmatprep.subr.mxu0 0.0
    %696 = vmatpush1.msra.mxu0 0.0
    %697 = vmatprep.subr.mxu0 0.0
    %698 = vmatpush1.msra.mxu0 0.0
    %699 = vmatprep.subr.mxu0 0.0
    %700 = vmatpush1.msra.mxu0 0.0
    %701 = vmatprep.subr.mxu0 0.0
    %702 = vmatpush1.msra.mxu0 0.0
    %703 = vmatprep.subr.mxu0 0.0
    %704 = vmatpush1.msra.mxu0 0.0
    %705 = vmatprep.subr.mxu0 0.0
    %706 = vmatpush1.msra.mxu0 0.0
    %707 = vmatprep.subr.mxu0 0.0
    %708 = vmatpush1.msra.mxu0 0.0
    %709 = vmatprep.subr.mxu0 0.0
    %710 = vmatpush1.msra.mxu0 0.0
    %711 = vmatprep.subr.mxu0 0.0
    %712 = vmatpush1.msra.mxu0 0.0
    %713 = vmatprep.subr.mxu0 0.0
    %714 = vmatpush1.msra.mxu0 0.0
    %715 = vmatprep.subr.mxu0 0.0
    %716 = vmatpush1.msra.mxu0 0.0
    %717 = vmatprep.mubr.f32.mxu0 0.0
    %718 = vmatmul.mubr.f32.gmra.mrb[0].mxu0 %v651
    %v719 = vpop.f32.mrb[0].mxu0
    %v720 = vadd.f32 0.0, %v719
    %v721 = vpop.f32.mrb[0].mxu0
    %722 = vdwg.mxu0
    %724 = vrot.lane.b32.xlu0 %v720, 16
    %v725 = vpop.permute.xlu0 %724
    %v727 = vsel %vm394, %v555, %v725
    %729 = vrot.lane.b32.xlu0 %v386, 96
    %v730 = vpop.permute.xlu0 %729
    %v732 = vsel %vm394, %v390, 0
    %v734 = vsel %vm394, %v730, 0
    %736 = vmatprep.subr.mxu0 0.0
    %737 = vmatpush1.xpose.msra.mxu0 %v734
    %738 = vmatprep.subr.mxu0 0.0
    %739 = vmatpush1.xpose.msra.mxu0 0.0
    %740 = vmatprep.subr.mxu0 0.0
    %741 = vmatpush1.xpose.msra.mxu0 0.0
    %742 = vmatprep.subr.mxu0 0.0
    %743 = vmatpush1.xpose.msra.mxu0 0.0
    %744 = vmatprep.subr.mxu0 0.0
    %745 = vmatpush1.xpose.msra.mxu0 0.0
    %746 = vmatprep.subr.mxu0 0.0
    %747 = vmatpush1.xpose.msra.mxu0 0.0
    %748 = vmatprep.subr.mxu0 0.0
    %749 = vmatpush1.xpose.msra.mxu0 0.0
    %750 = vmatprep.subr.mxu0 0.0
    %751 = vmatpush1.xpose.msra.mxu0 0.0
    %752 = vmatprep.subr.mxu0 0.0
    %753 = vmatpush1.xpose.msra.mxu0 0.0
    %754 = vmatprep.subr.mxu0 0.0
    %755 = vmatpush1.xpose.msra.mxu0 0.0
    %756 = vmatprep.subr.mxu0 0.0
    %757 = vmatpush1.xpose.msra.mxu0 0.0
    %758 = vmatprep.subr.mxu0 0.0
    %759 = vmatpush1.xpose.msra.mxu0 0.0
    %760 = vmatprep.subr.mxu0 0.0
    %761 = vmatpush1.xpose.msra.mxu0 0.0
    %762 = vmatprep.subr.mxu0 0.0
    %763 = vmatpush1.xpose.msra.mxu0 0.0
    %764 = vmatprep.subr.mxu0 0.0
    %765 = vmatpush1.xpose.msra.mxu0 0.0
    %766 = vmatprep.subr.mxu0 0.0
    %767 = vmatpush1.xpose.msra.mxu0 0.0
    %768 = vmatprep.subr.mxu0 0.0
    %769 = vmatpush1.xpose.msra.mxu0 0.0
    %770 = vmatprep.subr.mxu0 0.0
    %771 = vmatpush1.xpose.msra.mxu0 0.0
    %772 = vmatprep.subr.mxu0 0.0
    %773 = vmatpush1.xpose.msra.mxu0 0.0
    %774 = vmatprep.subr.mxu0 0.0
    %775 = vmatpush1.xpose.msra.mxu0 0.0
    %776 = vmatprep.subr.mxu0 0.0
    %777 = vmatpush1.xpose.msra.mxu0 0.0
    %778 = vmatprep.subr.mxu0 0.0
    %779 = vmatpush1.xpose.msra.mxu0 0.0
    %780 = vmatprep.subr.mxu0 0.0
    %781 = vmatpush1.xpose.msra.mxu0 0.0
    %782 = vmatprep.subr.mxu0 0.0
    %783 = vmatpush1.xpose.msra.mxu0 0.0
    %784 = vmatprep.subr.mxu0 0.0
    %785 = vmatpush1.xpose.msra.mxu0 0.0
    %786 = vmatprep.subr.mxu0 0.0
    %787 = vmatpush1.xpose.msra.mxu0 0.0
    %788 = vmatprep.subr.mxu0 0.0
    %789 = vmatpush1.xpose.msra.mxu0 0.0
    %790 = vmatprep.subr.mxu0 0.0
    %791 = vmatpush1.xpose.msra.mxu0 0.0
    %792 = vmatprep.subr.mxu0 0.0
    %793 = vmatpush1.xpose.msra.mxu0 0.0
    %794 = vmatprep.subr.mxu0 0.0
    %795 = vmatpush1.xpose.msra.mxu0 0.0
    %796 = vmatprep.subr.mxu0 0.0
    %797 = vmatpush1.xpose.msra.mxu0 0.0
    %798 = vmatprep.subr.mxu0 0.0
    %799 = vmatpush1.xpose.msra.mxu0 0.0
    %800 = vmatprep.mubr.f32.mxu0 0.0
    %801 = vmatmul.mubr.f32.gmra.mrb[0].mxu0 %v732
    %v802 = vpop.f32.mrb[0].mxu0
    %v803 = vadd.f32 %v320, %v802
    %v804 = vpop.f32.mrb[0].mxu0
    %805 = vdwg.mxu0
    %v806 = vsel %vm470, %v803, -inf
    %807 = vmax.xlane.f32.xlu0 %v806
    %v808 = vpop.xlane.xlu0 %807
    %v809 = vsub.f32 %v803, %v808
    %v810 = vmul.f32 %v809, 1.442695
    %v811 = vpow.pop %v810
    %v812 = vsel %vm470, %v811, 0.0
    %813 = vadd.xlane.f32.xlu0 %v812
    %v814 = vpop.xlane.xlu0 %813
    %v815 = vrcp.pop %v814
    %v816 = vmul.f32 %v811, %v815
    %817 = vrot.lane.b32.xlu0 %v386, 64
    %v818 = vpop.permute.xlu0 %817
    %v821 = vsel %vm470, %v816, 0
    %823 = vmatprep.subr.mxu0 0.0
    %824 = vmatpush1.msra.mxu0 %v818
    %825 = vmatprep.subr.mxu0 0.0
    %826 = vmatpush1.msra.mxu0 0.0
    %827 = vmatprep.subr.mxu0 0.0
    %828 = vmatpush1.msra.mxu0 0.0
    %829 = vmatprep.subr.mxu0 0.0
    %830 = vmatpush1.msra.mxu0 0.0
    %831 = vmatprep.subr.mxu0 0.0
    %832 = vmatpush1.msra.mxu0 0.0
    %833 = vmatprep.subr.mxu0 0.0
    %834 = vmatpush1.msra.mxu0 0.0
    %835 = vmatprep.subr.mxu0 0.0
    %836 = vmatpush1.msra.mxu0 0.0
    %837 = vmatprep.subr.mxu0 0.0
    %838 = vmatpush1.msra.mxu0 0.0
    %839 = vmatprep.subr.mxu0 0.0
    %840 = vmatpush1.msra.mxu0 0.0
    %841 = vmatprep.subr.mxu0 0.0
    %842 = vmatpush1.msra.mxu0 0.0
    %843 = vmatprep.subr.mxu0 0.0
    %844 = vmatpush1.msra.mxu0 0.0
    %845 = vmatprep.subr.mxu0 0.0
    %846 = vmatpush1.msra.mxu0 0.0
    %847 = vmatprep.subr.mxu0 0.0
    %848 = vmatpush1.msra.mxu0 0.0
    %849 = vmatprep.subr.mxu0 0.0
    %850 = vmatpush1.msra.mxu0 0.0
    %851 = vmatprep.subr.mxu0 0.0
    %852 = vmatpush1.msra.mxu0 0.0
    %853 = vmatprep.subr.mxu0 0.0
    %854 = vmatpush1.msra.mxu0 0.0
    %855 = vmatprep.subr.mxu0 0.0
    %856 = vmatpush1.msra.mxu0 0.0
    %857 = vmatprep.subr.mxu0 0.0
    %858 = vmatpush1.msra.mxu0 0.0
    %859 = vmatprep.subr.mxu0 0.0
    %860 = vmatpush1.msra.mxu0 0.0
    %861 = vmatprep.subr.mxu0 0.0
    %862 = vmatpush1.msra.mxu0 0.0
    %863 = vmatprep.subr.mxu0 0.0
    %864 = vmatpush1.msra.mxu0 0.0
    %865 = vmatprep.subr.mxu0 0.0
    %866 = vmatpush1.msra.mxu0 0.0
    %867 = vmatprep.subr.mxu0 0.0
    %868 = vmatpush1.msra.mxu0 0.0
    %869 = vmatprep.subr.mxu0 0.0
    %870 = vmatpush1.msra.mxu0 0.0
    %871 = vmatprep.subr.mxu0 0.0
    %872 = vmatpush1.msra.mxu0 0.0
    %873 = vmatprep.subr.mxu0 0.0
    %874 = vmatpush1.msra.mxu0 0.0
    %875 = vmatprep.subr.mxu0 0.0
    %876 = vmatpush1.msra.mxu0 0.0
    %877 = vmatprep.subr.mxu0 0.0
    %878 = vmatpush1.msra.mxu0 0.0
    %879 = vmatprep.subr.mxu0 0.0
    %880 = vmatpush1.msra.mxu0 0.0
    %881 = vmatprep.subr.mxu0 0.0
    %882 = vmatpush1.msra.mxu0 0.0
    %883 = vmatprep.subr.mxu0 0.0
    %884 = vmatpush1.msra.mxu0 0.0
    %885 = vmatprep.subr.mxu0 0.0
    %886 = vmatpush1.msra.mxu0 0.0
    %887 = vmatprep.mubr.f32.mxu0 0.0
    %888 = vmatmul.mubr.f32.gmra.mrb[0].mxu0 %v821
    %v889 = vpop.f32.mrb[0].mxu0
    %v890 = vadd.f32 0.0, %v889
    %v891 = vpop.f32.mrb[0].mxu0
    %892 = vdwg.mxu0
    %893 = vrot.lane.b32.xlu0 %v390, 112
    %v894 = vpop.permute.xlu0 %893
    %895 = vrot.lane.b32.xlu0 %v386, 80
    %v896 = vpop.permute.xlu0 %895
    %v897 = vsel %vm394, %v894, 0
    %v899 = vsel %vm394, %v896, 0
    %901 = vmatprep.subr.mxu0 0.0
    %902 = vmatpush1.xpose.msra.mxu0 %v899
    %903 = vmatprep.subr.mxu0 0.0
    %904 = vmatpush1.xpose.msra.mxu0 0.0
    %905 = vmatprep.subr.mxu0 0.0
    %906 = vmatpush1.xpose.msra.mxu0 0.0
    %907 = vmatprep.subr.mxu0 0.0
    %908 = vmatpush1.xpose.msra.mxu0 0.0
    %909 = vmatprep.subr.mxu0 0.0
    %910 = vmatpush1.xpose.msra.mxu0 0.0
    %911 = vmatprep.subr.mxu0 0.0
    %912 = vmatpush1.xpose.msra.mxu0 0.0
    %913 = vmatprep.subr.mxu0 0.0
    %914 = vmatpush1.xpose.msra.mxu0 0.0
    %915 = vmatprep.subr.mxu0 0.0
    %916 = vmatpush1.xpose.msra.mxu0 0.0
    %917 = vmatprep.subr.mxu0 0.0
    %918 = vmatpush1.xpose.msra.mxu0 0.0
    %919 = vmatprep.subr.mxu0 0.0
    %920 = vmatpush1.xpose.msra.mxu0 0.0
    %921 = vmatprep.subr.mxu0 0.0
    %922 = vmatpush1.xpose.msra.mxu0 0.0
    %923 = vmatprep.subr.mxu0 0.0
    %924 = vmatpush1.xpose.msra.mxu0 0.0
    %925 = vmatprep.subr.mxu0 0.0
    %926 = vmatpush1.xpose.msra.mxu0 0.0
    %927 = vmatprep.subr.mxu0 0.0
    %928 = vmatpush1.xpose.msra.mxu0 0.0
    %929 = vmatprep.subr.mxu0 0.0
    %930 = vmatpush1.xpose.msra.mxu0 0.0
    %931 = vmatprep.subr.mxu0 0.0
    %932 = vmatpush1.xpose.msra.mxu0 0.0
    %933 = vmatprep.subr.mxu0 0.0
    %934 = vmatpush1.xpose.msra.mxu0 0.0
    %935 = vmatprep.subr.mxu0 0.0
    %936 = vmatpush1.xpose.msra.mxu0 0.0
    %937 = vmatprep.subr.mxu0 0.0
    %938 = vmatpush1.xpose.msra.mxu0 0.0
    %939 = vmatprep.subr.mxu0 0.0
    %940 = vmatpush1.xpose.msra.mxu0 0.0
    %941 = vmatprep.subr.mxu0 0.0
    %942 = vmatpush1.xpose.msra.mxu0 0.0
    %943 = vmatprep.subr.mxu0 0.0
    %944 = vmatpush1.xpose.msra.mxu0 0.0
    %945 = vmatprep.subr.mxu0 0.0
    %946 = vmatpush1.xpose.msra.mxu0 0.0
    %947 = vmatprep.subr.mxu0 0.0
    %948 = vmatpush1.xpose.msra.mxu0 0.0
    %949 = vmatprep.subr.mxu0 0.0
    %950 = vmatpush1.xpose.msra.mxu0 0.0
    %951 = vmatprep.subr.mxu0 0.0
    %952 = vmatpush1.xpose.msra.mxu0 0.0
    %953 = vmatprep.subr.mxu0 0.0
    %954 = vmatpush1.xpose.msra.mxu0 0.0
    %955 = vmatprep.subr.mxu0 0.0
    %956 = vmatpush1.xpose.msra.mxu0 0.0
    %957 = vmatprep.subr.mxu0 0.0
    %958 = vmatpush1.xpose.msra.mxu0 0.0
    %959 = vmatprep.subr.mxu0 0.0
    %960 = vmatpush1.xpose.msra.mxu0 0.0
    %961 = vmatprep.subr.mxu0 0.0
    %962 = vmatpush1.xpose.msra.mxu0 0.0
    %963 = vmatprep.subr.mxu0 0.0
    %964 = vmatpush1.xpose.msra.mxu0 0.0
    %965 = vmatprep.mubr.f32.mxu0 0.0
    %966 = vmatmul.mubr.f32.gmra.mrb[0].mxu0 %v897
    %v967 = vpop.f32.mrb[0].mxu0
    %v968 = vadd.f32 %v320, %v967
    %v969 = vpop.f32.mrb[0].mxu0
    %970 = vdwg.mxu0
    %v971 = vsel %vm470, %v968, -inf
    %972 = vmax.xlane.f32.xlu0 %v971
    %v973 = vpop.xlane.xlu0 %972
    %v974 = vsub.f32 %v968, %v973
    %v975 = vmul.f32 %v974, 1.442695
    %v976 = vpow.pop %v975
    %v977 = vsel %vm470, %v976, 0.0
    %978 = vadd.xlane.f32.xlu0 %v977
    %v979 = vpop.xlane.xlu0 %978
    %v980 = vrcp.pop %v979
    %v981 = vmul.f32 %v976, %v980
    %982 = vrot.lane.b32.xlu0 %v386, 48
    %v983 = vpop.permute.xlu0 %982
    %v986 = vsel %vm470, %v981, 0
    %988 = vmatprep.subr.mxu0 0.0
    %989 = vmatpush1.msra.mxu0 %v983
    %990 = vmatprep.subr.mxu0 0.0
    %991 = vmatpush1.msra.mxu0 0.0
    %992 = vmatprep.subr.mxu0 0.0
    %993 = vmatpush1.msra.mxu0 0.0
    %994 = vmatprep.subr.mxu0 0.0
    %995 = vmatpush1.msra.mxu0 0.0
    %996 = vmatprep.subr.mxu0 0.0
    %997 = vmatpush1.msra.mxu0 0.0
    %998 = vmatprep.subr.mxu0 0.0
    %999 = vmatpush1.msra.mxu0 0.0
    %1000 = vmatprep.subr.mxu0 0.0
    %1001 = vmatpush1.msra.mxu0 0.0
    %1002 = vmatprep.subr.mxu0 0.0
    %1003 = vmatpush1.msra.mxu0 0.0
    %1004 = vmatprep.subr.mxu0 0.0
    %1005 = vmatpush1.msra.mxu0 0.0
    %1006 = vmatprep.subr.mxu0 0.0
    %1007 = vmatpush1.msra.mxu0 0.0
    %1008 = vmatprep.subr.mxu0 0.0
    %1009 = vmatpush1.msra.mxu0 0.0
    %1010 = vmatprep.subr.mxu0 0.0
    %1011 = vmatpush1.msra.mxu0 0.0
    %1012 = vmatprep.subr.mxu0 0.0
    %1013 = vmatpush1.msra.mxu0 0.0
    %1014 = vmatprep.subr.mxu0 0.0
    %1015 = vmatpush1.msra.mxu0 0.0
    %1016 = vmatprep.subr.mxu0 0.0
    %1017 = vmatpush1.msra.mxu0 0.0
    %1018 = vmatprep.subr.mxu0 0.0
    %1019 = vmatpush1.msra.mxu0 0.0
    %1020 = vmatprep.subr.mxu0 0.0
    %1021 = vmatpush1.msra.mxu0 0.0
    %1022 = vmatprep.subr.mxu0 0.0
    %1023 = vmatpush1.msra.mxu0 0.0
    %1024 = vmatprep.subr.mxu0 0.0
    %1025 = vmatpush1.msra.mxu0 0.0
    %1026 = vmatprep.subr.mxu0 0.0
    %1027 = vmatpush1.msra.mxu0 0.0
    %1028 = vmatprep.subr.mxu0 0.0
    %1029 = vmatpush1.msra.mxu0 0.0
    %1030 = vmatprep.subr.mxu0 0.0
    %1031 = vmatpush1.msra.mxu0 0.0
    %1032 = vmatprep.subr.mxu0 0.0
    %1033 = vmatpush1.msra.mxu0 0.0
    %1034 = vmatprep.subr.mxu0 0.0
    %1035 = vmatpush1.msra.mxu0 0.0
    %1036 = vmatprep.subr.mxu0 0.0
    %1037 = vmatpush1.msra.mxu0 0.0
    %1038 = vmatprep.subr.mxu0 0.0
    %1039 = vmatpush1.msra.mxu0 0.0
    %1040 = vmatprep.subr.mxu0 0.0
    %1041 = vmatpush1.msra.mxu0 0.0
    %1042 = vmatprep.subr.mxu0 0.0
    %1043 = vmatpush1.msra.mxu0 0.0
    %1044 = vmatprep.subr.mxu0 0.0
    %1045 = vmatpush1.msra.mxu0 0.0
    %1046 = vmatprep.subr.mxu0 0.0
    %1047 = vmatpush1.msra.mxu0 0.0
    %1048 = vmatprep.subr.mxu0 0.0
    %1049 = vmatpush1.msra.mxu0 0.0
    %1050 = vmatprep.subr.mxu0 0.0
    %1051 = vmatpush1.msra.mxu0 0.0
    %1052 = vmatprep.mubr.f32.mxu0 0.0
    %1053 = vmatmul.mubr.f32.gmra.mrb[0].mxu0 %v986
    %v1054 = vpop.f32.mrb[0].mxu0
    %v1055 = vadd.f32 0.0, %v1054
    %v1056 = vpop.f32.mrb[0].mxu0
    %1057 = vdwg.mxu0
    %1059 = vrot.lane.b32.xlu0 %v1055, 16
    %v1060 = vpop.permute.xlu0 %1059
    %v1062 = vsel %vm394, %v890, %v1060
    %v1063 = vpack.c.bf16 %v1062, %v727
    %v1064 = vld [vmem:[%s10] sm:$0xf]
    %v1065 = vld [vmem:[%s10 + $0x4] sm:$0xf]
    %v1066 = vld [vmem:[%s10 + $0x8] sm:$0xf]
    %v1067 = vld [vmem:[%s10 + $0xc] sm:$0xf]
    %v1068 = vld [vmem:[%s11] sm:$0x1]
    %v1070 = vlaneseq
    %v1071 = vshrl.u32 %v1070, 7
    %v1072 = vsub.s32 0, %v1071
    %v1073 = vrot.slane %v1068, %v1072
    %v1079 = vunpack.c.l.b16 %v1064
    %v1080 = vunpack.c.l.b16 %v1065
    %v1081 = vunpack.c.l.b16 %v1066
    %v1082 = vunpack.c.l.b16 %v1067
    %v1083 = vpack.c.b16 %v1080, %v1079
    %v1084 = vpack.c.b16 %v1082, %v1081
    %v1088 = vsel %vm265, %v1063, 0
    %1090 = vmatprep.subr.bf16.mxu0 0
    %1091 = vmatpush1.bf16.msra.mxu0 %v1083
    %1092 = vmatprep.subr.bf16.mxu0 0
    %1093 = vmatpush1.bf16.msra.mxu0 %v1084
    %1094 = vmatprep.subr.bf16.mxu0 0
    %1095 = vmatpush1.bf16.msra.mxu0 0
    %1096 = vmatprep.subr.bf16.mxu0 0
    %1097 = vmatpush1.bf16.msra.mxu0 0
    %1098 = vmatprep.subr.bf16.mxu0 0
    %1099 = vmatpush1.bf16.msra.mxu0 0
    %1100 = vmatprep.subr.bf16.mxu0 0
    %1101 = vmatpush1.bf16.msra.mxu0 0
    %1102 = vmatprep.subr.bf16.mxu0 0
    %1103 = vmatpush1.bf16.msra.mxu0 0
    %1104 = vmatprep.subr.bf16.mxu0 0
    %1105 = vmatpush1.bf16.msra.mxu0 0
    %1106 = vmatprep.subr.bf16.mxu0 0
    %1107 = vmatpush1.bf16.msra.mxu0 0
    %1108 = vmatprep.subr.bf16.mxu0 0
    %1109 = vmatpush1.bf16.msra.mxu0 0
    %1110 = vmatprep.subr.bf16.mxu0 0
    %1111 = vmatpush1.bf16.msra.mxu0 0
    %1112 = vmatprep.subr.bf16.mxu0 0
    %1113 = vmatpush1.bf16.msra.mxu0 0
    %1114 = vmatprep.subr.bf16.mxu0 0
    %1115 = vmatpush1.bf16.msra.mxu0 0
    %1116 = vmatprep.subr.bf16.mxu0 0
    %1117 = vmatpush1.bf16.msra.mxu0 0
    %1118 = vmatprep.subr.bf16.mxu0 0
    %1119 = vmatpush1.bf16.msra.mxu0 0
    %1120 = vmatprep.subr.bf16.mxu0 0
    %1121 = vmatpush1.bf16.msra.mxu0 0
    %1122 = vmatprep.mubr.bf16.mxu0 0
    %1123 = vmatmul.mubr.bf16.gmra.mrb[0].mxu0 %v1088
    %v1124 = vpop.f32.mrb[0].mxu0
    %v1125 = vadd.f32 %v1073, %v1124
    %v1126 = vpop.f32.mrb[0].mxu0
    %v1127 = vpop.f32.mrb[0].mxu0
    %v1128 = vadd.f32 %v1073, %v1127
    %v1129 = vpop.f32.mrb[0].mxu0
    %1130 = vdwg.mxu0
    %v1131 = vadd.f32 %v1125, %v307
    %v1132 = vadd.f32 %v1128, %v308
    %v1133 = vld [vmem:[%s12] sm:$0x1]
    %v1134 = vld [vmem:[%s13] sm:$0x1]
    %v1135 = vsel %vm265, %v1131, 0.0
    %1136 = vadd.xlane.f32.xlu0 %v1135
    %v1137 = vpop.xlane.xlu0 %1136
    %v1138 = vsel %vm265, %v1132, 0.0
    %1139 = vadd.xlane.f32.xlu0 %v1138
    %v1140 = vpop.xlane.xlu0 %1139
    %v1141 = vmul.f32 %v1137, %v272
    %v1142 = vmul.f32 %v1140, %v272
    %v1143 = vsub.f32 %v1131, %v1141
    %v1144 = vsub.f32 %v1132, %v1142
    %v1145 = vmul.f32 %v1143, %v1143
    %v1146 = vmul.f32 %v1144, %v1144
    %v1147 = vsel %vm265, %v1145, 0.0
    %1148 = vadd.xlane.f32.xlu0 %v1147
    %v1149 = vpop.xlane.xlu0 %1148
    %v1150 = vsel %vm265, %v1146, 0.0
    %1151 = vadd.xlane.f32.xlu0 %v1150
    %v1152 = vpop.xlane.xlu0 %1151
    %v1153 = vmul.f32 %v1149, %v272
    %v1154 = vmul.f32 %v1152, %v272
    %v1155 = vadd.f32 %v1153, 1e-12
    %v1156 = vadd.f32 %v1154, 1e-12
    %v1157 = vrsqrt.pop %v1155
    %v1158 = vrsqrt.pop %v1156
    %v1159 = vmul.f32 %v1143, %v1157
    %v1160 = vmul.f32 %v1144, %v1158
    %v1162 = vlaneseq
    %v1163 = vshrl.u32 %v1162, 7
    %v1164 = vsub.s32 0, %v1163
    %v1165 = vrot.slane %v1133, %v1164
    %v1167 = vmul.f32 %v1159, %v1165
    %v1168 = vmul.f32 %v1160, %v1165
    %v1170 = vlaneseq
    %v1171 = vshrl.u32 %v1170, 7
    %v1172 = vsub.s32 0, %v1171
    %v1173 = vrot.slane %v1134, %v1172
    %v1175 = vadd.f32 %v1167, %v1173
    %v1176 = vadd.f32 %v1168, %v1173
    %v1177 = vpack.c.bf16 %v1176, %v1175
    %v1178 = vld [vmem:[%s14] sm:$0xf]
    %v1179 = vld [vmem:[%s14 + $0x4] sm:$0xf]
    %v1180 = vld [vmem:[%s14 + $0x8] sm:$0xf]
    %v1181 = vld [vmem:[%s14 + $0xc] sm:$0xf]
    %v1182 = vld [vmem:[#allocation2] sm:$0x1]
    %v1184 = vlaneseq
    %v1185 = vshrl.u32 %v1184, 7
    %v1186 = vsub.s32 0, %v1185
    %v1187 = vrot.slane %v1182, %v1186
    %v1193 = vunpack.c.l.b16 %v1178
    %v1194 = vunpack.c.l.b16 %v1179
    %v1195 = vunpack.c.l.b16 %v1180
    %v1196 = vunpack.c.l.b16 %v1181
    %v1197 = vpack.c.b16 %v1194, %v1193
    %v1198 = vpack.c.b16 %v1196, %v1195
    %v1202 = vsel %vm265, %v1177, 0
    %1204 = vmatprep.subr.bf16.mxu0 0
    %1205 = vmatpush1.bf16.msra.mxu0 %v1197
    %1206 = vmatprep.subr.bf16.mxu0 0
    %1207 = vmatpush1.bf16.msra.mxu0 %v1198
    %1208 = vmatprep.subr.bf16.mxu0 0
    %1209 = vmatpush1.bf16.msra.mxu0 0
    %1210 = vmatprep.subr.bf16.mxu0 0
    %1211 = vmatpush1.bf16.msra.mxu0 0
    %1212 = vmatprep.subr.bf16.mxu0 0
    %1213 = vmatpush1.bf16.msra.mxu0 0
    %1214 = vmatprep.subr.bf16.mxu0 0
    %1215 = vmatpush1.bf16.msra.mxu0 0
    %1216 = vmatprep.subr.bf16.mxu0 0
    %1217 = vmatpush1.bf16.msra.mxu0 0
    %1218 = vmatprep.subr.bf16.mxu0 0
    %1219 = vmatpush1.bf16.msra.mxu0 0
    %1220 = vmatprep.subr.bf16.mxu0 0
    %1221 = vmatpush1.bf16.msra.mxu0 0
    %1222 = vmatprep.subr.bf16.mxu0 0
    %1223 = vmatpush1.bf16.msra.mxu0 0
    %1224 = vmatprep.subr.bf16.mxu0 0
    %1225 = vmatpush1.bf16.msra.mxu0 0
    %1226 = vmatprep.subr.bf16.mxu0 0
    %1227 = vmatpush1.bf16.msra.mxu0 0
    %1228 = vmatprep.subr.bf16.mxu0 0
    %1229 = vmatpush1.bf16.msra.mxu0 0
    %1230 = vmatprep.subr.bf16.mxu0 0
    %1231 = vmatpush1.bf16.msra.mxu0 0
    %1232 = vmatprep.subr.bf16.mxu0 0
    %1233 = vmatpush1.bf16.msra.mxu0 0
    %1234 = vmatprep.subr.bf16.mxu0 0
    %1235 = vmatpush1.bf16.msra.mxu0 0
    %1236 = vmatprep.mubr.bf16.mxu0 0
    %1237 = vmatmul.mubr.bf16.gmra.mrb[0].mxu0 %v1202
    %v1238 = vpop.f32.mrb[0].mxu0
    %v1239 = vadd.f32 %v1187, %v1238
    %v1240 = vpop.f32.mrb[0].mxu0
    %v1241 = vpop.f32.mrb[0].mxu0
    %v1242 = vadd.f32 %v1187, %v1241
    %v1243 = vpop.f32.mrb[0].mxu0
    %1244 = vdwg.mxu0
    %v1245 = vmul.f32 %v1239, %v1239
    %v1246 = vmul.f32 %v1242, %v1242
    %v1247 = vmul.f32 %v1239, %v1245
    %v1248 = vmul.f32 %v1242, %v1246
    %v1249 = vmul.f32 %v1247, 0.044715
    %v1250 = vmul.f32 %v1248, 0.044715
    %v1251 = vadd.f32 %v1239, %v1249
    %v1252 = vadd.f32 %v1242, %v1250
    %v1253 = vmul.f32 %v1251, 0.7978846
    %v1254 = vmul.f32 %v1252, 0.7978846
    %v1255 = vtanh.pop %v1253
    %v1256 = vtanh.pop %v1254
    %v1257 = vadd.f32 %v1255, 1.0
    %v1258 = vadd.f32 %v1256, 1.0
    %v1259 = vmul.f32 %v1257, 0.5
    %v1260 = vmul.f32 %v1258, 0.5
    %v1261 = vmul.f32 %v1239, %v1259
    %v1262 = vmul.f32 %v1242, %v1260
    %v1263 = vpack.c.bf16 %v1262, %v1261
    %v1264 = vld [vmem:[%s16] sm:$0xf]
    %v1265 = vld [vmem:[%s16 + $0x4] sm:$0xf]
    %v1266 = vld [vmem:[%s16 + $0x8] sm:$0xf]
    %v1267 = vld [vmem:[%s16 + $0xc] sm:$0xf]
    %v1268 = vld [vmem:[%s16 + $0x10] sm:$0xf]
    %v1269 = vld [vmem:[%s16 + $0x14] sm:$0xf]
    %v1270 = vld [vmem:[%s16 + $0x18] sm:$0xf]
    %v1271 = vld [vmem:[%s16 + $0x1c] sm:$0xf]
    %v1272 = vld [vmem:[#allocation5] sm:$0x1]
    %v1274 = vlaneseq
    %v1275 = vshrl.u32 %v1274, 7
    %v1276 = vsub.s32 0, %v1275
    %v1277 = vrot.slane %v1272, %v1276
    %v1287 = vunpack.c.l.b16 %v1264
    %v1288 = vunpack.c.l.b16 %v1265
    %v1289 = vunpack.c.l.b16 %v1266
    %v1290 = vunpack.c.l.b16 %v1267
    %v1291 = vunpack.c.l.b16 %v1268
    %v1292 = vunpack.c.l.b16 %v1269
    %v1293 = vunpack.c.l.b16 %v1270
    %v1294 = vunpack.c.l.b16 %v1271
    %v1295 = vpack.c.b16 %v1288, %v1287
    %v1296 = vpack.c.b16 %v1290, %v1289
    %v1297 = vpack.c.b16 %v1292, %v1291
    %v1298 = vpack.c.b16 %v1294, %v1293
    %vm1303 = vcmask 523264
    %v1305 = vsel %vm1303, %v1263, 0
    %1307 = vmatprep.subr.bf16.mxu0 0
    %1308 = vmatpush1.bf16.msra.mxu0 %v1295
    %1309 = vmatprep.subr.bf16.mxu0 0
    %1310 = vmatpush1.bf16.msra.mxu0 %v1296
    %1311 = vmatprep.subr.bf16.mxu0 0
    %1312 = vmatpush1.bf16.msra.mxu0 %v1297
    %1313 = vmatprep.subr.bf16.mxu0 0
    %1314 = vmatpush1.bf16.msra.mxu0 %v1298
    %1315 = vmatprep.subr.bf16.mxu0 0
    %1316 = vmatpush1.bf16.msra.mxu0 0
    %1317 = vmatprep.subr.bf16.mxu0 0
    %1318 = vmatpush1.bf16.msra.mxu0 0
    %1319 = vmatprep.subr.bf16.mxu0 0
    %1320 = vmatpush1.bf16.msra.mxu0 0
    %1321 = vmatprep.subr.bf16.mxu0 0
    %1322 = vmatpush1.bf16.msra.mxu0 0
    %1323 = vmatprep.subr.bf16.mxu0 0
    %1324 = vmatpush1.bf16.msra.mxu0 0
    %1325 = vmatprep.subr.bf16.mxu0 0
    %1326 = vmatpush1.bf16.msra.mxu0 0
    %1327 = vmatprep.subr.bf16.mxu0 0
    %1328 = vmatpush1.bf16.msra.mxu0 0
    %1329 = vmatprep.subr.bf16.mxu0 0
    %1330 = vmatpush1.bf16.msra.mxu0 0
    %1331 = vmatprep.subr.bf16.mxu0 0
    %1332 = vmatpush1.bf16.msra.mxu0 0
    %1333 = vmatprep.subr.bf16.mxu0 0
    %1334 = vmatpush1.bf16.msra.mxu0 0
    %1335 = vmatprep.subr.bf16.mxu0 0
    %1336 = vmatpush1.bf16.msra.mxu0 0
    %1337 = vmatprep.subr.bf16.mxu0 0
    %1338 = vmatpush1.bf16.msra.mxu0 0
    %1339 = vmatprep.mubr.bf16.mxu0 0
    %1340 = vmatmul.mubr.bf16.gmra.mrb[0].mxu0 %v1305
    %v1341 = vpop.f32.mrb[0].mxu0
    %v1342 = vadd.f32 %v1277, %v1341
    %v1343 = vpop.f32.mrb[0].mxu0
    %v1344 = vpop.f32.mrb[0].mxu0
    %v1345 = vadd.f32 %v1277, %v1344
    %v1346 = vpop.f32.mrb[0].mxu0
    %1347 = vdwg.mxu0
    %v1348 = vadd.f32 %v1342, %v1175
    %v1349 = vadd.f32 %v1345, %v1176
    %v1350 = vld [vmem:[%s18] sm:$0x1]
    %v1351 = vld [vmem:[%s19] sm:$0x1]
    %v1352 = vsel %vm265, %v1348, 0.0
    %1353 = vadd.xlane.f32.xlu0 %v1352
    %v1354 = vpop.xlane.xlu0 %1353
    %v1355 = vsel %vm265, %v1349, 0.0
    %1356 = vadd.xlane.f32.xlu0 %v1355
    %v1357 = vpop.xlane.xlu0 %1356
    %v1358 = vmul.f32 %v1354, %v272
    %v1359 = vmul.f32 %v1357, %v272
    %v1360 = vsub.f32 %v1348, %v1358
    %v1361 = vsub.f32 %v1349, %v1359
    %v1362 = vmul.f32 %v1360, %v1360
    %v1363 = vmul.f32 %v1361, %v1361
    %v1364 = vsel %vm265, %v1362, 0.0
    %1365 = vadd.xlane.f32.xlu0 %v1364
    %v1366 = vpop.xlane.xlu0 %1365
    %v1367 = vsel %vm265, %v1363, 0.0
    %1368 = vadd.xlane.f32.xlu0 %v1367
    %v1369 = vpop.xlane.xlu0 %1368
    %v1370 = vmul.f32 %v1366, %v272
    %v1371 = vmul.f32 %v1369, %v272
    %v1372 = vadd.f32 %v1370, 1e-12
    %v1373 = vadd.f32 %v1371, 1e-12
    %v1374 = vrsqrt.pop %v1372
    %v1375 = vrsqrt.pop %v1373
    %v1376 = vmul.f32 %v1360, %v1374
    %v1377 = vmul.f32 %v1361, %v1375
    %v1379 = vlaneseq
    %v1380 = vshrl.u32 %v1379, 7
    %v1381 = vsub.s32 0, %v1380
    %v1382 = vrot.slane %v1350, %v1381
    %v1384 = vmul.f32 %v1376, %v1382
    %v1385 = vmul.f32 %v1377, %v1382
    %v1387 = vlaneseq
    %v1388 = vshrl.u32 %v1387, 7
    %v1389 = vsub.s32 0, %v1388
    %v1390 = vrot.slane %v1351, %v1389
    %v1392 = vadd.f32 %v1384, %v1390
    %v1393 = vadd.f32 %v1385, %v1390
    %v1394 = vpack.c.bf16 %v1393, %v1392
    %s1395 = scalar_lea.vmem %s8, 16
    %v1396 = vld [vmem:[%s1395] sm:$0xf]
    %v1397 = vld [vmem:[%s1395 + $0x4] sm:$0xf]
    %v1398 = vld [vmem:[%s1395 + $0x8] sm:$0xf]
    %v1399 = vld [vmem:[%s1395 + $0xc] sm:$0xf]
    %s1400 = scalar_lea.vmem %s9, 1
    %v1401 = vld [vmem:[%s1400] sm:$0x1]
    %v1403 = vlaneseq
    %v1404 = vshrl.u32 %v1403, 7
    %v1405 = vsub.s32 0, %v1404
    %v1406 = vrot.slane %v1401, %v1405
    %v1412 = vunpack.c.l.b16 %v1396
    %v1413 = vunpack.c.l.b16 %v1397
    %v1414 = vunpack.c.l.b16 %v1398
    %v1415 = vunpack.c.l.b16 %v1399
    %v1416 = vpack.c.b16 %v1413, %v1412
    %v1417 = vpack.c.b16 %v1415, %v1414
    %v1421 = vsel %vm265, %v1394, 0
    %1423 = vmatprep.subr.bf16.mxu0 0
    %1424 = vmatpush1.bf16.msra.mxu0 %v1416
    %1425 = vmatprep.subr.bf16.mxu0 0
    %1426 = vmatpush1.bf16.msra.mxu0 %v1417
    %1427 = vmatprep.subr.bf16.mxu0 0
    %1428 = vmatpush1.bf16.msra.mxu0 0
    %1429 = vmatprep.subr.bf16.mxu0 0
    %1430 = vmatpush1.bf16.msra.mxu0 0
    %1431 = vmatprep.subr.bf16.mxu0 0
    %1432 = vmatpush1.bf16.msra.mxu0 0
    %1433 = vmatprep.subr.bf16.mxu0 0
    %1434 = vmatpush1.bf16.msra.mxu0 0
    %1435 = vmatprep.subr.bf16.mxu0 0
    %1436 = vmatpush1.bf16.msra.mxu0 0
    %1437 = vmatprep.subr.bf16.mxu0 0
    %1438 = vmatpush1.bf16.msra.mxu0 0
    %1439 = vmatprep.subr.bf16.mxu0 0
    %1440 = vmatpush1.bf16.msra.mxu0 0
    %1441 = vmatprep.subr.bf16.mxu0 0
    %1442 = vmatpush1.bf16.msra.mxu0 0
    %1443 = vmatprep.subr.bf16.mxu0 0
    %1444 = vmatpush1.bf16.msra.mxu0 0
    %1445 = vmatprep.subr.bf16.mxu0 0
    %1446 = vmatpush1.bf16.msra.mxu0 0
    %1447 = vmatprep.subr.bf16.mxu0 0
    %1448 = vmatpush1.bf16.msra.mxu0 0
    %1449 = vmatprep.subr.bf16.mxu0 0
    %1450 = vmatpush1.bf16.msra.mxu0 0
    %1451 = vmatprep.subr.bf16.mxu0 0
    %1452 = vmatpush1.bf16.msra.mxu0 0
    %1453 = vmatprep.subr.bf16.mxu0 0
    %1454 = vmatpush1.bf16.msra.mxu0 0
    %1455 = vmatprep.mubr.bf16.mxu0 0
    %1456 = vmatmul.mubr.bf16.gmra.mrb[0].mxu0 %v1421
    %v1457 = vpop.f32.mrb[0].mxu0
    %v1458 = vadd.f32 %v1406, %v1457
    %v1459 = vpop.f32.mrb[0].mxu0
    %v1460 = vpop.f32.mrb[0].mxu0
    %v1461 = vadd.f32 %v1406, %v1460
    %v1462 = vpop.f32.mrb[0].mxu0
    %1463 = vdwg.mxu0
    %v1464 = vmul.f32 %v1458, 0.25
    %v1465 = vmul.f32 %v1461, 0.25
    %1467 = vrot.lane.b32.xlu0 %v1458, 96
    %v1468 = vpop.permute.xlu0 %1467
    %v1470 = vsel %vm394, %v1464, 0
    %v1472 = vsel %vm394, %v1468, 0
    %1474 = vmatprep.subr.mxu0 0.0
    %1475 = vmatpush1.xpose.msra.mxu0 %v1472
    %1476 = vmatprep.subr.mxu0 0.0
    %1477 = vmatpush1.xpose.msra.mxu0 0.0
    %1478 = vmatprep.subr.mxu0 0.0
    %1479 = vmatpush1.xpose.msra.mxu0 0.0
    %1480 = vmatprep.subr.mxu0 0.0
    %1481 = vmatpush1.xpose.msra.mxu0 0.0
    %1482 = vmatprep.subr.mxu0 0.0
    %1483 = vmatpush1.xpose.msra.mxu0 0.0
    %1484 = vmatprep.subr.mxu0 0.0
    %1485 = vmatpush1.xpose.msra.mxu0 0.0
    %1486 = vmatprep.subr.mxu0 0.0
    %1487 = vmatpush1.xpose.msra.mxu0 0.0
    %1488 = vmatprep.subr.mxu0 0.0
    %1489 = vmatpush1.xpose.msra.mxu0 0.0
    %1490 = vmatprep.subr.mxu0 0.0
    %1491 = vmatpush1.xpose.msra.mxu0 0.0
    %1492 = vmatprep.subr.mxu0 0.0
    %1493 = vmatpush1.xpose.msra.mxu0 0.0
    %1494 = vmatprep.subr.mxu0 0.0
    %1495 = vmatpush1.xpose.msra.mxu0 0.0
    %1496 = vmatprep.subr.mxu0 0.0
    %1497 = vmatpush1.xpose.msra.mxu0 0.0
    %1498 = vmatprep.subr.mxu0 0.0
    %1499 = vmatpush1.xpose.msra.mxu0 0.0
    %1500 = vmatprep.subr.mxu0 0.0
    %1501 = vmatpush1.xpose.msra.mxu0 0.0
    %1502 = vmatprep.subr.mxu0 0.0
    %1503 = vmatpush1.xpose.msra.mxu0 0.0
    %1504 = vmatprep.subr.mxu0 0.0
    %1505 = vmatpush1.xpose.msra.mxu0 0.0
    %1506 = vmatprep.subr.mxu0 0.0
    %1507 = vmatpush1.xpose.msra.mxu0 0.0
    %1508 = vmatprep.subr.mxu0 0.0
    %1509 = vmatpush1.xpose.msra.mxu0 0.0
    %1510 = vmatprep.subr.mxu0 0.0
    %1511 = vmatpush1.xpose.msra.mxu0 0.0
    %1512 = vmatprep.subr.mxu0 0.0
    %1513 = vmatpush1.xpose.msra.mxu0 0.0
    %1514 = vmatprep.subr.mxu0 0.0
    %1515 = vmatpush1.xpose.msra.mxu0 0.0
    %1516 = vmatprep.subr.mxu0 0.0
    %1517 = vmatpush1.xpose.msra.mxu0 0.0
    %1518 = vmatprep.subr.mxu0 0.0
    %1519 = vmatpush1.xpose.msra.mxu0 0.0
    %1520 = vmatprep.subr.mxu0 0.0
    %1521 = vmatpush1.xpose.msra.mxu0 0.0
    %1522 = vmatprep.subr.mxu0 0.0
    %1523 = vmatpush1.xpose.msra.mxu0 0.0
    %1524 = vmatprep.subr.mxu0 0.0
    %1525 = vmatpush1.xpose.msra.mxu0 0.0
    %1526 = vmatprep.subr.mxu0 0.0
    %1527 = vmatpush1.xpose.msra.mxu0 0.0
    %1528 = vmatprep.subr.mxu0 0.0
    %1529 = vmatpush1.xpose.msra.mxu0 0.0
    %1530 = vmatprep.subr.mxu0 0.0
    %1531 = vmatpush1.xpose.msra.mxu0 0.0
    %1532 = vmatprep.subr.mxu0 0.0
    %1533 = vmatpush1.xpose.msra.mxu0 0.0
    %1534 = vmatprep.subr.mxu0 0.0
    %1535 = vmatpush1.xpose.msra.mxu0 0.0
    %1536 = vmatprep.subr.mxu0 0.0
    %1537 = vmatpush1.xpose.msra.mxu0 0.0
    %1538 = vmatprep.mubr.f32.mxu0 0.0
    %1539 = vmatmul.mubr.f32.gmra.mrb[0].mxu0 %v1470
    %v1540 = vpop.f32.mrb[0].mxu0
    %v1541 = vadd.f32 %v316, %v1540
    %v1542 = vpop.f32.mrb[0].mxu0
    %1543 = vdwg.mxu0
    %v1544 = vsel %vm470, %v1541, -inf
    %1545 = vmax.xlane.f32.xlu0 %v1544
    %v1546 = vpop.xlane.xlu0 %1545
    %v1547 = vsub.f32 %v1541, %v1546
    %v1548 = vmul.f32 %v1547, 1.442695
    %v1549 = vpow.pop %v1548
    %v1550 = vsel %vm470, %v1549, 0.0
    %1551 = vadd.xlane.f32.xlu0 %v1550
    %v1552 = vpop.xlane.xlu0 %1551
    %v1553 = vrcp.pop %v1552
    %v1554 = vmul.f32 %v1549, %v1553
    %1555 = vrot.lane.b32.xlu0 %v1458, 64
    %v1556 = vpop.permute.xlu0 %1555
    %v1559 = vsel %vm470, %v1554, 0
    %1561 = vmatprep.subr.mxu0 0.0
    %1562 = vmatpush1.msra.mxu0 %v1556
    %1563 = vmatprep.subr.mxu0 0.0
    %1564 = vmatpush1.msra.mxu0 0.0
    %1565 = vmatprep.subr.mxu0 0.0
    %1566 = vmatpush1.msra.mxu0 0.0
    %1567 = vmatprep.subr.mxu0 0.0
    %1568 = vmatpush1.msra.mxu0 0.0
    %1569 = vmatprep.subr.mxu0 0.0
    %1570 = vmatpush1.msra.mxu0 0.0
    %1571 = vmatprep.subr.mxu0 0.0
    %1572 = vmatpush1.msra.mxu0 0.0
    %1573 = vmatprep.subr.mxu0 0.0
    %1574 = vmatpush1.msra.mxu0 0.0
    %1575 = vmatprep.subr.mxu0 0.0
    %1576 = vmatpush1.msra.mxu0 0.0
    %1577 = vmatprep.subr.mxu0 0.0
    %1578 = vmatpush1.msra.mxu0 0.0
    %1579 = vmatprep.subr.mxu0 0.0
    %1580 = vmatpush1.msra.mxu0 0.0
    %1581 = vmatprep.subr.mxu0 0.0
    %1582 = vmatpush1.msra.mxu0 0.0
    %1583 = vmatprep.subr.mxu0 0.0
    %1584 = vmatpush1.msra.mxu0 0.0
    %1585 = vmatprep.subr.mxu0 0.0
    %1586 = vmatpush1.msra.mxu0 0.0
    %1587 = vmatprep.subr.mxu0 0.0
    %1588 = vmatpush1.msra.mxu0 0.0
    %1589 = vmatprep.subr.mxu0 0.0
    %1590 = vmatpush1.msra.mxu0 0.0
    %1591 = vmatprep.subr.mxu0 0.0
    %1592 = vmatpush1.msra.mxu0 0.0
    %1593 = vmatprep.subr.mxu0 0.0
    %1594 = vmatpush1.msra.mxu0 0.0
    %1595 = vmatprep.subr.mxu0 0.0
    %1596 = vmatpush1.msra.mxu0 0.0
    %1597 = vmatprep.subr.mxu0 0.0
    %1598 = vmatpush1.msra.mxu0 0.0
    %1599 = vmatprep.subr.mxu0 0.0
    %1600 = vmatpush1.msra.mxu0 0.0
    %1601 = vmatprep.subr.mxu0 0.0
    %1602 = vmatpush1.msra.mxu0 0.0
    %1603 = vmatprep.subr.mxu0 0.0
    %1604 = vmatpush1.msra.mxu0 0.0
    %1605 = vmatprep.subr.mxu0 0.0
    %1606 = vmatpush1.msra.mxu0 0.0
    %1607 = vmatprep.subr.mxu0 0.0
    %1608 = vmatpush1.msra.mxu0 0.0
    %1609 = vmatprep.subr.mxu0 0.0
    %1610 = vmatpush1.msra.mxu0 0.0
    %1611 = vmatprep.subr.mxu0 0.0
    %1612 = vmatpush1.msra.mxu0 0.0
    %1613 = vmatprep.subr.mxu0 0.0
    %1614 = vmatpush1.msra.mxu0 0.0
    %1615 = vmatprep.subr.mxu0 0.0
    %1616 = vmatpush1.msra.mxu0 0.0
    %1617 = vmatprep.subr.mxu0 0.0
    %1618 = vmatpush1.msra.mxu0 0.0
    %1619 = vmatprep.subr.mxu0 0.0
    %1620 = vmatpush1.msra.mxu0 0.0
    %1621 = vmatprep.subr.mxu0 0.0
    %1622 = vmatpush1.msra.mxu0 0.0
    %1623 = vmatprep.subr.mxu0 0.0
    %1624 = vmatpush1.msra.mxu0 0.0
    %1625 = vmatprep.mubr.f32.mxu0 0.0
    %1626 = vmatmul.mubr.f32.gmra.mrb[0].mxu0 %v1559
    %v1627 = vpop.f32.mrb[0].mxu0
    %v1628 = vadd.f32 0.0, %v1627
    %v1629 = vpop.f32.mrb[0].mxu0
    %1630 = vdwg.mxu0
    %1631 = vrot.lane.b32.xlu0 %v1464, 112
    %v1632 = vpop.permute.xlu0 %1631
    %1633 = vrot.lane.b32.xlu0 %v1458, 80
    %v1634 = vpop.permute.xlu0 %1633
    %v1635 = vsel %vm394, %v1632, 0
    %v1637 = vsel %vm394, %v1634, 0
    %1639 = vmatprep.subr.mxu0 0.0
    %1640 = vmatpush1.xpose.msra.mxu0 %v1637
    %1641 = vmatprep.subr.mxu0 0.0
    %1642 = vmatpush1.xpose.msra.mxu0 0.0
    %1643 = vmatprep.subr.mxu0 0.0
    %1644 = vmatpush1.xpose.msra.mxu0 0.0
    %1645 = vmatprep.subr.mxu0 0.0
    %1646 = vmatpush1.xpose.msra.mxu0 0.0
    %1647 = vmatprep.subr.mxu0 0.0
    %1648 = vmatpush1.xpose.msra.mxu0 0.0
    %1649 = vmatprep.subr.mxu0 0.0
    %1650 = vmatpush1.xpose.msra.mxu0 0.0
    %1651 = vmatprep.subr.mxu0 0.0
    %1652 = vmatpush1.xpose.msra.mxu0 0.0
    %1653 = vmatprep.subr.mxu0 0.0
    %1654 = vmatpush1.xpose.msra.mxu0 0.0
    %1655 = vmatprep.subr.mxu0 0.0
    %1656 = vmatpush1.xpose.msra.mxu0 0.0
    %1657 = vmatprep.subr.mxu0 0.0
    %1658 = vmatpush1.xpose.msra.mxu0 0.0
    %1659 = vmatprep.subr.mxu0 0.0
    %1660 = vmatpush1.xpose.msra.mxu0 0.0
    %1661 = vmatprep.subr.mxu0 0.0
    %1662 = vmatpush1.xpose.msra.mxu0 0.0
    %1663 = vmatprep.subr.mxu0 0.0
    %1664 = vmatpush1.xpose.msra.mxu0 0.0
    %1665 = vmatprep.subr.mxu0 0.0
    %1666 = vmatpush1.xpose.msra.mxu0 0.0
    %1667 = vmatprep.subr.mxu0 0.0
    %1668 = vmatpush1.xpose.msra.mxu0 0.0
    %1669 = vmatprep.subr.mxu0 0.0
    %1670 = vmatpush1.xpose.msra.mxu0 0.0
    %1671 = vmatprep.subr.mxu0 0.0
    %1672 = vmatpush1.xpose.msra.mxu0 0.0
    %1673 = vmatprep.subr.mxu0 0.0
    %1674 = vmatpush1.xpose.msra.mxu0 0.0
    %1675 = vmatprep.subr.mxu0 0.0
    %1676 = vmatpush1.xpose.msra.mxu0 0.0
    %1677 = vmatprep.subr.mxu0 0.0
    %1678 = vmatpush1.xpose.msra.mxu0 0.0
    %1679 = vmatprep.subr.mxu0 0.0
    %1680 = vmatpush1.xpose.msra.mxu0 0.0
    %1681 = vmatprep.subr.mxu0 0.0
    %1682 = vmatpush1.xpose.msra.mxu0 0.0
    %1683 = vmatprep.subr.mxu0 0.0
    %1684 = vmatpush1.xpose.msra.mxu0 0.0
    %1685 = vmatprep.subr.mxu0 0.0
    %1686 = vmatpush1.xpose.msra.mxu0 0.0
    %1687 = vmatprep.subr.mxu0 0.0
    %1688 = vmatpush1.xpose.msra.mxu0 0.0
    %1689 = vmatprep.subr.mxu0 0.0
    %1690 = vmatpush1.xpose.msra.mxu0 0.0
    %1691 = vmatprep.subr.mxu0 0.0
    %1692 = vmatpush1.xpose.msra.mxu0 0.0
    %1693 = vmatprep.subr.mxu0 0.0
    %1694 = vmatpush1.xpose.msra.mxu0 0.0
    %1695 = vmatprep.subr.mxu0 0.0
    %1696 = vmatpush1.xpose.msra.mxu0 0.0
    %1697 = vmatprep.subr.mxu0 0.0
    %1698 = vmatpush1.xpose.msra.mxu0 0.0
    %1699 = vmatprep.subr.mxu0 0.0
    %1700 = vmatpush1.xpose.msra.mxu0 0.0
    %1701 = vmatprep.subr.mxu0 0.0
    %1702 = vmatpush1.xpose.msra.mxu0 0.0
    %1703 = vmatprep.mubr.f32.mxu0 0.0
    %1704 = vmatmul.mubr.f32.gmra.mrb[0].mxu0 %v1635
    %v1705 = vpop.f32.mrb[0].mxu0
    %v1706 = vadd.f32 %v316, %v1705
    %v1707 = vpop.f32.mrb[0].mxu0
    %1708 = vdwg.mxu0
    %v1709 = vsel %vm470, %v1706, -inf
    %1710 = vmax.xlane.f32.xlu0 %v1709
    %v1711 = vpop.xlane.xlu0 %1710
    %v1712 = vsub.f32 %v1706, %v1711
    %v1713 = vmul.f32 %v1712, 1.442695
    %v1714 = vpow.pop %v1713
    %v1715 = vsel %vm470, %v1714, 0.0
    %1716 = vadd.xlane.f32.xlu0 %v1715
    %v1717 = vpop.xlane.xlu0 %1716
    %v1718 = vrcp.pop %v1717
    %v1719 = vmul.f32 %v1714, %v1718
    %1720 = vrot.lane.b32.xlu0 %v1458, 48
    %v1721 = vpop.permute.xlu0 %1720
    %v1724 = vsel %vm470, %v1719, 0
    %1726 = vmatprep.subr.mxu0 0.0
    %1727 = vmatpush1.msra.mxu0 %v1721
    %1728 = vmatprep.subr.mxu0 0.0
    %1729 = vmatpush1.msra.mxu0 0.0
    %1730 = vmatprep.subr.mxu0 0.0
    %1731 = vmatpush1.msra.mxu0 0.0
    %1732 = vmatprep.subr.mxu0 0.0
    %1733 = vmatpush1.msra.mxu0 0.0
    %1734 = vmatprep.subr.mxu0 0.0
    %1735 = vmatpush1.msra.mxu0 0.0
    %1736 = vmatprep.subr.mxu0 0.0
    %1737 = vmatpush1.msra.mxu0 0.0
    %1738 = vmatprep.subr.mxu0 0.0
    %1739 = vmatpush1.msra.mxu0 0.0
    %1740 = vmatprep.subr.mxu0 0.0
    %1741 = vmatpush1.msra.mxu0 0.0
    %1742 = vmatprep.subr.mxu0 0.0
    %1743 = vmatpush1.msra.mxu0 0.0
    %1744 = vmatprep.subr.mxu0 0.0
    %1745 = vmatpush1.msra.mxu0 0.0
    %1746 = vmatprep.subr.mxu0 0.0
    %1747 = vmatpush1.msra.mxu0 0.0
    %1748 = vmatprep.subr.mxu0 0.0
    %1749 = vmatpush1.msra.mxu0 0.0
    %1750 = vmatprep.subr.mxu0 0.0
    %1751 = vmatpush1.msra.mxu0 0.0
    %1752 = vmatprep.subr.mxu0 0.0
    %1753 = vmatpush1.msra.mxu0 0.0
    %1754 = vmatprep.subr.mxu0 0.0
    %1755 = vmatpush1.msra.mxu0 0.0
    %1756 = vmatprep.subr.mxu0 0.0
    %1757 = vmatpush1.msra.mxu0 0.0
    %1758 = vmatprep.subr.mxu0 0.0
    %1759 = vmatpush1.msra.mxu0 0.0
    %1760 = vmatprep.subr.mxu0 0.0
    %1761 = vmatpush1.msra.mxu0 0.0
    %1762 = vmatprep.subr.mxu0 0.0
    %1763 = vmatpush1.msra.mxu0 0.0
    %1764 = vmatprep.subr.mxu0 0.0
    %1765 = vmatpush1.msra.mxu0 0.0
    %1766 = vmatprep.subr.mxu0 0.0
    %1767 = vmatpush1.msra.mxu0 0.0
    %1768 = vmatprep.subr.mxu0 0.0
    %1769 = vmatpush1.msra.mxu0 0.0
    %1770 = vmatprep.subr.mxu0 0.0
    %1771 = vmatpush1.msra.mxu0 0.0
    %1772 = vmatprep.subr.mxu0 0.0
    %1773 = vmatpush1.msra.mxu0 0.0
    %1774 = vmatprep.subr.mxu0 0.0
    %1775 = vmatpush1.msra.mxu0 0.0
    %1776 = vmatprep.subr.mxu0 0.0
    %1777 = vmatpush1.msra.mxu0 0.0
    %1778 = vmatprep.subr.mxu0 0.0
    %1779 = vmatpush1.msra.mxu0 0.0
    %1780 = vmatprep.subr.mxu0 0.0
    %1781 = vmatpush1.msra.mxu0 0.0
    %1782 = vmatprep.subr.mxu0 0.0
    %1783 = vmatpush1.msra.mxu0 0.0
    %1784 = vmatprep.subr.mxu0 0.0
    %1785 = vmatpush1.msra.mxu0 0.0
    %1786 = vmatprep.subr.mxu0 0.0
    %1787 = vmatpush1.msra.mxu0 0.0
    %1788 = vmatprep.subr.mxu0 0.0
    %1789 = vmatpush1.msra.mxu0 0.0
    %1790 = vmatprep.mubr.f32.mxu0 0.0
    %1791 = vmatmul.mubr.f32.gmra.mrb[0].mxu0 %v1724
    %v1792 = vpop.f32.mrb[0].mxu0
    %v1793 = vadd.f32 0.0, %v1792
    %v1794 = vpop.f32.mrb[0].mxu0
    %1795 = vdwg.mxu0
    %1797 = vrot.lane.b32.xlu0 %v1793, 16
    %v1798 = vpop.permute.xlu0 %1797
    %v1800 = vsel %vm394, %v1628, %v1798
    %1802 = vrot.lane.b32.xlu0 %v1461, 96
    %v1803 = vpop.permute.xlu0 %1802
    %v1805 = vsel %vm394, %v1465, 0
    %v1807 = vsel %vm394, %v1803, 0
    %1809 = vmatprep.subr.mxu0 0.0
    %1810 = vmatpush1.xpose.msra.mxu0 %v1807
    %1811 = vmatprep.subr.mxu0 0.0
    %1812 = vmatpush1.xpose.msra.mxu0 0.0
    %1813 = vmatprep.subr.mxu0 0.0
    %1814 = vmatpush1.xpose.msra.mxu0 0.0
    %1815 = vmatprep.subr.mxu0 0.0
    %1816 = vmatpush1.xpose.msra.mxu0 0.0
    %1817 = vmatprep.subr.mxu0 0.0
    %1818 = vmatpush1.xpose.msra.mxu0 0.0
    %1819 = vmatprep.subr.mxu0 0.0
    %1820 = vmatpush1.xpose.msra.mxu0 0.0
    %1821 = vmatprep.subr.mxu0 0.0
    %1822 = vmatpush1.xpose.msra.mxu0 0.0
    %1823 = vmatprep.subr.mxu0 0.0
    %1824 = vmatpush1.xpose.msra.mxu0 0.0
    %1825 = vmatprep.subr.mxu0 0.0
    %1826 = vmatpush1.xpose.msra.mxu0 0.0
    %1827 = vmatprep.subr.mxu0 0.0
    %1828 = vmatpush1.xpose.msra.mxu0 0.0
    %1829 = vmatprep.subr.mxu0 0.0
    %1830 = vmatpush1.xpose.msra.mxu0 0.0
    %1831 = vmatprep.subr.mxu0 0.0
    %1832 = vmatpush1.xpose.msra.mxu0 0.0
    %1833 = vmatprep.subr.mxu0 0.0
    %1834 = vmatpush1.xpose.msra.mxu0 0.0
    %1835 = vmatprep.subr.mxu0 0.0
    %1836 = vmatpush1.xpose.msra.mxu0 0.0
    %1837 = vmatprep.subr.mxu0 0.0
    %1838 = vmatpush1.xpose.msra.mxu0 0.0
    %1839 = vmatprep.subr.mxu0 0.0
    %1840 = vmatpush1.xpose.msra.mxu0 0.0
    %1841 = vmatprep.subr.mxu0 0.0
    %1842 = vmatpush1.xpose.msra.mxu0 0.0
    %1843 = vmatprep.subr.mxu0 0.0
    %1844 = vmatpush1.xpose.msra.mxu0 0.0
    %1845 = vmatprep.subr.mxu0 0.0
    %1846 = vmatpush1.xpose.msra.mxu0 0.0
    %1847 = vmatprep.subr.mxu0 0.0
    %1848 = vmatpush1.xpose.msra.mxu0 0.0
    %1849 = vmatprep.subr.mxu0 0.0
    %1850 = vmatpush1.xpose.msra.mxu0 0.0
    %1851 = vmatprep.subr.mxu0 0.0
    %1852 = vmatpush1.xpose.msra.mxu0 0.0
    %1853 = vmatprep.subr.mxu0 0.0
    %1854 = vmatpush1.xpose.msra.mxu0 0.0
    %1855 = vmatprep.subr.mxu0 0.0
    %1856 = vmatpush1.xpose.msra.mxu0 0.0
    %1857 = vmatprep.subr.mxu0 0.0
    %1858 = vmatpush1.xpose.msra.mxu0 0.0
    %1859 = vmatprep.subr.mxu0 0.0
    %1860 = vmatpush1.xpose.msra.mxu0 0.0
    %1861 = vmatprep.subr.mxu0 0.0
    %1862 = vmatpush1.xpose.msra.mxu0 0.0
    %1863 = vmatprep.subr.mxu0 0.0
    %1864 = vmatpush1.xpose.msra.mxu0 0.0
    %1865 = vmatprep.subr.mxu0 0.0
    %1866 = vmatpush1.xpose.msra.mxu0 0.0
    %1867 = vmatprep.subr.mxu0 0.0
    %1868 = vmatpush1.xpose.msra.mxu0 0.0
    %1869 = vmatprep.subr.mxu0 0.0
    %1870 = vmatpush1.xpose.msra.mxu0 0.0
    %1871 = vmatprep.subr.mxu0 0.0
    %1872 = vmatpush1.xpose.msra.mxu0 0.0
    %1873 = vmatprep.mubr.f32.mxu0 0.0
    %1874 = vmatmul.mubr.f32.gmra.mrb[0].mxu0 %v1805
    %v1875 = vpop.f32.mrb[0].mxu0
    %v1876 = vadd.f32 %v320, %v1875
    %v1877 = vpop.f32.mrb[0].mxu0
    %1878 = vdwg.mxu0
    %v1879 = vsel %vm470, %v1876, -inf
    %1880 = vmax.xlane.f32.xlu0 %v1879
    %v1881 = vpop.xlane.xlu0 %1880
    %v1882 = vsub.f32 %v1876, %v1881
    %v1883 = vmul.f32 %v1882, 1.442695
    %v1884 = vpow.pop %v1883
    %v1885 = vsel %vm470, %v1884, 0.0
    %1886 = vadd.xlane.f32.xlu0 %v1885
    %v1887 = vpop.xlane.xlu0 %1886
    %v1888 = vrcp.pop %v1887
    %v1889 = vmul.f32 %v1884, %v1888
    %1890 = vrot.lane.b32.xlu0 %v1461, 64
    %v1891 = vpop.permute.xlu0 %1890
    %v1894 = vsel %vm470, %v1889, 0
    %1896 = vmatprep.subr.mxu0 0.0
    %1897 = vmatpush1.msra.mxu0 %v1891
    %1898 = vmatprep.subr.mxu0 0.0
    %1899 = vmatpush1.msra.mxu0 0.0
    %1900 = vmatprep.subr.mxu0 0.0
    %1901 = vmatpush1.msra.mxu0 0.0
    %1902 = vmatprep.subr.mxu0 0.0
    %1903 = vmatpush1.msra.mxu0 0.0
    %1904 = vmatprep.subr.mxu0 0.0
    %1905 = vmatpush1.msra.mxu0 0.0
    %1906 = vmatprep.subr.mxu0 0.0
    %1907 = vmatpush1.msra.mxu0 0.0
    %1908 = vmatprep.subr.mxu0 0.0
    %1909 = vmatpush1.msra.mxu0 0.0
    %1910 = vmatprep.subr.mxu0 0.0
    %1911 = vmatpush1.msra.mxu0 0.0
    %1912 = vmatprep.subr.mxu0 0.0
    %1913 = vmatpush1.msra.mxu0 0.0
    %1914 = vmatprep.subr.mxu0 0.0
    %1915 = vmatpush1.msra.mxu0 0.0
    %1916 = vmatprep.subr.mxu0 0.0
    %1917 = vmatpush1.msra.mxu0 0.0
    %1918 = vmatprep.subr.mxu0 0.0
    %1919 = vmatpush1.msra.mxu0 0.0
    %1920 = vmatprep.subr.mxu0 0.0
    %1921 = vmatpush1.msra.mxu0 0.0
    %1922 = vmatprep.subr.mxu0 0.0
    %1923 = vmatpush1.msra.mxu0 0.0
    %1924 = vmatprep.subr.mxu0 0.0
    %1925 = vmatpush1.msra.mxu0 0.0
    %1926 = vmatprep.subr.mxu0 0.0
    %1927 = vmatpush1.msra.mxu0 0.0
    %1928 = vmatprep.subr.mxu0 0.0
    %1929 = vmatpush1.msra.mxu0 0.0
    %1930 = vmatprep.subr.mxu0 0.0
    %1931 = vmatpush1.msra.mxu0 0.0
    %1932 = vmatprep.subr.mxu0 0.0
    %1933 = vmatpush1.msra.mxu0 0.0
    %1934 = vmatprep.subr.mxu0 0.0
    %1935 = vmatpush1.msra.mxu0 0.0
    %1936 = vmatprep.subr.mxu0 0.0
    %1937 = vmatpush1.msra.mxu0 0.0
    %1938 = vmatprep.subr.mxu0 0.0
    %1939 = vmatpush1.msra.mxu0 0.0
    %1940 = vmatprep.subr.mxu0 0.0
    %1941 = vmatpush1.msra.mxu0 0.0
    %1942 = vmatprep.subr.mxu0 0.0
    %1943 = vmatpush1.msra.mxu0 0.0
    %1944 = vmatprep.subr.mxu0 0.0
    %1945 = vmatpush1.msra.mxu0 0.0
    %1946 = vmatprep.subr.mxu0 0.0
    %1947 = vmatpush1.msra.mxu0 0.0
    %1948 = vmatprep.subr.mxu0 0.0
    %1949 = vmatpush1.msra.mxu0 0.0
    %1950 = vmatprep.subr.mxu0 0.0
    %1951 = vmatpush1.msra.mxu0 0.0
    %1952 = vmatprep.subr.mxu0 0.0
    %1953 = vmatpush1.msra.mxu0 0.0
    %1954 = vmatprep.subr.mxu0 0.0
    %1955 = vmatpush1.msra.mxu0 0.0
    %1956 = vmatprep.subr.mxu0 0.0
    %1957 = vmatpush1.msra.mxu0 0.0
    %1958 = vmatprep.subr.mxu0 0.0
    %1959 = vmatpush1.msra.mxu0 0.0
    %1960 = vmatprep.mubr.f32.mxu0 0.0
    %1961 = vmatmul.mubr.f32.gmra.mrb[0].mxu0 %v1894
    %v1962 = vpop.f32.mrb[0].mxu0
    %v1963 = vadd.f32 0.0, %v1962
    %v1964 = vpop.f32.mrb[0].mxu0
    %1965 = vdwg.mxu0
    %1966 = vrot.lane.b32.xlu0 %v1465, 112
    %v1967 = vpop.permute.xlu0 %1966
    %1968 = vrot.lane.b32.xlu0 %v1461, 80
    %v1969 = vpop.permute.xlu0 %1968
    %v1970 = vsel %vm394, %v1967, 0
    %v1972 = vsel %vm394, %v1969, 0
    %1974 = vmatprep.subr.mxu0 0.0
    %1975 = vmatpush1.xpose.msra.mxu0 %v1972
    %1976 = vmatprep.subr.mxu0 0.0
    %1977 = vmatpush1.xpose.msra.mxu0 0.0
    %1978 = vmatprep.subr.mxu0 0.0
    %1979 = vmatpush1.xpose.msra.mxu0 0.0
    %1980 = vmatprep.subr.mxu0 0.0
    %1981 = vmatpush1.xpose.msra.mxu0 0.0
    %1982 = vmatprep.subr.mxu0 0.0
    %1983 = vmatpush1.xpose.msra.mxu0 0.0
    %1984 = vmatprep.subr.mxu0 0.0
    %1985 = vmatpush1.xpose.msra.mxu0 0.0
    %1986 = vmatprep.subr.mxu0 0.0
    %1987 = vmatpush1.xpose.msra.mxu0 0.0
    %1988 = vmatprep.subr.mxu0 0.0
    %1989 = vmatpush1.xpose.msra.mxu0 0.0
    %1990 = vmatprep.subr.mxu0 0.0
    %1991 = vmatpush1.xpose.msra.mxu0 0.0
    %1992 = vmatprep.subr.mxu0 0.0
    %1993 = vmatpush1.xpose.msra.mxu0 0.0
    %1994 = vmatprep.subr.mxu0 0.0
    %1995 = vmatpush1.xpose.msra.mxu0 0.0
    %1996 = vmatprep.subr.mxu0 0.0
    %1997 = vmatpush1.xpose.msra.mxu0 0.0
    %1998 = vmatprep.subr.mxu0 0.0
    %1999 = vmatpush1.xpose.msra.mxu0 0.0
    %2000 = vmatprep.subr.mxu0 0.0
    %2001 = vmatpush1.xpose.msra.mxu0 0.0
    %2002 = vmatprep.subr.mxu0 0.0
    %2003 = vmatpush1.xpose.msra.mxu0 0.0
    %2004 = vmatprep.subr.mxu0 0.0
    %2005 = vmatpush1.xpose.msra.mxu0 0.0
    %2006 = vmatprep.subr.mxu0 0.0
    %2007 = vmatpush1.xpose.msra.mxu0 0.0
    %2008 = vmatprep.subr.mxu0 0.0
    %2009 = vmatpush1.xpose.msra.mxu0 0.0
    %2010 = vmatprep.subr.mxu0 0.0
    %2011 = vmatpush1.xpose.msra.mxu0 0.0
    %2012 = vmatprep.subr.mxu0 0.0
    %2013 = vmatpush1.xpose.msra.mxu0 0.0
    %2014 = vmatprep.subr.mxu0 0.0
    %2015 = vmatpush1.xpose.msra.mxu0 0.0
    %2016 = vmatprep.subr.mxu0 0.0
    %2017 = vmatpush1.xpose.msra.mxu0 0.0
    %2018 = vmatprep.subr.mxu0 0.0
    %2019 = vmatpush1.xpose.msra.mxu0 0.0
    %2020 = vmatprep.subr.mxu0 0.0
    %2021 = vmatpush1.xpose.msra.mxu0 0.0
    %2022 = vmatprep.subr.mxu0 0.0
    %2023 = vmatpush1.xpose.msra.mxu0 0.0
    %2024 = vmatprep.subr.mxu0 0.0
    %2025 = vmatpush1.xpose.msra.mxu0 0.0
    %2026 = vmatprep.subr.mxu0 0.0
    %2027 = vmatpush1.xpose.msra.mxu0 0.0
    %2028 = vmatprep.subr.mxu0 0.0
    %2029 = vmatpush1.xpose.msra.mxu0 0.0
    %2030 = vmatprep.subr.mxu0 0.0
    %2031 = vmatpush1.xpose.msra.mxu0 0.0
    %2032 = vmatprep.subr.mxu0 0.0
    %2033 = vmatpush1.xpose.msra.mxu0 0.0
    %2034 = vmatprep.subr.mxu0 0.0
    %2035 = vmatpush1.xpose.msra.mxu0 0.0
    %2036 = vmatprep.subr.mxu0 0.0
    %2037 = vmatpush1.xpose.msra.mxu0 0.0
    %2038 = vmatprep.mubr.f32.mxu0 0.0
    %2039 = vmatmul.mubr.f32.gmra.mrb[0].mxu0 %v1970
    %v2040 = vpop.f32.mrb[0].mxu0
    %v2041 = vadd.f32 %v320, %v2040
    %v2042 = vpop.f32.mrb[0].mxu0
    %2043 = vdwg.mxu0
    %v2044 = vsel %vm470, %v2041, -inf
    %2045 = vmax.xlane.f32.xlu0 %v2044
    %v2046 = vpop.xlane.xlu0 %2045
    %v2047 = vsub.f32 %v2041, %v2046
    %v2048 = vmul.f32 %v2047, 1.442695
    %v2049 = vpow.pop %v2048
    %v2050 = vsel %vm470, %v2049, 0.0
    %2051 = vadd.xlane.f32.xlu0 %v2050
    %v2052 = vpop.xlane.xlu0 %2051
    %v2053 = vrcp.pop %v2052
    %v2054 = vmul.f32 %v2049, %v2053
    %2055 = vrot.lane.b32.xlu0 %v1461, 48
    %v2056 = vpop.permute.xlu0 %2055
    %v2059 = vsel %vm470, %v2054, 0
    %2061 = vmatprep.subr.mxu0 0.0
    %2062 = vmatpush1.msra.mxu0 %v2056
    %2063 = vmatprep.subr.mxu0 0.0
    %2064 = vmatpush1.msra.mxu0 0.0
    %2065 = vmatprep.subr.mxu0 0.0
    %2066 = vmatpush1.msra.mxu0 0.0
    %2067 = vmatprep.subr.mxu0 0.0
    %2068 = vmatpush1.msra.mxu0 0.0
    %2069 = vmatprep.subr.mxu0 0.0
    %2070 = vmatpush1.msra.mxu0 0.0
    %2071 = vmatprep.subr.mxu0 0.0
    %2072 = vmatpush1.msra.mxu0 0.0
    %2073 = vmatprep.subr.mxu0 0.0
    %2074 = vmatpush1.msra.mxu0 0.0
    %2075 = vmatprep.subr.mxu0 0.0
    %2076 = vmatpush1.msra.mxu0 0.0
    %2077 = vmatprep.subr.mxu0 0.0
    %2078 = vmatpush1.msra.mxu0 0.0
    %2079 = vmatprep.subr.mxu0 0.0
    %2080 = vmatpush1.msra.mxu0 0.0
    %2081 = vmatprep.subr.mxu0 0.0
    %2082 = vmatpush1.msra.mxu0 0.0
    %2083 = vmatprep.subr.mxu0 0.0
    %2084 = vmatpush1.msra.mxu0 0.0
    %2085 = vmatprep.subr.mxu0 0.0
    %2086 = vmatpush1.msra.mxu0 0.0
    %2087 = vmatprep.subr.mxu0 0.0
    %2088 = vmatpush1.msra.mxu0 0.0
    %2089 = vmatprep.subr.mxu0 0.0
    %2090 = vmatpush1.msra.mxu0 0.0
    %2091 = vmatprep.subr.mxu0 0.0
    %2092 = vmatpush1.msra.mxu0 0.0
    %2093 = vmatprep.subr.mxu0 0.0
    %2094 = vmatpush1.msra.mxu0 0.0
    %2095 = vmatprep.subr.mxu0 0.0
    %2096 = vmatpush1.msra.mxu0 0.0
    %2097 = vmatprep.subr.mxu0 0.0
    %2098 = vmatpush1.msra.mxu0 0.0
    %2099 = vmatprep.subr.mxu0 0.0
    %2100 = vmatpush1.msra.mxu0 0.0
    %2101 = vmatprep.subr.mxu0 0.0
    %2102 = vmatpush1.msra.mxu0 0.0
    %2103 = vmatprep.subr.mxu0 0.0
    %2104 = vmatpush1.msra.mxu0 0.0
    %2105 = vmatprep.subr.mxu0 0.0
    %2106 = vmatpush1.msra.mxu0 0.0
    %2107 = vmatprep.subr.mxu0 0.0
    %2108 = vmatpush1.msra.mxu0 0.0
    %2109 = vmatprep.subr.mxu0 0.0
    %2110 = vmatpush1.msra.mxu0 0.0
    %2111 = vmatprep.subr.mxu0 0.0
    %2112 = vmatpush1.msra.mxu0 0.0
    %2113 = vmatprep.subr.mxu0 0.0
    %2114 = vmatpush1.msra.mxu0 0.0
    %2115 = vmatprep.subr.mxu0 0.0
    %2116 = vmatpush1.msra.mxu0 0.0
    %2117 = vmatprep.subr.mxu0 0.0
    %2118 = vmatpush1.msra.mxu0 0.0
    %2119 = vmatprep.subr.mxu0 0.0
    %2120 = vmatpush1.msra.mxu0 0.0
    %2121 = vmatprep.subr.mxu0 0.0
    %2122 = vmatpush1.msra.mxu0 0.0
    %2123 = vmatprep.subr.mxu0 0.0
    %2124 = vmatpush1.msra.mxu0 0.0
    %2125 = vmatprep.mubr.f32.mxu0 0.0
    %2126 = vmatmul.mubr.f32.gmra.mrb[0].mxu0 %v2059
    %v2127 = vpop.f32.mrb[0].mxu0
    %v2128 = vadd.f32 0.0, %v2127
    %v2129 = vpop.f32.mrb[0].mxu0
    %2130 = vdwg.mxu0
    %2132 = vrot.lane.b32.xlu0 %v2128, 16
    %v2133 = vpop.permute.xlu0 %2132
    %v2135 = vsel %vm394, %v1963, %v2133
    %v2136 = vpack.c.bf16 %v2135, %v1800
    %s2137 = scalar_lea.vmem %s10, 16
    %v2138 = vld [vmem:[%s2137] sm:$0xf]
    %v2139 = vld [vmem:[%s2137 + $0x4] sm:$0xf]
    %v2140 = vld [vmem:[%s2137 + $0x8] sm:$0xf]
    %v2141 = vld [vmem:[%s2137 + $0xc] sm:$0xf]
    %s2142 = scalar_lea.vmem %s11, 1
    %v2143 = vld [vmem:[%s2142] sm:$0x1]
    %v2145 = vlaneseq
    %v2146 = vshrl.u32 %v2145, 7
    %v2147 = vsub.s32 0, %v2146
    %v2148 = vrot.slane %v2143, %v2147
    %v2154 = vunpack.c.l.b16 %v2138
    %v2155 = vunpack.c.l.b16 %v2139
    %v2156 = vunpack.c.l.b16 %v2140
    %v2157 = vunpack.c.l.b16 %v2141
    %v2158 = vpack.c.b16 %v2155, %v2154
    %v2159 = vpack.c.b16 %v2157, %v2156
    %v2163 = vsel %vm265, %v2136, 0
    %2165 = vmatprep.subr.bf16.mxu0 0
    %2166 = vmatpush1.bf16.msra.mxu0 %v2158
    %2167 = vmatprep.subr.bf16.mxu0 0
    %2168 = vmatpush1.bf16.msra.mxu0 %v2159
    %2169 = vmatprep.subr.bf16.mxu0 0
    %2170 = vmatpush1.bf16.msra.mxu0 0
    %2171 = vmatprep.subr.bf16.mxu0 0
    %2172 = vmatpush1.bf16.msra.mxu0 0
    %2173 = vmatprep.subr.bf16.mxu0 0
    %2174 = vmatpush1.bf16.msra.mxu0 0
    %2175 = vmatprep.subr.bf16.mxu0 0
    %2176 = vmatpush1.bf16.msra.mxu0 0
    %2177 = vmatprep.subr.bf16.mxu0 0
    %2178 = vmatpush1.bf16.msra.mxu0 0
    %2179 = vmatprep.subr.bf16.mxu0 0
    %2180 = vmatpush1.bf16.msra.mxu0 0
    %2181 = vmatprep.subr.bf16.mxu0 0
    %2182 = vmatpush1.bf16.msra.mxu0 0
    %2183 = vmatprep.subr.bf16.mxu0 0
    %2184 = vmatpush1.bf16.msra.mxu0 0
    %2185 = vmatprep.subr.bf16.mxu0 0
    %2186 = vmatpush1.bf16.msra.mxu0 0
    %2187 = vmatprep.subr.bf16.mxu0 0
    %2188 = vmatpush1.bf16.msra.mxu0 0
    %2189 = vmatprep.subr.bf16.mxu0 0
    %2190 = vmatpush1.bf16.msra.mxu0 0
    %2191 = vmatprep.subr.bf16.mxu0 0
    %2192 = vmatpush1.bf16.msra.mxu0 0
    %2193 = vmatprep.subr.bf16.mxu0 0
    %2194 = vmatpush1.bf16.msra.mxu0 0
    %2195 = vmatprep.subr.bf16.mxu0 0
    %2196 = vmatpush1.bf16.msra.mxu0 0
    %2197 = vmatprep.mubr.bf16.mxu0 0
    %2198 = vmatmul.mubr.bf16.gmra.mrb[0].mxu0 %v2163
    %v2199 = vpop.f32.mrb[0].mxu0
    %v2200 = vadd.f32 %v2148, %v2199
    %v2201 = vpop.f32.mrb[0].mxu0
    %v2202 = vpop.f32.mrb[0].mxu0
    %v2203 = vadd.f32 %v2148, %v2202
    %v2204 = vpop.f32.mrb[0].mxu0
    %2205 = vdwg.mxu0
    %v2206 = vadd.f32 %v2200, %v1392
    %v2207 = vadd.f32 %v2203, %v1393
    %s2208 = scalar_lea.vmem %s12, 1
    %v2209 = vld [vmem:[%s2208] sm:$0x1]
    %s2210 = scalar_lea.vmem %s13, 1
    %v2211 = vld [vmem:[%s2210] sm:$0x1]
    %v2212 = vsel %vm265, %v2206, 0.0
    %2213 = vadd.xlane.f32.xlu0 %v2212
    %v2214 = vpop.xlane.xlu0 %2213
    %v2215 = vsel %vm265, %v2207, 0.0
    %2216 = vadd.xlane.f32.xlu0 %v2215
    %v2217 = vpop.xlane.xlu0 %2216
    %v2218 = vmul.f32 %v2214, %v272
    %v2219 = vmul.f32 %v2217, %v272
    %v2220 = vsub.f32 %v2206, %v2218
    %v2221 = vsub.f32 %v2207, %v2219
    %v2222 = vmul.f32 %v2220, %v2220
    %v2223 = vmul.f32 %v2221, %v2221
    %v2224 = vsel %vm265, %v2222, 0.0
    %2225 = vadd.xlane.f32.xlu0 %v2224
    %v2226 = vpop.xlane.xlu0 %2225
    %v2227 = vsel %vm265, %v2223, 0.0
    %2228 = vadd.xlane.f32.xlu0 %v2227
    %v2229 = vpop.xlane.xlu0 %2228
    %v2230 = vmul.f32 %v2226, %v272
    %v2231 = vmul.f32 %v2229, %v272
    %v2232 = vadd.f32 %v2230, 1e-12
    %v2233 = vadd.f32 %v2231, 1e-12
    %v2234 = vrsqrt.pop %v2232
    %v2235 = vrsqrt.pop %v2233
    %v2236 = vmul.f32 %v2220, %v2234
    %v2237 = vmul.f32 %v2221, %v2235
    %v2239 = vlaneseq
    %v2240 = vshrl.u32 %v2239, 7
    %v2241 = vsub.s32 0, %v2240
    %v2242 = vrot.slane %v2209, %v2241
    %v2244 = vmul.f32 %v2236, %v2242
    %v2245 = vmul.f32 %v2237, %v2242
    %v2247 = vlaneseq
    %v2248 = vshrl.u32 %v2247, 7
    %v2249 = vsub.s32 0, %v2248
    %v2250 = vrot.slane %v2211, %v2249
    %v2252 = vadd.f32 %v2244, %v2250
    %v2253 = vadd.f32 %v2245, %v2250
    %v2254 = vpack.c.bf16 %v2253, %v2252
    %s2255 = scalar_lea.vmem %s14, 16
    %v2256 = vld [vmem:[%s2255] sm:$0xf]
    %v2257 = vld [vmem:[%s2255 + $0x4] sm:$0xf]
    %v2258 = vld [vmem:[%s2255 + $0x8] sm:$0xf]
    %v2259 = vld [vmem:[%s2255 + $0xc] sm:$0xf]
    %s2260 = scalar_lea.vmem [#allocation2], 1
    %v2261 = vld [vmem:[%s2260] sm:$0x1]
    %v2263 = vlaneseq
    %v2264 = vshrl.u32 %v2263, 7
    %v2265 = vsub.s32 0, %v2264
    %v2266 = vrot.slane %v2261, %v2265
    %v2272 = vunpack.c.l.b16 %v2256
    %v2273 = vunpack.c.l.b16 %v2257
    %v2274 = vunpack.c.l.b16 %v2258
    %v2275 = vunpack.c.l.b16 %v2259
    %v2276 = vpack.c.b16 %v2273, %v2272
    %v2277 = vpack.c.b16 %v2275, %v2274
    %v2281 = vsel %vm265, %v2254, 0
    %2283 = vmatprep.subr.bf16.mxu0 0
    %2284 = vmatpush1.bf16.msra.mxu0 %v2276
    %2285 = vmatprep.subr.bf16.mxu0 0
    %2286 = vmatpush1.bf16.msra.mxu0 %v2277
    %2287 = vmatprep.subr.bf16.mxu0 0
    %2288 = vmatpush1.bf16.msra.mxu0 0
    %2289 = vmatprep.subr.bf16.mxu0 0
    %2290 = vmatpush1.bf16.msra.mxu0 0
    %2291 = vmatprep.subr.bf16.mxu0 0
    %2292 = vmatpush1.bf16.msra.mxu0 0
    %2293 = vmatprep.subr.bf16.mxu0 0
    %2294 = vmatpush1.bf16.msra.mxu0 0
    %2295 = vmatprep.subr.bf16.mxu0 0
    %2296 = vmatpush1.bf16.msra.mxu0 0
    %2297 = vmatprep.subr.bf16.mxu0 0
    %2298 = vmatpush1.bf16.msra.mxu0 0
    %2299 = vmatprep.subr.bf16.mxu0 0
    %2300 = vmatpush1.bf16.msra.mxu0 0
    %2301 = vmatprep.subr.bf16.mxu0 0
    %2302 = vmatpush1.bf16.msra.mxu0 0
    %2303 = vmatprep.subr.bf16.mxu0 0
    %2304 = vmatpush1.bf16.msra.mxu0 0
    %2305 = vmatprep.subr.bf16.mxu0 0
    %2306 = vmatpush1.bf16.msra.mxu0 0
    %2307 = vmatprep.subr.bf16.mxu0 0
    %2308 = vmatpush1.bf16.msra.mxu0 0
    %2309 = vmatprep.subr.bf16.mxu0 0
    %2310 = vmatpush1.bf16.msra.mxu0 0
    %2311 = vmatprep.subr.bf16.mxu0 0
    %2312 = vmatpush1.bf16.msra.mxu0 0
    %2313 = vmatprep.subr.bf16.mxu0 0
    %2314 = vmatpush1.bf16.msra.mxu0 0
    %2315 = vmatprep.mubr.bf16.mxu0 0
    %2316 = vmatmul.mubr.bf16.gmra.mrb[0].mxu0 %v2281
    %v2317 = vpop.f32.mrb[0].mxu0
    %v2318 = vadd.f32 %v2266, %v2317
    %v2319 = vpop.f32.mrb[0].mxu0
    %v2320 = vpop.f32.mrb[0].mxu0
    %v2321 = vadd.f32 %v2266, %v2320
    %v2322 = vpop.f32.mrb[0].mxu0
    %2323 = vdwg.mxu0
    %v2324 = vmul.f32 %v2318, %v2318
    %v2325 = vmul.f32 %v2321, %v2321
    %v2326 = vmul.f32 %v2318, %v2324
    %v2327 = vmul.f32 %v2321, %v2325
    %v2328 = vmul.f32 %v2326, 0.044715
    %v2329 = vmul.f32 %v2327, 0.044715
    %v2330 = vadd.f32 %v2318, %v2328
    %v2331 = vadd.f32 %v2321, %v2329
    %v2332 = vmul.f32 %v2330, 0.7978846
    %v2333 = vmul.f32 %v2331, 0.7978846
    %v2334 = vtanh.pop %v2332
    %v2335 = vtanh.pop %v2333
    %v2336 = vadd.f32 %v2334, 1.0
    %v2337 = vadd.f32 %v2335, 1.0
    %v2338 = vmul.f32 %v2336, 0.5
    %v2339 = vmul.f32 %v2337, 0.5
    %v2340 = vmul.f32 %v2318, %v2338
    %v2341 = vmul.f32 %v2321, %v2339
    %v2342 = vpack.c.bf16 %v2341, %v2340
    %s2343 = scalar_lea.vmem %s16, 32
    %v2344 = vld [vmem:[%s2343] sm:$0xf]
    %v2345 = vld [vmem:[%s2343 + $0x4] sm:$0xf]
    %v2346 = vld [vmem:[%s2343 + $0x8] sm:$0xf]
    %v2347 = vld [vmem:[%s2343 + $0xc] sm:$0xf]
    %v2348 = vld [vmem:[%s2343 + $0x10] sm:$0xf]
    %v2349 = vld [vmem:[%s2343 + $0x14] sm:$0xf]
    %v2350 = vld [vmem:[%s2343 + $0x18] sm:$0xf]
    %v2351 = vld [vmem:[%s2343 + $0x1c] sm:$0xf]
    %s2352 = scalar_lea.vmem [#allocation5], 1
    %v2353 = vld [vmem:[%s2352] sm:$0x1]
    %v2355 = vlaneseq
    %v2356 = vshrl.u32 %v2355, 7
    %v2357 = vsub.s32 0, %v2356
    %v2358 = vrot.slane %v2353, %v2357
    %v2368 = vunpack.c.l.b16 %v2344
    %v2369 = vunpack.c.l.b16 %v2345
    %v2370 = vunpack.c.l.b16 %v2346
    %v2371 = vunpack.c.l.b16 %v2347
    %v2372 = vunpack.c.l.b16 %v2348
    %v2373 = vunpack.c.l.b16 %v2349
    %v2374 = vunpack.c.l.b16 %v2350
    %v2375 = vunpack.c.l.b16 %v2351
    %v2376 = vpack.c.b16 %v2369, %v2368
    %v2377 = vpack.c.b16 %v2371, %v2370
    %v2378 = vpack.c.b16 %v2373, %v2372
    %v2379 = vpack.c.b16 %v2375, %v2374
    %v2385 = vsel %vm1303, %v2342, 0
    %2387 = vmatprep.subr.bf16.mxu0 0
    %2388 = vmatpush1.bf16.msra.mxu0 %v2376
    %2389 = vmatprep.subr.bf16.mxu0 0
    %2390 = vmatpush1.bf16.msra.mxu0 %v2377
    %2391 = vmatprep.subr.bf16.mxu0 0
    %2392 = vmatpush1.bf16.msra.mxu0 %v2378
    %2393 = vmatprep.subr.bf16.mxu0 0
    %2394 = vmatpush1.bf16.msra.mxu0 %v2379
    %2395 = vmatprep.subr.bf16.mxu0 0
    %2396 = vmatpush1.bf16.msra.mxu0 0
    %2397 = vmatprep.subr.bf16.mxu0 0
    %2398 = vmatpush1.bf16.msra.mxu0 0
    %2399 = vmatprep.subr.bf16.mxu0 0
    %2400 = vmatpush1.bf16.msra.mxu0 0
    %2401 = vmatprep.subr.bf16.mxu0 0
    %2402 = vmatpush1.bf16.msra.mxu0 0
    %2403 = vmatprep.subr.bf16.mxu0 0
    %2404 = vmatpush1.bf16.msra.mxu0 0
    %2405 = vmatprep.subr.bf16.mxu0 0
    %2406 = vmatpush1.bf16.msra.mxu0 0
    %2407 = vmatprep.subr.bf16.mxu0 0
    %2408 = vmatpush1.bf16.msra.mxu0 0
    %2409 = vmatprep.subr.bf16.mxu0 0
    %2410 = vmatpush1.bf16.msra.mxu0 0
    %2411 = vmatprep.subr.bf16.mxu0 0
    %2412 = vmatpush1.bf16.msra.mxu0 0
    %2413 = vmatprep.subr.bf16.mxu0 0
    %2414 = vmatpush1.bf16.msra.mxu0 0
    %2415 = vmatprep.subr.bf16.mxu0 0
    %2416 = vmatpush1.bf16.msra.mxu0 0
    %2417 = vmatprep.subr.bf16.mxu0 0
    %2418 = vmatpush1.bf16.msra.mxu0 0
    %2419 = vmatprep.mubr.bf16.mxu0 0
    %2420 = vmatmul.mubr.bf16.gmra.mrb[0].mxu0 %v2385
    %v2421 = vpop.f32.mrb[0].mxu0
    %v2422 = vadd.f32 %v2358, %v2421
    %v2423 = vpop.f32.mrb[0].mxu0
    %v2424 = vpop.f32.mrb[0].mxu0
    %v2425 = vadd.f32 %v2358, %v2424
    %v2426 = vpop.f32.mrb[0].mxu0
    %2427 = vdwg.mxu0
    %v2428 = vadd.f32 %v2422, %v2252
    %v2429 = vadd.f32 %v2425, %v2253
    %s2430 = scalar_lea.vmem %s18, 1
    %v2431 = vld [vmem:[%s2430] sm:$0x1]
    %s2432 = scalar_lea.vmem %s19, 1
    %v2433 = vld [vmem:[%s2432] sm:$0x1]
    %v2434 = vsel %vm265, %v2428, 0.0
    %2435 = vadd.xlane.f32.xlu0 %v2434
    %v2436 = vpop.xlane.xlu0 %2435
    %v2437 = vsel %vm265, %v2429, 0.0
    %2438 = vadd.xlane.f32.xlu0 %v2437
    %v2439 = vpop.xlane.xlu0 %2438
    %v2440 = vmul.f32 %v2436, %v272
    %v2441 = vmul.f32 %v2439, %v272
    %v2442 = vsub.f32 %v2428, %v2440
    %v2443 = vsub.f32 %v2429, %v2441
    %v2444 = vmul.f32 %v2442, %v2442
    %v2445 = vmul.f32 %v2443, %v2443
    %v2446 = vsel %vm265, %v2444, 0.0
    %2447 = vadd.xlane.f32.xlu0 %v2446
    %v2448 = vpop.xlane.xlu0 %2447
    %v2449 = vsel %vm265, %v2445, 0.0
    %2450 = vadd.xlane.f32.xlu0 %v2449
    %v2451 = vpop.xlane.xlu0 %2450
    %v2452 = vmul.f32 %v2448, %v272
    %v2453 = vmul.f32 %v2451, %v272
    %v2454 = vadd.f32 %v2452, 1e-12
    %v2455 = vadd.f32 %v2453, 1e-12
    %v2456 = vrsqrt.pop %v2454
    %v2457 = vrsqrt.pop %v2455
    %v2458 = vmul.f32 %v2442, %v2456
    %v2459 = vmul.f32 %v2443, %v2457
    %v2461 = vlaneseq
    %v2462 = vshrl.u32 %v2461, 7
    %v2463 = vsub.s32 0, %v2462
    %v2464 = vrot.slane %v2431, %v2463
    %v2466 = vmul.f32 %v2458, %v2464
    %v2467 = vmul.f32 %v2459, %v2464
    %v2469 = vlaneseq
    %v2470 = vshrl.u32 %v2469, 7
    %v2471 = vsub.s32 0, %v2470
    %v2472 = vrot.slane %v2433, %v2471
    %v2474 = vadd.f32 %v2466, %v2472
    %v2475 = vadd.f32 %v2467, %v2472
    %v2477 = vrot.slane %v2475, 7
    %v2479 = vsel %vm145, %v2474, %v2477
    %vm2480 = vcmask 254976
    %2481 = vst.msk [vmem:[#allocation7] sm:$0x3] %vm2480, %v2479
    // Predicated region
    $region98: #{esimcse_forward.1} parent=1 // pred_check
      _
    $region99: #{esimcse_forward.1} parent=1 // pred_check_branch
      %2483 = sbr.rel (0) target = $region101
    $region100: #{esimcse_forward.1} parent=1 // pred_region
      %s2485 = ssub.s32 32, 32
      %2486 = vsyncadd [#allocation4], %s2485
      %s2488 = sshll.u32 [#allocation7], 4
      %s2489 = int_to_ptr.vmem [resolvable:$true] %s2488
      %2491 = dma.vmem_to_hbm [thread:$0]  %s2489, 32, %s22, [#allocation4]
    $region101: #{esimcse_forward.1} parent=1 // pred_fallthru
      _
    // Predicated region
    $region102: #{esimcse_forward.1} parent=1 // pred_check
      _
    $region103: #{esimcse_forward.1} parent=1 // pred_check_branch
      %2493 = sbr.rel (0) target = $region105
    $region104: #{esimcse_forward.1} parent=1 // pred_region
      %2494 = dma.done [#allocation4], 32
    $region105: #{esimcse_forward.1} parent=1 // pred_fallthru
      _
    %2495 = vsyncpa [#allocation3], 1
    %2496 = vsyncpa [#allocation6], 1
    %2497 = vsyncpa [#allocation4], 1

</llo_original>
